<compile_context>
chip_gen: v7x
topology: tpu7x:2x2x1
jax: 0.10.0
libtpu: 0.0.40
codegen_flags: <defaults>
</compile_context>

<pallas_src>
import functools

import jax
import jax.numpy as jnp
from jax import lax
from jax.experimental import pallas as pl
from jax.experimental.pallas import tpu as pltpu

NEG_SLOPE = 0.01            # nn.LeakyReLU default
DILATIONS = (1, 3, 9, 27)   # 3**i for i in range(4)
# Halo >= receptive field sum(3**i + 1) = 44; kept a multiple of 128 so the halo
# BlockSpecs stay lane-aligned with blocked indexing.
# TODO(synk): a 64-lane halo would need an element-indexed single-window BlockSpec.
HALO = 128


# ----------------------------------------------------------------------------
# Kernel: one (batch, time-tile) block of the whole ResStack forward.
#   w_ref : (8, C, 3C) bf16  fused per-conv weights (tap k at columns [k*C,(k+1)*C))
#   b_ref : (8, C, 1)  f32   per-conv biases
#   xl/xc/xr_ref : (1, C, HALO)/(1, C, t_tile)/(1, C, HALO) f32  halo'd window
#   o_ref : (1, C, t_tile) f32
#   x3_ref: (3C, t_tile + 2*HALO) bf16 VMEM scratch (fused-tap matmul operand)
# ----------------------------------------------------------------------------
def resstack_kernel(w_ref, b_ref, xl_ref, xc_ref, xr_ref, o_ref, x3_ref, *,
                    seq_len, t_tile, halo):
    C = o_ref.shape[1]
    W = t_tile + 2 * halo
    base = pl.program_id(1) * t_tile        # global time index of window column `halo`

    # Working window (C, W): channels on sublanes, time on lanes.
    x = jnp.concatenate([xl_ref[0], xc_ref[0], xr_ref[0]], axis=1)

    # Validity masks, built once and reused by every conv: window column c may
    # read column c+s iff the read stays inside the window (no roll wrap-around)
    # and its global time index (base - halo + c + s) lies in [0, seq_len).
    # This reproduces the per-layer zero 'same' padding of the reference Conv1d
    # and also neutralizes garbage columns from clamped-halo / partial-edge reads.
    lane = lax.broadcasted_iota(jnp.int32, (1, W), 1)
    lo = jnp.maximum(0, halo - base)
    hi = jnp.minimum(W, halo - base + seq_len)
    masks = {}
    for d in sorted({1, *DILATIONS}):
        for s in (d, -d):
            masks[s] = (lane >= lo - s) & (lane < hi - s)

    def leaky(v):                           # LeakyReLU(0.01) as a single vmax
        return jnp.maximum(v, NEG_SLOPE * v)

    def tap(a, s):                          # out[:, c] = a[:, c + s], 0 if invalid
        rolled = pltpu.roll(a, shift=(-s) % W, axis=1)   # XLU rotate, no VMEM copies
        return jnp.where(masks[s], rolled, 0.0)

    def conv(a, idx, d):
        # Fused 3-tap dilated conv: assemble the (3C, W) operand in bf16 scratch
        # (one store pass), then a single (C,3C)x(3C,W) MXU matmul, f32 accumulate.
        x3_ref[0:C, :] = tap(a, -d).astype(jnp.bfloat16)
        x3_ref[C:2 * C, :] = a.astype(jnp.bfloat16)
        x3_ref[2 * C:3 * C, :] = tap(a, d).astype(jnp.bfloat16)
        y = jnp.dot(w_ref[idx], x3_ref[...], preferred_element_type=jnp.float32)
        return y + b_ref[idx]               # (C, 1) bias broadcast along lanes

    for i, d in enumerate(DILATIONS):
        h = conv(leaky(x), 2 * i, d)        # dilated conv (dilation 3**i)
        h = conv(leaky(h), 2 * i + 1, 1)    # plain conv  (dilation 1)
        x = x + h                           # residual stream stays f32

    # Store the valid (non-halo) tile; lane-aligned slice, lane-dense store.
    # Pallas discards the out-of-range tail of the last (partial) tile.
    o_ref[0] = x[:, halo:halo + t_tile].astype(o_ref.dtype)


# ----------------------------------------------------------------------------
# One-time parameter repack (hoisted out of the per-call wrapper):
#   PyTorch (C_out, C_in, 3) conv weights -> fused (8, C, 3C) bf16, tap k at
#   columns [k*C, (k+1)*C); biases -> (8, C, 1) f32.
# ----------------------------------------------------------------------------
def fuse_params(weights, biases):
    C = weights[0].shape[0]
    w = jnp.stack([jnp.transpose(wi, (0, 2, 1)).reshape(C, 3 * C) for wi in weights])
    b = jnp.stack(biases).reshape(len(biases), C, 1)
    return w.astype(jnp.bfloat16), b.astype(jnp.float32)


# ----------------------------------------------------------------------------
# Wrapper: NCW in / NCW out.  No input padding, no output slicing.
# ----------------------------------------------------------------------------
def resstack_pallas(x_ncw, w_fused, b_fused, *, t_tile=1024):
    B, C, T = x_ncw.shape
    n_convs = w_fused.shape[0]
    assert t_tile % 128 == 0
    t_tile = min(t_tile, pl.cdiv(T, 128) * 128)   # don't tile past the sequence
    n_tiles = pl.cdiv(T, t_tile)
    lpt = t_tile // 128                           # 128-lane blocks per tile
    last_halo_blk = pl.cdiv(T, HALO) - 1

    # Halo index maps are clamped into range; the resulting wrong-data columns all
    # carry global time indices outside [0, T) and are zeroed by the kernel masks.
    def left_map(b, j):
        return (b, 0, jnp.maximum(j * lpt - 1, 0))

    def right_map(b, j):
        return (b, 0, jnp.minimum((j + 1) * lpt, last_halo_blk))

    kernel = functools.partial(resstack_kernel, seq_len=T, t_tile=t_tile, halo=HALO)
    x = x_ncw.astype(jnp.float32)

    return pl.pallas_call(
        kernel,
        out_shape=jax.ShapeDtypeStruct((B, C, T), jnp.float32),
        grid_spec=pltpu.PrefetchScalarGridSpec(
            num_scalar_prefetch=0,
            grid=(B, n_tiles),
            in_specs=[
                pl.BlockSpec((n_convs, C, 3 * C), lambda b, j: (0, 0, 0)),  # weights (resident)
                pl.BlockSpec((n_convs, C, 1), lambda b, j: (0, 0, 0)),      # biases
                pl.BlockSpec((1, C, HALO), left_map),                       # left halo
                pl.BlockSpec((1, C, t_tile), lambda b, j: (b, 0, j)),       # center tile
                pl.BlockSpec((1, C, HALO), right_map),                      # right halo
            ],
            out_specs=pl.BlockSpec((1, C, t_tile), lambda b, j: (b, 0, j)),
            scratch_shapes=[pltpu.VMEM((3 * C, t_tile + 2 * HALO), jnp.bfloat16)],
        ),
        compiler_params=pltpu.CompilerParams(
            # B and time tiles are independent -> feed both v7x TensorCores.
            dimension_semantics=("parallel", "parallel"),
            vmem_limit_bytes=48 * 1024 * 1024,   # stays inside v7x's 64 MiB physical VMEM
        ),
    )(w_fused, b_fused, x, x, x)


# ----------------------------------------------------------------------------
# Pure-JAX reference (lax conv) for verification.
# ----------------------------------------------------------------------------
def resstack_ref(x_ncw, weights, biases):
    def leaky(v):
        return jnp.where(v > 0, v, NEG_SLOPE * v)

    y = x_ncw
    for i, d in enumerate(DILATIONS):
        h = leaky(y)
        h = lax.conv_general_dilated(
            h, weights[2 * i], window_strides=(1,), padding=[(d, d)],
            rhs_dilation=(d,), dimension_numbers=("NCH", "OIH", "NCH"),
        ) + biases[2 * i][None, :, None]
        h = leaky(h)
        h = lax.conv_general_dilated(
            h, weights[2 * i + 1], window_strides=(1,), padding=[(1, 1)],
            rhs_dilation=(1,), dimension_numbers=("NCH", "OIH", "NCH"),
        ) + biases[2 * i + 1][None, :, None]
        y = y + h
    return y


# ----------------------------------------------------------------------------
# Deterministic parameter init (Conv1d-style uniform + weight_norm folded in).
# ----------------------------------------------------------------------------
def make_params(key, C):
    weights, biases = [], []
    bound = (C * 3) ** -0.5
    for _ in range(8):  # 4 layers x 2 convs
        key, kv, kb = jax.random.split(key, 3)
        v = jax.random.uniform(kv, (C, C, 3), jnp.float32, -bound, bound)
        # weight_norm reparam: w = g * v / ||v||, g initialized to ||v|| (identity here)
        norm = jnp.sqrt(jnp.sum(v * v, axis=(1, 2), keepdims=True))
        g = norm[:, 0, 0]
        w = g[:, None, None] * v / norm
        b = jax.random.uniform(kb, (C,), jnp.float32, -bound, bound)
        weights.append(w)
        biases.append(b)
    return weights, biases


if __name__ == "__main__":
    # T > 2*27 so every dilated tap is exercised; T not a multiple of 128 so the
    # partial-edge-block and right-edge masking paths are exercised.
    B, C, T = 2, 32, 300
    key = jax.random.PRNGKey(0)
    key, kx = jax.random.split(key)
    x = jax.random.normal(kx, (B, C, T), jnp.float32)

    weights, biases = make_params(key, C)
    w_fused, b_fused = fuse_params(weights, biases)   # hoisted one-time repack
    ref = resstack_ref(x, weights, biases)

    # Default (large-tile) configuration.
    out = jax.block_until_ready(resstack_pallas(x, w_fused, b_fused))
    assert out.shape == (B, C, T)
    max_err = float(jnp.max(jnp.abs(out - ref)))
    # Tolerance accounts for bf16 matmul operands (reference is pure f32).
    assert jnp.allclose(out, ref, rtol=5e-2, atol=5e-2), max_err

    # Multi-tile path: exercises left/right halo clamping and the partial last tile.
    out2 = jax.block_until_ready(resstack_pallas(x, w_fused, b_fused, t_tile=128))
    max_err2 = float(jnp.max(jnp.abs(out2 - ref)))
    assert jnp.allclose(out2, ref, rtol=5e-2, atol=5e-2), max_err2

    print("KERNEL_OK")
</pallas_src>

<mosaic_0001>
module attributes {stable_mosaic.version = 11 : i64} {
  func.func @resstack_kernel(%arg0: i32, %arg1: i32, %arg2: memref<8x32x96xbf16, #tpu.memory_space<vmem>>, %arg3: memref<8x32x1xf32, #tpu.memory_space<vmem>>, %arg4: memref<1x32x128xf32, #tpu.memory_space<vmem>>, %arg5: memref<1x32x384xf32, #tpu.memory_space<vmem>>, %arg6: memref<1x32x128xf32, #tpu.memory_space<vmem>>, %arg7: memref<1x32x384xf32, #tpu.memory_space<vmem>>, %arg8: memref<96x640xbf16, #tpu.memory_space<vmem>>) attributes {dimension_semantics = [#tpu.dimension_semantics<parallel>, #tpu.dimension_semantics<parallel>], iteration_bounds = array<i64: 2, 1>, scalar_prefetch = 0 : i64, scratch_operands = 1 : i64, tpu.core_type = #tpu.core_type<tc>, window_params = [{pipeline_mode = #tpu.pipeline_mode<synchronous>, transform_indices = @transform_0, window_bounds = array<i64: 8, 32, 96>}, {pipeline_mode = #tpu.pipeline_mode<synchronous>, transform_indices = @transform_1, window_bounds = array<i64: 8, 32, 1>}, {transform_indices = @transform_2, window_bounds = array<i64: 1, 32, 128>}, {transform_indices = @transform_3, window_bounds = array<i64: 1, 32, 384>}, {transform_indices = @transform_4, window_bounds = array<i64: 1, 32, 128>}, {transform_indices = @transform_5, window_bounds = array<i64: 1, 32, 384>}]} {
    %c384_i32 = arith.constant 384 : i32
    %0 = arith.muli %arg1, %c384_i32 : i32
    %c0 = arith.constant 0 : index
    %c0_0 = arith.constant 0 : index
    %c0_1 = arith.constant 0 : index
    %1 = vector.load %arg4[%c0, %c0_0, %c0_1] : memref<1x32x128xf32, #tpu.memory_space<vmem>>, vector<1x32x128xf32>
    %2 = vector.shape_cast %1 : vector<1x32x128xf32> to vector<32x128xf32>
    %c0_2 = arith.constant 0 : index
    %c0_3 = arith.constant 0 : index
    %c0_4 = arith.constant 0 : index
    %3 = vector.load %arg5[%c0_2, %c0_3, %c0_4] : memref<1x32x384xf32, #tpu.memory_space<vmem>>, vector<1x32x384xf32>
    %4 = vector.shape_cast %3 : vector<1x32x384xf32> to vector<32x384xf32>
    %c0_5 = arith.constant 0 : index
    %c0_6 = arith.constant 0 : index
    %c0_7 = arith.constant 0 : index
    %5 = vector.load %arg6[%c0_5, %c0_6, %c0_7] : memref<1x32x128xf32, #tpu.memory_space<vmem>>, vector<1x32x128xf32>
    %6 = vector.shape_cast %5 : vector<1x32x128xf32> to vector<32x128xf32>
    %7 = tpu.concatenate %2, %4, %6 in 1 : vector<32x128xf32>, vector<32x384xf32>, vector<32x128xf32> -> vector<32x640xf32>
    %8 = tpu.iota {dimensions = array<i32: 1>} : vector<1x640xi32>
    %c128_i32 = arith.constant 128 : i32
    %9 = arith.subi %c128_i32, %0 : i32
    %c0_i32 = arith.constant 0 : i32
    %10 = arith.maxsi %c0_i32, %9 : i32
    %c128_i32_8 = arith.constant 128 : i32
    %11 = arith.subi %c128_i32_8, %0 : i32
    %c300_i32 = arith.constant 300 : i32
    %12 = arith.addi %11, %c300_i32 : i32
    %c640_i32 = arith.constant 640 : i32
    %13 = arith.minsi %c640_i32, %12 : i32
    %c1_i32 = arith.constant 1 : i32
    %14 = arith.subi %10, %c1_i32 : i32
    %15 = vector.broadcast %14 : i32 to vector<1x640xi32>
    %16 = arith.cmpi sge, %8, %15 : vector<1x640xi32>
    %c1_i32_9 = arith.constant 1 : i32
    %17 = arith.subi %13, %c1_i32_9 : i32
    %18 = vector.broadcast %17 : i32 to vector<1x640xi32>
    %19 = arith.cmpi slt, %8, %18 : vector<1x640xi32>
    %20 = arith.andi %16, %19 : vector<1x640xi1>
    %c-1_i32 = arith.constant -1 : i32
    %21 = arith.subi %10, %c-1_i32 : i32
    %22 = vector.broadcast %21 : i32 to vector<1x640xi32>
    %23 = arith.cmpi sge, %8, %22 : vector<1x640xi32>
    %c-1_i32_10 = arith.constant -1 : i32
    %24 = arith.subi %13, %c-1_i32_10 : i32
    %25 = vector.broadcast %24 : i32 to vector<1x640xi32>
    %26 = arith.cmpi slt, %8, %25 : vector<1x640xi32>
    %27 = arith.andi %23, %26 : vector<1x640xi1>
    %c3_i32 = arith.constant 3 : i32
    %28 = arith.subi %10, %c3_i32 : i32
    %29 = vector.broadcast %28 : i32 to vector<1x640xi32>
    %30 = arith.cmpi sge, %8, %29 : vector<1x640xi32>
    %c3_i32_11 = arith.constant 3 : i32
    %31 = arith.subi %13, %c3_i32_11 : i32
    %32 = vector.broadcast %31 : i32 to vector<1x640xi32>
    %33 = arith.cmpi slt, %8, %32 : vector<1x640xi32>
    %34 = arith.andi %30, %33 : vector<1x640xi1>
    %c-3_i32 = arith.constant -3 : i32
    %35 = arith.subi %10, %c-3_i32 : i32
    %36 = vector.broadcast %35 : i32 to vector<1x640xi32>
    %37 = arith.cmpi sge, %8, %36 : vector<1x640xi32>
    %c-3_i32_12 = arith.constant -3 : i32
    %38 = arith.subi %13, %c-3_i32_12 : i32
    %39 = vector.broadcast %38 : i32 to vector<1x640xi32>
    %40 = arith.cmpi slt, %8, %39 : vector<1x640xi32>
    %41 = arith.andi %37, %40 : vector<1x640xi1>
    %c9_i32 = arith.constant 9 : i32
    %42 = arith.subi %10, %c9_i32 : i32
    %43 = vector.broadcast %42 : i32 to vector<1x640xi32>
    %44 = arith.cmpi sge, %8, %43 : vector<1x640xi32>
    %c9_i32_13 = arith.constant 9 : i32
    %45 = arith.subi %13, %c9_i32_13 : i32
    %46 = vector.broadcast %45 : i32 to vector<1x640xi32>
    %47 = arith.cmpi slt, %8, %46 : vector<1x640xi32>
    %48 = arith.andi %44, %47 : vector<1x640xi1>
    %c-9_i32 = arith.constant -9 : i32
    %49 = arith.subi %10, %c-9_i32 : i32
    %50 = vector.broadcast %49 : i32 to vector<1x640xi32>
    %51 = arith.cmpi sge, %8, %50 : vector<1x640xi32>
    %c-9_i32_14 = arith.constant -9 : i32
    %52 = arith.subi %13, %c-9_i32_14 : i32
    %53 = vector.broadcast %52 : i32 to vector<1x640xi32>
    %54 = arith.cmpi slt, %8, %53 : vector<1x640xi32>
    %55 = arith.andi %51, %54 : vector<1x640xi1>
    %c27_i32 = arith.constant 27 : i32
    %56 = arith.subi %10, %c27_i32 : i32
    %57 = vector.broadcast %56 : i32 to vector<1x640xi32>
    %58 = arith.cmpi sge, %8, %57 : vector<1x640xi32>
    %c27_i32_15 = arith.constant 27 : i32
    %59 = arith.subi %13, %c27_i32_15 : i32
    %60 = vector.broadcast %59 : i32 to vector<1x640xi32>
    %61 = arith.cmpi slt, %8, %60 : vector<1x640xi32>
    %62 = arith.andi %58, %61 : vector<1x640xi1>
    %c-27_i32 = arith.constant -27 : i32
    %63 = arith.subi %10, %c-27_i32 : i32
    %64 = vector.broadcast %63 : i32 to vector<1x640xi32>
    %65 = arith.cmpi sge, %8, %64 : vector<1x640xi32>
    %c-27_i32_16 = arith.constant -27 : i32
    %66 = arith.subi %13, %c-27_i32_16 : i32
    %67 = vector.broadcast %66 : i32 to vector<1x640xi32>
    %68 = arith.cmpi slt, %8, %67 : vector<1x640xi32>
    %69 = arith.andi %65, %68 : vector<1x640xi1>
    %cst = arith.constant 0.00999999977 : f32
    %70 = vector.broadcast %cst : f32 to vector<32x640xf32>
    %71 = arith.mulf %70, %7 : vector<32x640xf32>
    %72 = arith.maximumf %7, %71 : vector<32x640xf32>
    %c1_i32_17 = arith.constant 1 : i32
    %73 = tpu.dynamic_rotate %72 by %c1_i32_17 dim 1 : vector<32x640xf32>, i32 -> vector<32x640xf32>
    %cst_18 = arith.constant 0.000000e+00 : f32
    %74 = vector.shape_cast %27 : vector<1x640xi1> to vector<1x640xi1>
    %75 = vector.broadcast %74 : vector<1x640xi1> to vector<32x640xi1>
    %76 = vector.broadcast %cst_18 : f32 to vector<32x640xf32>
    %77 = arith.select %75, %73, %76 : vector<32x640xi1>, vector<32x640xf32>
    %78 = arith.truncf %77 : vector<32x640xf32> to vector<32x640xbf16>
    %c0_19 = arith.constant 0 : index
    %c0_20 = arith.constant 0 : index
    %79 = vector.load %arg8[%c0_19, %c0_20] : memref<96x640xbf16, #tpu.memory_space<vmem>>, vector<32x640xbf16>
    tpu.vector_store %arg8[%c0_19, %c0_20], %78 {strides = array<i32>} : memref<96x640xbf16, #tpu.memory_space<vmem>>, vector<32x640xbf16>,
    %80 = arith.truncf %72 : vector<32x640xf32> to vector<32x640xbf16>
    %c32 = arith.constant 32 : index
    %c0_21 = arith.constant 0 : index
    %81 = vector.load %arg8[%c32, %c0_21] : memref<96x640xbf16, #tpu.memory_space<vmem>>, vector<32x640xbf16>
    tpu.vector_store %arg8[%c32, %c0_21], %80 {strides = array<i32>} : memref<96x640xbf16, #tpu.memory_space<vmem>>, vector<32x640xbf16>,
    %c639_i32 = arith.constant 639 : i32
    %82 = tpu.dynamic_rotate %72 by %c639_i32 dim 1 : vector<32x640xf32>, i32 -> vector<32x640xf32>
    %cst_22 = arith.constant 0.000000e+00 : f32
    %83 = vector.shape_cast %20 : vector<1x640xi1> to vector<1x640xi1>
    %84 = vector.broadcast %83 : vector<1x640xi1> to vector<32x640xi1>
    %85 = vector.broadcast %cst_22 : f32 to vector<32x640xf32>
    %86 = arith.select %84, %82, %85 : vector<32x640xi1>, vector<32x640xf32>
    %87 = arith.truncf %86 : vector<32x640xf32> to vector<32x640xbf16>
    %c64 = arith.constant 64 : index
    %c0_23 = arith.constant 0 : index
    %88 = vector.load %arg8[%c64, %c0_23] : memref<96x640xbf16, #tpu.memory_space<vmem>>, vector<32x640xbf16>
    tpu.vector_store %arg8[%c64, %c0_23], %87 {strides = array<i32>} : memref<96x640xbf16, #tpu.memory_space<vmem>>, vector<32x640xbf16>,
    %c0_24 = arith.constant 0 : index
    %c0_25 = arith.constant 0 : index
    %c0_26 = arith.constant 0 : index
    %89 = vector.load %arg2[%c0_24, %c0_25, %c0_26] : memref<8x32x96xbf16, #tpu.memory_space<vmem>>, vector<1x32x96xbf16>
    %90 = vector.shape_cast %89 : vector<1x32x96xbf16> to vector<32x96xbf16>
    %c0_27 = arith.constant 0 : index
    %c0_28 = arith.constant 0 : index
    %91 = vector.load %arg8[%c0_27, %c0_28] : memref<96x640xbf16, #tpu.memory_space<vmem>>, vector<96x640xbf16>
    %cst_29 = arith.constant dense<0.000000e+00> : vector<32x640xf32>
    %92 = tpu.matmul %90, %91, %cst_29 {dimension_numbers = #tpu.dot_dimension_numbers<[1], [0], [0], [1], [0, 0, 1, 1], [], []>} : vector<32x96xbf16>, vector<96x640xbf16>, vector<32x640xf32> -> vector<32x640xf32>
    %c0_30 = arith.constant 0 : index
    %c0_31 = arith.constant 0 : index
    %c0_32 = arith.constant 0 : index
    %93 = vector.load %arg3[%c0_30, %c0_31, %c0_32] : memref<8x32x1xf32, #tpu.memory_space<vmem>>, vector<1x32x1xf32>
    %94 = vector.shape_cast %93 : vector<1x32x1xf32> to vector<32x1xf32>
    %95 = vector.broadcast %94 : vector<32x1xf32> to vector<32x640xf32>
    %96 = arith.addf %92, %95 : vector<32x640xf32>
    %cst_33 = arith.constant 0.00999999977 : f32
    %97 = vector.broadcast %cst_33 : f32 to vector<32x640xf32>
    %98 = arith.mulf %97, %96 : vector<32x640xf32>
    %99 = arith.maximumf %96, %98 : vector<32x640xf32>
    %c1_i32_34 = arith.constant 1 : i32
    %100 = tpu.dynamic_rotate %99 by %c1_i32_34 dim 1 : vector<32x640xf32>, i32 -> vector<32x640xf32>
    %cst_35 = arith.constant 0.000000e+00 : f32
    %101 = vector.shape_cast %27 : vector<1x640xi1> to vector<1x640xi1>
    %102 = vector.broadcast %101 : vector<1x640xi1> to vector<32x640xi1>
    %103 = vector.broadcast %cst_35 : f32 to vector<32x640xf32>
    %104 = arith.select %102, %100, %103 : vector<32x640xi1>, vector<32x640xf32>
    %105 = arith.truncf %104 : vector<32x640xf32> to vector<32x640xbf16>
    %c0_36 = arith.constant 0 : index
    %c0_37 = arith.constant 0 : index
    %106 = vector.load %arg8[%c0_36, %c0_37] : memref<96x640xbf16, #tpu.memory_space<vmem>>, vector<32x640xbf16>
    tpu.vector_store %arg8[%c0_36, %c0_37], %105 {strides = array<i32>} : memref<96x640xbf16, #tpu.memory_space<vmem>>, vector<32x640xbf16>,
    %107 = arith.truncf %99 : vector<32x640xf32> to vector<32x640xbf16>
    %c32_38 = arith.constant 32 : index
    %c0_39 = arith.constant 0 : index
    %108 = vector.load %arg8[%c32_38, %c0_39] : memref<96x640xbf16, #tpu.memory_space<vmem>>, vector<32x640xbf16>
    tpu.vector_store %arg8[%c32_38, %c0_39], %107 {strides = array<i32>} : memref<96x640xbf16, #tpu.memory_space<vmem>>, vector<32x640xbf16>,
    %c639_i32_40 = arith.constant 639 : i32
    %109 = tpu.dynamic_rotate %99 by %c639_i32_40 dim 1 : vector<32x640xf32>, i32 -> vector<32x640xf32>
    %cst_41 = arith.constant 0.000000e+00 : f32
    %110 = vector.shape_cast %20 : vector<1x640xi1> to vector<1x640xi1>
    %111 = vector.broadcast %110 : vector<1x640xi1> to vector<32x640xi1>
    %112 = vector.broadcast %cst_41 : f32 to vector<32x640xf32>
    %113 = arith.select %111, %109, %112 : vector<32x640xi1>, vector<32x640xf32>
    %114 = arith.truncf %113 : vector<32x640xf32> to vector<32x640xbf16>
    %c64_42 = arith.constant 64 : index
    %c0_43 = arith.constant 0 : index
    %115 = vector.load %arg8[%c64_42, %c0_43] : memref<96x640xbf16, #tpu.memory_space<vmem>>, vector<32x640xbf16>
    tpu.vector_store %arg8[%c64_42, %c0_43], %114 {strides = array<i32>} : memref<96x640xbf16, #tpu.memory_space<vmem>>, vector<32x640xbf16>,
    %c1 = arith.constant 1 : index
    %c0_44 = arith.constant 0 : index
    %c0_45 = arith.constant 0 : index
    %116 = vector.load %arg2[%c1, %c0_44, %c0_45] : memref<8x32x96xbf16, #tpu.memory_space<vmem>>, vector<1x32x96xbf16>
    %117 = vector.shape_cast %116 : vector<1x32x96xbf16> to vector<32x96xbf16>
    %c0_46 = arith.constant 0 : index
    %c0_47 = arith.constant 0 : index
    %118 = vector.load %arg8[%c0_46, %c0_47] : memref<96x640xbf16, #tpu.memory_space<vmem>>, vector<96x640xbf16>
    %cst_48 = arith.constant dense<0.000000e+00> : vector<32x640xf32>
    %119 = tpu.matmul %117, %118, %cst_48 {dimension_numbers = #tpu.dot_dimension_numbers<[1], [0], [0], [1], [0, 0, 1, 1], [], []>} : vector<32x96xbf16>, vector<96x640xbf16>, vector<32x640xf32> -> vector<32x640xf32>
    %c1_49 = arith.constant 1 : index
    %c0_50 = arith.constant 0 : index
    %c0_51 = arith.constant 0 : index
    %120 = vector.load %arg3[%c1_49, %c0_50, %c0_51] : memref<8x32x1xf32, #tpu.memory_space<vmem>>, vector<1x32x1xf32>
    %121 = vector.shape_cast %120 : vector<1x32x1xf32> to vector<32x1xf32>
    %122 = vector.broadcast %121 : vector<32x1xf32> to vector<32x640xf32>
    %123 = arith.addf %119, %122 : vector<32x640xf32>
    %124 = arith.addf %7, %123 : vector<32x640xf32>
    %cst_52 = arith.constant 0.00999999977 : f32
    %125 = vector.broadcast %cst_52 : f32 to vector<32x640xf32>
    %126 = arith.mulf %125, %124 : vector<32x640xf32>
    %127 = arith.maximumf %124, %126 : vector<32x640xf32>
    %c3_i32_53 = arith.constant 3 : i32
    %128 = tpu.dynamic_rotate %127 by %c3_i32_53 dim 1 : vector<32x640xf32>, i32 -> vector<32x640xf32>
    %cst_54 = arith.constant 0.000000e+00 : f32
    %129 = vector.shape_cast %41 : vector<1x640xi1> to vector<1x640xi1>
    %130 = vector.broadcast %129 : vector<1x640xi1> to vector<32x640xi1>
    %131 = vector.broadcast %cst_54 : f32 to vector<32x640xf32>
    %132 = arith.select %130, %128, %131 : vector<32x640xi1>, vector<32x640xf32>
    %133 = arith.truncf %132 : vector<32x640xf32> to vector<32x640xbf16>
    %c0_55 = arith.constant 0 : index
    %c0_56 = arith.constant 0 : index
    %134 = vector.load %arg8[%c0_55, %c0_56] : memref<96x640xbf16, #tpu.memory_space<vmem>>, vector<32x640xbf16>
    tpu.vector_store %arg8[%c0_55, %c0_56], %133 {strides = array<i32>} : memref<96x640xbf16, #tpu.memory_space<vmem>>, vector<32x640xbf16>,
    %135 = arith.truncf %127 : vector<32x640xf32> to vector<32x640xbf16>
    %c32_57 = arith.constant 32 : index
    %c0_58 = arith.constant 0 : index
    %136 = vector.load %arg8[%c32_57, %c0_58] : memref<96x640xbf16, #tpu.memory_space<vmem>>, vector<32x640xbf16>
    tpu.vector_store %arg8[%c32_57, %c0_58], %135 {strides = array<i32>} : memref<96x640xbf16, #tpu.memory_space<vmem>>, vector<32x640xbf16>,
    %c637_i32 = arith.constant 637 : i32
    %137 = tpu.dynamic_rotate %127 by %c637_i32 dim 1 : vector<32x640xf32>, i32 -> vector<32x640xf32>
    %cst_59 = arith.constant 0.000000e+00 : f32
    %138 = vector.shape_cast %34 : vector<1x640xi1> to vector<1x640xi1>
    %139 = vector.broadcast %138 : vector<1x640xi1> to vector<32x640xi1>
    %140 = vector.broadcast %cst_59 : f32 to vector<32x640xf32>
    %141 = arith.select %139, %137, %140 : vector<32x640xi1>, vector<32x640xf32>
    %142 = arith.truncf %141 : vector<32x640xf32> to vector<32x640xbf16>
    %c64_60 = arith.constant 64 : index
    %c0_61 = arith.constant 0 : index
    %143 = vector.load %arg8[%c64_60, %c0_61] : memref<96x640xbf16, #tpu.memory_space<vmem>>, vector<32x640xbf16>
    tpu.vector_store %arg8[%c64_60, %c0_61], %142 {strides = array<i32>} : memref<96x640xbf16, #tpu.memory_space<vmem>>, vector<32x640xbf16>,
    %c2 = arith.constant 2 : index
    %c0_62 = arith.constant 0 : index
    %c0_63 = arith.constant 0 : index
    %144 = vector.load %arg2[%c2, %c0_62, %c0_63] : memref<8x32x96xbf16, #tpu.memory_space<vmem>>, vector<1x32x96xbf16>
    %145 = vector.shape_cast %144 : vector<1x32x96xbf16> to vector<32x96xbf16>
    %c0_64 = arith.constant 0 : index
    %c0_65 = arith.constant 0 : index
    %146 = vector.load %arg8[%c0_64, %c0_65] : memref<96x640xbf16, #tpu.memory_space<vmem>>, vector<96x640xbf16>
    %cst_66 = arith.constant dense<0.000000e+00> : vector<32x640xf32>
    %147 = tpu.matmul %145, %146, %cst_66 {dimension_numbers = #tpu.dot_dimension_numbers<[1], [0], [0], [1], [0, 0, 1, 1], [], []>} : vector<32x96xbf16>, vector<96x640xbf16>, vector<32x640xf32> -> vector<32x640xf32>
    %c2_67 = arith.constant 2 : index
    %c0_68 = arith.constant 0 : index
    %c0_69 = arith.constant 0 : index
    %148 = vector.load %arg3[%c2_67, %c0_68, %c0_69] : memref<8x32x1xf32, #tpu.memory_space<vmem>>, vector<1x32x1xf32>
    %149 = vector.shape_cast %148 : vector<1x32x1xf32> to vector<32x1xf32>
    %150 = vector.broadcast %149 : vector<32x1xf32> to vector<32x640xf32>
    %151 = arith.addf %147, %150 : vector<32x640xf32>
    %cst_70 = arith.constant 0.00999999977 : f32
    %152 = vector.broadcast %cst_70 : f32 to vector<32x640xf32>
    %153 = arith.mulf %152, %151 : vector<32x640xf32>
    %154 = arith.maximumf %151, %153 : vector<32x640xf32>
    %c1_i32_71 = arith.constant 1 : i32
    %155 = tpu.dynamic_rotate %154 by %c1_i32_71 dim 1 : vector<32x640xf32>, i32 -> vector<32x640xf32>
    %cst_72 = arith.constant 0.000000e+00 : f32
    %156 = vector.shape_cast %27 : vector<1x640xi1> to vector<1x640xi1>
    %157 = vector.broadcast %156 : vector<1x640xi1> to vector<32x640xi1>
    %158 = vector.broadcast %cst_72 : f32 to vector<32x640xf32>
    %159 = arith.select %157, %155, %158 : vector<32x640xi1>, vector<32x640xf32>
    %160 = arith.truncf %159 : vector<32x640xf32> to vector<32x640xbf16>
    %c0_73 = arith.constant 0 : index
    %c0_74 = arith.constant 0 : index
    %161 = vector.load %arg8[%c0_73, %c0_74] : memref<96x640xbf16, #tpu.memory_space<vmem>>, vector<32x640xbf16>
    tpu.vector_store %arg8[%c0_73, %c0_74], %160 {strides = array<i32>} : memref<96x640xbf16, #tpu.memory_space<vmem>>, vector<32x640xbf16>,
    %162 = arith.truncf %154 : vector<32x640xf32> to vector<32x640xbf16>
    %c32_75 = arith.constant 32 : index
    %c0_76 = arith.constant 0 : index
    %163 = vector.load %arg8[%c32_75, %c0_76] : memref<96x640xbf16, #tpu.memory_space<vmem>>, vector<32x640xbf16>
    tpu.vector_store %arg8[%c32_75, %c0_76], %162 {strides = array<i32>} : memref<96x640xbf16, #tpu.memory_space<vmem>>, vector<32x640xbf16>,
    %c639_i32_77 = arith.constant 639 : i32
    %164 = tpu.dynamic_rotate %154 by %c639_i32_77 dim 1 : vector<32x640xf32>, i32 -> vector<32x640xf32>
    %cst_78 = arith.constant 0.000000e+00 : f32
    %165 = vector.shape_cast %20 : vector<1x640xi1> to vector<1x640xi1>
    %166 = vector.broadcast %165 : vector<1x640xi1> to vector<32x640xi1>
    %167 = vector.broadcast %cst_78 : f32 to vector<32x640xf32>
    %168 = arith.select %166, %164, %167 : vector<32x640xi1>, vector<32x640xf32>
    %169 = arith.truncf %168 : vector<32x640xf32> to vector<32x640xbf16>
    %c64_79 = arith.constant 64 : index
    %c0_80 = arith.constant 0 : index
    %170 = vector.load %arg8[%c64_79, %c0_80] : memref<96x640xbf16, #tpu.memory_space<vmem>>, vector<32x640xbf16>
    tpu.vector_store %arg8[%c64_79, %c0_80], %169 {strides = array<i32>} : memref<96x640xbf16, #tpu.memory_space<vmem>>, vector<32x640xbf16>,
    %c3 = arith.constant 3 : index
    %c0_81 = arith.constant 0 : index
    %c0_82 = arith.constant 0 : index
    %171 = vector.load %arg2[%c3, %c0_81, %c0_82] : memref<8x32x96xbf16, #tpu.memory_space<vmem>>, vector<1x32x96xbf16>
    %172 = vector.shape_cast %171 : vector<1x32x96xbf16> to vector<32x96xbf16>
    %c0_83 = arith.constant 0 : index
    %c0_84 = arith.constant 0 : index
    %173 = vector.load %arg8[%c0_83, %c0_84] : memref<96x640xbf16, #tpu.memory_space<vmem>>, vector<96x640xbf16>
    %cst_85 = arith.constant dense<0.000000e+00> : vector<32x640xf32>
    %174 = tpu.matmul %172, %173, %cst_85 {dimension_numbers = #tpu.dot_dimension_numbers<[1], [0], [0], [1], [0, 0, 1, 1], [], []>} : vector<32x96xbf16>, vector<96x640xbf16>, vector<32x640xf32> -> vector<32x640xf32>
    %c3_86 = arith.constant 3 : index
    %c0_87 = arith.constant 0 : index
    %c0_88 = arith.constant 0 : index
    %175 = vector.load %arg3[%c3_86, %c0_87, %c0_88] : memref<8x32x1xf32, #tpu.memory_space<vmem>>, vector<1x32x1xf32>
    %176 = vector.shape_cast %175 : vector<1x32x1xf32> to vector<32x1xf32>
    %177 = vector.broadcast %176 : vector<32x1xf32> to vector<32x640xf32>
    %178 = arith.addf %174, %177 : vector<32x640xf32>
    %179 = arith.addf %124, %178 : vector<32x640xf32>
    %cst_89 = arith.constant 0.00999999977 : f32
    %180 = vector.broadcast %cst_89 : f32 to vector<32x640xf32>
    %181 = arith.mulf %180, %179 : vector<32x640xf32>
    %182 = arith.maximumf %179, %181 : vector<32x640xf32>
    %c9_i32_90 = arith.constant 9 : i32
    %183 = tpu.dynamic_rotate %182 by %c9_i32_90 dim 1 : vector<32x640xf32>, i32 -> vector<32x640xf32>
    %cst_91 = arith.constant 0.000000e+00 : f32
    %184 = vector.shape_cast %55 : vector<1x640xi1> to vector<1x640xi1>
    %185 = vector.broadcast %184 : vector<1x640xi1> to vector<32x640xi1>
    %186 = vector.broadcast %cst_91 : f32 to vector<32x640xf32>
    %187 = arith.select %185, %183, %186 : vector<32x640xi1>, vector<32x640xf32>
    %188 = arith.truncf %187 : vector<32x640xf32> to vector<32x640xbf16>
    %c0_92 = arith.constant 0 : index
    %c0_93 = arith.constant 0 : index
    %189 = vector.load %arg8[%c0_92, %c0_93] : memref<96x640xbf16, #tpu.memory_space<vmem>>, vector<32x640xbf16>
    tpu.vector_store %arg8[%c0_92, %c0_93], %188 {strides = array<i32>} : memref<96x640xbf16, #tpu.memory_space<vmem>>, vector<32x640xbf16>,
    %190 = arith.truncf %182 : vector<32x640xf32> to vector<32x640xbf16>
    %c32_94 = arith.constant 32 : index
    %c0_95 = arith.constant 0 : index
    %191 = vector.load %arg8[%c32_94, %c0_95] : memref<96x640xbf16, #tpu.memory_space<vmem>>, vector<32x640xbf16>
    tpu.vector_store %arg8[%c32_94, %c0_95], %190 {strides = array<i32>} : memref<96x640xbf16, #tpu.memory_space<vmem>>, vector<32x640xbf16>,
    %c631_i32 = arith.constant 631 : i32
    %192 = tpu.dynamic_rotate %182 by %c631_i32 dim 1 : vector<32x640xf32>, i32 -> vector<32x640xf32>
    %cst_96 = arith.constant 0.000000e+00 : f32
    %193 = vector.shape_cast %48 : vector<1x640xi1> to vector<1x640xi1>
    %194 = vector.broadcast %193 : vector<1x640xi1> to vector<32x640xi1>
    %195 = vector.broadcast %cst_96 : f32 to vector<32x640xf32>
    %196 = arith.select %194, %192, %195 : vector<32x640xi1>, vector<32x640xf32>
    %197 = arith.truncf %196 : vector<32x640xf32> to vector<32x640xbf16>
    %c64_97 = arith.constant 64 : index
    %c0_98 = arith.constant 0 : index
    %198 = vector.load %arg8[%c64_97, %c0_98] : memref<96x640xbf16, #tpu.memory_space<vmem>>, vector<32x640xbf16>
    tpu.vector_store %arg8[%c64_97, %c0_98], %197 {strides = array<i32>} : memref<96x640xbf16, #tpu.memory_space<vmem>>, vector<32x640xbf16>,
    %c4 = arith.constant 4 : index
    %c0_99 = arith.constant 0 : index
    %c0_100 = arith.constant 0 : index
    %199 = vector.load %arg2[%c4, %c0_99, %c0_100] : memref<8x32x96xbf16, #tpu.memory_space<vmem>>, vector<1x32x96xbf16>
    %200 = vector.shape_cast %199 : vector<1x32x96xbf16> to vector<32x96xbf16>
    %c0_101 = arith.constant 0 : index
    %c0_102 = arith.constant 0 : index
    %201 = vector.load %arg8[%c0_101, %c0_102] : memref<96x640xbf16, #tpu.memory_space<vmem>>, vector<96x640xbf16>
    %cst_103 = arith.constant dense<0.000000e+00> : vector<32x640xf32>
    %202 = tpu.matmul %200, %201, %cst_103 {dimension_numbers = #tpu.dot_dimension_numbers<[1], [0], [0], [1], [0, 0, 1, 1], [], []>} : vector<32x96xbf16>, vector<96x640xbf16>, vector<32x640xf32> -> vector<32x640xf32>
    %c4_104 = arith.constant 4 : index
    %c0_105 = arith.constant 0 : index
    %c0_106 = arith.constant 0 : index
    %203 = vector.load %arg3[%c4_104, %c0_105, %c0_106] : memref<8x32x1xf32, #tpu.memory_space<vmem>>, vector<1x32x1xf32>
    %204 = vector.shape_cast %203 : vector<1x32x1xf32> to vector<32x1xf32>
    %205 = vector.broadcast %204 : vector<32x1xf32> to vector<32x640xf32>
    %206 = arith.addf %202, %205 : vector<32x640xf32>
    %cst_107 = arith.constant 0.00999999977 : f32
    %207 = vector.broadcast %cst_107 : f32 to vector<32x640xf32>
    %208 = arith.mulf %207, %206 : vector<32x640xf32>
    %209 = arith.maximumf %206, %208 : vector<32x640xf32>
    %c1_i32_108 = arith.constant 1 : i32
    %210 = tpu.dynamic_rotate %209 by %c1_i32_108 dim 1 : vector<32x640xf32>, i32 -> vector<32x640xf32>
    %cst_109 = arith.constant 0.000000e+00 : f32
    %211 = vector.shape_cast %27 : vector<1x640xi1> to vector<1x640xi1>
    %212 = vector.broadcast %211 : vector<1x640xi1> to vector<32x640xi1>
    %213 = vector.broadcast %cst_109 : f32 to vector<32x640xf32>
    %214 = arith.select %212, %210, %213 : vector<32x640xi1>, vector<32x640xf32>
    %215 = arith.truncf %214 : vector<32x640xf32> to vector<32x640xbf16>
    %c0_110 = arith.constant 0 : index
    %c0_111 = arith.constant 0 : index
    %216 = vector.load %arg8[%c0_110, %c0_111] : memref<96x640xbf16, #tpu.memory_space<vmem>>, vector<32x640xbf16>
    tpu.vector_store %arg8[%c0_110, %c0_111], %215 {strides = array<i32>} : memref<96x640xbf16, #tpu.memory_space<vmem>>, vector<32x640xbf16>,
    %217 = arith.truncf %209 : vector<32x640xf32> to vector<32x640xbf16>
    %c32_112 = arith.constant 32 : index
    %c0_113 = arith.constant 0 : index
    %218 = vector.load %arg8[%c32_112, %c0_113] : memref<96x640xbf16, #tpu.memory_space<vmem>>, vector<32x640xbf16>
    tpu.vector_store %arg8[%c32_112, %c0_113], %217 {strides = array<i32>} : memref<96x640xbf16, #tpu.memory_space<vmem>>, vector<32x640xbf16>,
    %c639_i32_114 = arith.constant 639 : i32
    %219 = tpu.dynamic_rotate %209 by %c639_i32_114 dim 1 : vector<32x640xf32>, i32 -> vector<32x640xf32>
    %cst_115 = arith.constant 0.000000e+00 : f32
    %220 = vector.shape_cast %20 : vector<1x640xi1> to vector<1x640xi1>
    %221 = vector.broadcast %220 : vector<1x640xi1> to vector<32x640xi1>
    %222 = vector.broadcast %cst_115 : f32 to vector<32x640xf32>
    %223 = arith.select %221, %219, %222 : vector<32x640xi1>, vector<32x640xf32>
    %224 = arith.truncf %223 : vector<32x640xf32> to vector<32x640xbf16>
    %c64_116 = arith.constant 64 : index
    %c0_117 = arith.constant 0 : index
    %225 = vector.load %arg8[%c64_116, %c0_117] : memref<96x640xbf16, #tpu.memory_space<vmem>>, vector<32x640xbf16>
    tpu.vector_store %arg8[%c64_116, %c0_117], %224 {strides = array<i32>} : memref<96x640xbf16, #tpu.memory_space<vmem>>, vector<32x640xbf16>,
    %c5 = arith.constant 5 : index
    %c0_118 = arith.constant 0 : index
    %c0_119 = arith.constant 0 : index
    %226 = vector.load %arg2[%c5, %c0_118, %c0_119] : memref<8x32x96xbf16, #tpu.memory_space<vmem>>, vector<1x32x96xbf16>
    %227 = vector.shape_cast %226 : vector<1x32x96xbf16> to vector<32x96xbf16>
    %c0_120 = arith.constant 0 : index
    %c0_121 = arith.constant 0 : index
    %228 = vector.load %arg8[%c0_120, %c0_121] : memref<96x640xbf16, #tpu.memory_space<vmem>>, vector<96x640xbf16>
    %cst_122 = arith.constant dense<0.000000e+00> : vector<32x640xf32>
    %229 = tpu.matmul %227, %228, %cst_122 {dimension_numbers = #tpu.dot_dimension_numbers<[1], [0], [0], [1], [0, 0, 1, 1], [], []>} : vector<32x96xbf16>, vector<96x640xbf16>, vector<32x640xf32> -> vector<32x640xf32>
    %c5_123 = arith.constant 5 : index
    %c0_124 = arith.constant 0 : index
    %c0_125 = arith.constant 0 : index
    %230 = vector.load %arg3[%c5_123, %c0_124, %c0_125] : memref<8x32x1xf32, #tpu.memory_space<vmem>>, vector<1x32x1xf32>
    %231 = vector.shape_cast %230 : vector<1x32x1xf32> to vector<32x1xf32>
    %232 = vector.broadcast %231 : vector<32x1xf32> to vector<32x640xf32>
    %233 = arith.addf %229, %232 : vector<32x640xf32>
    %234 = arith.addf %179, %233 : vector<32x640xf32>
    %cst_126 = arith.constant 0.00999999977 : f32
    %235 = vector.broadcast %cst_126 : f32 to vector<32x640xf32>
    %236 = arith.mulf %235, %234 : vector<32x640xf32>
    %237 = arith.maximumf %234, %236 : vector<32x640xf32>
    %c27_i32_127 = arith.constant 27 : i32
    %238 = tpu.dynamic_rotate %237 by %c27_i32_127 dim 1 : vector<32x640xf32>, i32 -> vector<32x640xf32>
    %cst_128 = arith.constant 0.000000e+00 : f32
    %239 = vector.shape_cast %69 : vector<1x640xi1> to vector<1x640xi1>
    %240 = vector.broadcast %239 : vector<1x640xi1> to vector<32x640xi1>
    %241 = vector.broadcast %cst_128 : f32 to vector<32x640xf32>
    %242 = arith.select %240, %238, %241 : vector<32x640xi1>, vector<32x640xf32>
    %243 = arith.truncf %242 : vector<32x640xf32> to vector<32x640xbf16>
    %c0_129 = arith.constant 0 : index
    %c0_130 = arith.constant 0 : index
    %244 = vector.load %arg8[%c0_129, %c0_130] : memref<96x640xbf16, #tpu.memory_space<vmem>>, vector<32x640xbf16>
    tpu.vector_store %arg8[%c0_129, %c0_130], %243 {strides = array<i32>} : memref<96x640xbf16, #tpu.memory_space<vmem>>, vector<32x640xbf16>,
    %245 = arith.truncf %237 : vector<32x640xf32> to vector<32x640xbf16>
    %c32_131 = arith.constant 32 : index
    %c0_132 = arith.constant 0 : index
    %246 = vector.load %arg8[%c32_131, %c0_132] : memref<96x640xbf16, #tpu.memory_space<vmem>>, vector<32x640xbf16>
    tpu.vector_store %arg8[%c32_131, %c0_132], %245 {strides = array<i32>} : memref<96x640xbf16, #tpu.memory_space<vmem>>, vector<32x640xbf16>,
    %c613_i32 = arith.constant 613 : i32
    %247 = tpu.dynamic_rotate %237 by %c613_i32 dim 1 : vector<32x640xf32>, i32 -> vector<32x640xf32>
    %cst_133 = arith.constant 0.000000e+00 : f32
    %248 = vector.shape_cast %62 : vector<1x640xi1> to vector<1x640xi1>
    %249 = vector.broadcast %248 : vector<1x640xi1> to vector<32x640xi1>
    %250 = vector.broadcast %cst_133 : f32 to vector<32x640xf32>
    %251 = arith.select %249, %247, %250 : vector<32x640xi1>, vector<32x640xf32>
    %252 = arith.truncf %251 : vector<32x640xf32> to vector<32x640xbf16>
    %c64_134 = arith.constant 64 : index
    %c0_135 = arith.constant 0 : index
    %253 = vector.load %arg8[%c64_134, %c0_135] : memref<96x640xbf16, #tpu.memory_space<vmem>>, vector<32x640xbf16>
    tpu.vector_store %arg8[%c64_134, %c0_135], %252 {strides = array<i32>} : memref<96x640xbf16, #tpu.memory_space<vmem>>, vector<32x640xbf16>,
    %c6 = arith.constant 6 : index
    %c0_136 = arith.constant 0 : index
    %c0_137 = arith.constant 0 : index
    %254 = vector.load %arg2[%c6, %c0_136, %c0_137] : memref<8x32x96xbf16, #tpu.memory_space<vmem>>, vector<1x32x96xbf16>
    %255 = vector.shape_cast %254 : vector<1x32x96xbf16> to vector<32x96xbf16>
    %c0_138 = arith.constant 0 : index
    %c0_139 = arith.constant 0 : index
    %256 = vector.load %arg8[%c0_138, %c0_139] : memref<96x640xbf16, #tpu.memory_space<vmem>>, vector<96x640xbf16>
    %cst_140 = arith.constant dense<0.000000e+00> : vector<32x640xf32>
    %257 = tpu.matmul %255, %256, %cst_140 {dimension_numbers = #tpu.dot_dimension_numbers<[1], [0], [0], [1], [0, 0, 1, 1], [], []>} : vector<32x96xbf16>, vector<96x640xbf16>, vector<32x640xf32> -> vector<32x640xf32>
    %c6_141 = arith.constant 6 : index
    %c0_142 = arith.constant 0 : index
    %c0_143 = arith.constant 0 : index
    %258 = vector.load %arg3[%c6_141, %c0_142, %c0_143] : memref<8x32x1xf32, #tpu.memory_space<vmem>>, vector<1x32x1xf32>
    %259 = vector.shape_cast %258 : vector<1x32x1xf32> to vector<32x1xf32>
    %260 = vector.broadcast %259 : vector<32x1xf32> to vector<32x640xf32>
    %261 = arith.addf %257, %260 : vector<32x640xf32>
    %cst_144 = arith.constant 0.00999999977 : f32
    %262 = vector.broadcast %cst_144 : f32 to vector<32x640xf32>
    %263 = arith.mulf %262, %261 : vector<32x640xf32>
    %264 = arith.maximumf %261, %263 : vector<32x640xf32>
    %c1_i32_145 = arith.constant 1 : i32
    %265 = tpu.dynamic_rotate %264 by %c1_i32_145 dim 1 : vector<32x640xf32>, i32 -> vector<32x640xf32>
    %cst_146 = arith.constant 0.000000e+00 : f32
    %266 = vector.shape_cast %27 : vector<1x640xi1> to vector<1x640xi1>
    %267 = vector.broadcast %266 : vector<1x640xi1> to vector<32x640xi1>
    %268 = vector.broadcast %cst_146 : f32 to vector<32x640xf32>
    %269 = arith.select %267, %265, %268 : vector<32x640xi1>, vector<32x640xf32>
    %270 = arith.truncf %269 : vector<32x640xf32> to vector<32x640xbf16>
    %c0_147 = arith.constant 0 : index
    %c0_148 = arith.constant 0 : index
    %271 = vector.load %arg8[%c0_147, %c0_148] : memref<96x640xbf16, #tpu.memory_space<vmem>>, vector<32x640xbf16>
    tpu.vector_store %arg8[%c0_147, %c0_148], %270 {strides = array<i32>} : memref<96x640xbf16, #tpu.memory_space<vmem>>, vector<32x640xbf16>,
    %272 = arith.truncf %264 : vector<32x640xf32> to vector<32x640xbf16>
    %c32_149 = arith.constant 32 : index
    %c0_150 = arith.constant 0 : index
    %273 = vector.load %arg8[%c32_149, %c0_150] : memref<96x640xbf16, #tpu.memory_space<vmem>>, vector<32x640xbf16>
    tpu.vector_store %arg8[%c32_149, %c0_150], %272 {strides = array<i32>} : memref<96x640xbf16, #tpu.memory_space<vmem>>, vector<32x640xbf16>,
    %c639_i32_151 = arith.constant 639 : i32
    %274 = tpu.dynamic_rotate %264 by %c639_i32_151 dim 1 : vector<32x640xf32>, i32 -> vector<32x640xf32>
    %cst_152 = arith.constant 0.000000e+00 : f32
    %275 = vector.shape_cast %20 : vector<1x640xi1> to vector<1x640xi1>
    %276 = vector.broadcast %275 : vector<1x640xi1> to vector<32x640xi1>
    %277 = vector.broadcast %cst_152 : f32 to vector<32x640xf32>
    %278 = arith.select %276, %274, %277 : vector<32x640xi1>, vector<32x640xf32>
    %279 = arith.truncf %278 : vector<32x640xf32> to vector<32x640xbf16>
    %c64_153 = arith.constant 64 : index
    %c0_154 = arith.constant 0 : index
    %280 = vector.load %arg8[%c64_153, %c0_154] : memref<96x640xbf16, #tpu.memory_space<vmem>>, vector<32x640xbf16>
    tpu.vector_store %arg8[%c64_153, %c0_154], %279 {strides = array<i32>} : memref<96x640xbf16, #tpu.memory_space<vmem>>, vector<32x640xbf16>,
    %c7 = arith.constant 7 : index
    %c0_155 = arith.constant 0 : index
    %c0_156 = arith.constant 0 : index
    %281 = vector.load %arg2[%c7, %c0_155, %c0_156] : memref<8x32x96xbf16, #tpu.memory_space<vmem>>, vector<1x32x96xbf16>
    %282 = vector.shape_cast %281 : vector<1x32x96xbf16> to vector<32x96xbf16>
    %c0_157 = arith.constant 0 : index
    %c0_158 = arith.constant 0 : index
    %283 = vector.load %arg8[%c0_157, %c0_158] : memref<96x640xbf16, #tpu.memory_space<vmem>>, vector<96x640xbf16>
    %cst_159 = arith.constant dense<0.000000e+00> : vector<32x640xf32>
    %284 = tpu.matmul %282, %283, %cst_159 {dimension_numbers = #tpu.dot_dimension_numbers<[1], [0], [0], [1], [0, 0, 1, 1], [], []>} : vector<32x96xbf16>, vector<96x640xbf16>, vector<32x640xf32> -> vector<32x640xf32>
    %c7_160 = arith.constant 7 : index
    %c0_161 = arith.constant 0 : index
    %c0_162 = arith.constant 0 : index
    %285 = vector.load %arg3[%c7_160, %c0_161, %c0_162] : memref<8x32x1xf32, #tpu.memory_space<vmem>>, vector<1x32x1xf32>
    %286 = vector.shape_cast %285 : vector<1x32x1xf32> to vector<32x1xf32>
    %287 = vector.broadcast %286 : vector<32x1xf32> to vector<32x640xf32>
    %288 = arith.addf %284, %287 : vector<32x640xf32>
    %289 = arith.addf %234, %288 : vector<32x640xf32>
    %290 = vector.extract_strided_slice %289 {offsets = [0, 128], sizes = [32, 384], strides = [1, 1]} : vector<32x640xf32> to vector<32x384xf32>
    %c0_163 = arith.constant 0 : index
    %c0_164 = arith.constant 0 : index
    %c0_165 = arith.constant 0 : index
    %291 = vector.load %arg7[%c0_163, %c0_164, %c0_165] : memref<1x32x384xf32, #tpu.memory_space<vmem>>, vector<1x32x384xf32>
    %292 = vector.shape_cast %291 : vector<1x32x384xf32> to vector<32x384xf32>
    %293 = vector.shape_cast %290 : vector<32x384xf32> to vector<1x32x384xf32>
    tpu.vector_store %arg7[%c0_163, %c0_164, %c0_165], %293 {strides = array<i32>} : memref<1x32x384xf32, #tpu.memory_space<vmem>>, vector<1x32x384xf32>,
    return
  }
  func.func @transform_0(%arg0: i32, %arg1: i32) -> (i32, i32, i32) {
    %c0_i32 = arith.constant 0 : i32
    %c0_i32_0 = arith.constant 0 : i32
    %c0_i32_1 = arith.constant 0 : i32
    %c0_i32_2 = arith.constant 0 : i32
    return %c0_i32, %c0_i32_0, %c0_i32_1 : i32, i32, i32
  }
  func.func @transform_1(%arg0: i32, %arg1: i32) -> (i32, i32, i32) {
    %c0_i32 = arith.constant 0 : i32
    %c0_i32_0 = arith.constant 0 : i32
    %c0_i32_1 = arith.constant 0 : i32
    %c0_i32_2 = arith.constant 0 : i32
    return %c0_i32, %c0_i32_0, %c0_i32_1 : i32, i32, i32
  }
  func.func @transform_2(%arg0: i32, %arg1: i32) -> (i32, i32, i32) {
    %c3_i32 = arith.constant 3 : i32
    %0 = arith.muli %arg1, %c3_i32 : i32
    %c1_i32 = arith.constant 1 : i32
    %1 = arith.subi %0, %c1_i32 : i32
    %c0_i32 = arith.constant 0 : i32
    %2 = arith.maxsi %1, %c0_i32 : i32
    %c0_i32_0 = arith.constant 0 : i32
    %c0_i32_1 = arith.constant 0 : i32
    return %arg0, %c0_i32_0, %2 : i32, i32, i32
  }
  func.func @transform_3(%arg0: i32, %arg1: i32) -> (i32, i32, i32) {
    %c0_i32 = arith.constant 0 : i32
    %c0_i32_0 = arith.constant 0 : i32
    return %arg0, %c0_i32, %arg1 : i32, i32, i32
  }
  func.func @transform_4(%arg0: i32, %arg1: i32) -> (i32, i32, i32) {
    %c1_i32 = arith.constant 1 : i32
    %0 = arith.addi %arg1, %c1_i32 : i32
    %c3_i32 = arith.constant 3 : i32
    %1 = arith.muli %0, %c3_i32 : i32
    %c2_i32 = arith.constant 2 : i32
    %2 = arith.minsi %1, %c2_i32 : i32
    %c0_i32 = arith.constant 0 : i32
    %c0_i32_0 = arith.constant 0 : i32
    return %arg0, %c0_i32, %2 : i32, i32, i32
  }
  func.func @transform_5(%arg0: i32, %arg1: i32) -> (i32, i32, i32) {
    %c0_i32 = arith.constant 0 : i32
    %c0_i32_0 = arith.constant 0 : i32
    return %arg0, %c0_i32, %arg1 : i32, i32, i32
  }
}

</mosaic_0001>

<llo_original>
// kernel: tpu_custom_call.1
$region0: #{tpu_custom_call.1}
  #allocation0 [shape = 'u32[]', space=smem, size = 0x4, offset = 0x4, fixed_abs, tag = 'smem constant byte address 0x4 - core index']
  #allocation1 [shape = 'u32[144,128]{1,0:T(1,128)}', space=vmem, size = 0x12000, scoped, tag = 'internal scratch']
  #allocation2 [shape = 'bf16[96,640]{1,0:T(16,128)(2,1)}', space=vmem, size = 0x1e000, scoped, tag = 'scratch operand']
  %s0 = inlined_call_operand.hbm [shape: bf16[8,32,96], index: 0, kind: input, shape index: {}]
  %s1 = inlined_call_operand.vmem [shape: f32[8,32,1], index: 1, kind: input, shape index: {}]
  %s2 = inlined_call_operand.vmem [shape: f32[2,32,300], index: 2, kind: input, shape index: {}]
  %s3 = inlined_call_operand.hbm [shape: f32[2,32,300], index: 3, kind: input, shape index: {}]
  %s4 = inlined_call_operand.hbm [shape: f32[2,32,300], index: 4, kind: input, shape index: {}]
  %s5 = inlined_call_operand.hbm [shape: f32[2,32,300], index: 5, kind: output, shape index: {}]
  %s6 = sld [smem:[#allocation0]]
  $region103: #{tpu_custom_call.1} parent=0
    _
  %s8 = ssub.s32 1, %s6
  %s9 = scalar_select 0, %s8, %s6
  $region1: #{tpu_custom_call.1} parent=0
    #allocation3 [shape = 'u8[65536]{0}', space=vmem, size = 0x10000, scoped, tag = 'input window, operand 0, single buffered']
    #allocation4 [shape = 's32[2]{0}', space=sflag, size = 0x8, scoped, tag = 'scoped memory for tpu_custom_call.1']
    #allocation5 [shape = 's32[2]{0}', space=sflag, size = 0x8, scoped, tag = 'scoped memory for tpu_custom_call.1']
    #allocation6 [shape = 'u8[32768]{0}', space=vmem, size = 0x8000, scoped, tag = 'input window, operand 2']
    #allocation7 [shape = 'u8[98304]{0}', space=vmem, size = 0x18000, scoped, tag = 'input window, operand 3']
    #allocation8 [shape = 's32[2]{0}', space=sflag, size = 0x8, scoped, tag = 'scoped memory for tpu_custom_call.1']
    #allocation9 [shape = 'u8[32768]{0}', space=vmem, size = 0x8000, scoped, tag = 'input window, operand 4']
    #allocation10 [shape = 'u8[98304]{0}', space=vmem, size = 0x18000, scoped, tag = 'output window, operand 0']
    %10 = vsyncpa [#allocation4], 0
    %11 = vsyncpa [#allocation8], 0
    %s12 = scalar_lea.sflag [#allocation8], 1
    %13 = vsyncpa %s12, 0
    %14 = vsyncpa [#allocation5], 0
    %s15 = scalar_lea.sflag [#allocation5], 1
    %16 = vsyncpa %s15, 0
    loop: start=0, step=1, limit=4
    $region2: #{tpu_custom_call.1} parent=1 // loop_pre_header
      _
    $region3: #{tpu_custom_call.1} parent=1 // loop_header
      %s18 = sphi 0, %s22
      %p19 = scmp.ge.s32.totalorder %s18, 4
      %s25 = sphi 0, %s37
      %s26 = sphi 0, %s33
      %s27 = sphi 0, %s25
      %s28 = sphi 0, %s26
      %s29 = sphi 0, %s27
      %s30 = sphi 0, %s28
      %s38 = sphi 0, %s38
      %s40 = sphi 0, %s38
      %s41 = sphi 0, %s40
      %s55 = sphi 0, %s41
      %s59 = sphi 0, %s59
      %s61 = sphi 0, %s59
      %s62 = sphi 0, %s61
      %s76 = sphi 0, %s62
      %s92 = sphi 0, %s94
      %s95 = sphi 0, %s92
      %s96 = sphi 0, %s95
      %s112 = sphi 0, %s96
      %s120 = sphi 0, %s122
      %s123 = sphi 0, %s120
      %s124 = sphi 0, %s123
      %s140 = sphi 0, %s124
      %s156 = sphi 0, %s158
      %s159 = sphi 0, %s156
      %s160 = sphi 0, %s159
      %s176 = sphi 0, %s160
      %s184 = sphi 0, %s186
      %s187 = sphi 0, %s184
      %s188 = sphi 0, %s187
      %s204 = sphi 0, %s188
    $region4: #{tpu_custom_call.1} parent=1 // loop_header_branch
      %21 = sbr.rel (%p19) target = $region8
    $region5: #{tpu_custom_call.1} parent=1 // loop_body
      %s23 = ssub.s32 %s18, 1
      %s24 = ssub.s32 %s18, 2
      %s31 = sadd.s32 1, %s26
      %p32 = scmp.ge.s32.totalorder %s31, 1
      %s33 = scalar_select %p32, 0, %s31
      %s34 = sadd.s32 1, %s25
      %s35 = scalar_select %p32, %s34, %s25
      %p36 = scmp.ge.s32.totalorder %s35, 2
      %s37 = scalar_select %p36, 0, %s35
      %s39 = sadd.s32 %s38, 1
      %p42 = scmp.eq.s32.totalorder %s18, 1
      %p43 = scmp.ne.s32.totalorder %s38, %s40
      %p44 = scmp.eq.s32.totalorder %s18, 0
      %p45 = por %p43, %p44
      %p46 = scmp.ne.s32.totalorder %s38, %s40
      %p47 = scmp.eq.s32.totalorder %s23, 1
      %p48 = por %p46, %p47
      %p49 = scmp.ne.s32.totalorder %s40, %s41
      %p50 = scmp.eq.s32.totalorder %s23, 0
      %p51 = por %p49, %p50
      %p52 = scmp.ne.s32.totalorder %s40, %s41
      %p53 = scmp.eq.s32.totalorder %s24, 1
      %p54 = por %p52, %p53
      %p56 = scmp.ne.s32.totalorder %s41, %s55
      %p57 = scmp.eq.s32.totalorder %s24, 0
      %p58 = por %p56, %p57
      %s60 = sadd.s32 %s59, 1
      %p63 = scmp.eq.s32.totalorder %s18, 1
      %p64 = scmp.ne.s32.totalorder %s59, %s61
      %p65 = scmp.eq.s32.totalorder %s18, 0
      %p66 = por %p64, %p65
      %p67 = scmp.ne.s32.totalorder %s59, %s61
      %p68 = scmp.eq.s32.totalorder %s23, 1
      %p69 = por %p67, %p68
      %p70 = scmp.ne.s32.totalorder %s61, %s62
      %p71 = scmp.eq.s32.totalorder %s23, 0
      %p72 = por %p70, %p71
      %p73 = scmp.ne.s32.totalorder %s61, %s62
      %p74 = scmp.eq.s32.totalorder %s24, 1
      %p75 = por %p73, %p74
      %p77 = scmp.ne.s32.totalorder %s62, %s76
      %p78 = scmp.eq.s32.totalorder %s24, 0
      %p79 = por %p77, %p78
      %s80 = smul.u32 %s26, 3
      %s81 = ssub.s32 %s80, 1
      %p82 = scmp.gt.s32.totalorder %s81, 0
      %s83 = scalar_select %p82, %s81, 0
      %s84 = smul.u32 %s33, 3
      %s85 = ssub.s32 %s84, 1
      %p86 = scmp.gt.s32.totalorder %s85, 0
      %s87 = scalar_select %p86, %s85, 0
      %s88 = ssub.s32 %s25, %s37
      %s89 = ssub.s32 %s83, %s87
      %s90 = sor.u32 %s88, %s89
      %p91 = scmp.eq.s32.totalorder %s90, 0
      %s93 = sadd.s32 %s92, 1
      %s94 = scalar_select %p91, %s92, %s93
      %p97 = pneg %p91
      %p98 = scmp.eq.s32.totalorder %s18, 1
      %p99 = por %p97, %p98
      %p100 = scmp.ne.s32.totalorder %s92, %s95
      %p101 = scmp.eq.s32.totalorder %s18, 0
      %p102 = por %p100, %p101
      %p103 = scmp.ne.s32.totalorder %s92, %s95
      %p104 = scmp.eq.s32.totalorder %s23, 1
      %p105 = por %p103, %p104
      %p106 = scmp.ne.s32.totalorder %s95, %s96
      %p107 = scmp.eq.s32.totalorder %s23, 0
      %p108 = por %p106, %p107
      %p109 = scmp.ne.s32.totalorder %s95, %s96
      %p110 = scmp.eq.s32.totalorder %s24, 1
      %p111 = por %p109, %p110
      %p113 = scmp.ne.s32.totalorder %s96, %s112
      %p114 = scmp.eq.s32.totalorder %s24, 0
      %p115 = por %p113, %p114
      %s116 = ssub.s32 %s25, %s37
      %s117 = ssub.s32 %s26, %s33
      %s118 = sor.u32 %s116, %s117
      %p119 = scmp.eq.s32.totalorder %s118, 0
      %s121 = sadd.s32 %s120, 1
      %s122 = scalar_select %p119, %s120, %s121
      %p125 = pneg %p119
      %p126 = scmp.eq.s32.totalorder %s18, 1
      %p127 = por %p125, %p126
      %p128 = scmp.ne.s32.totalorder %s120, %s123
      %p129 = scmp.eq.s32.totalorder %s18, 0
      %p130 = por %p128, %p129
      %p131 = scmp.ne.s32.totalorder %s120, %s123
      %p132 = scmp.eq.s32.totalorder %s23, 1
      %p133 = por %p131, %p132
      %p134 = scmp.ne.s32.totalorder %s123, %s124
      %p135 = scmp.eq.s32.totalorder %s23, 0
      %p136 = por %p134, %p135
      %p137 = scmp.ne.s32.totalorder %s123, %s124
      %p138 = scmp.eq.s32.totalorder %s24, 1
      %p139 = por %p137, %p138
      %p141 = scmp.ne.s32.totalorder %s124, %s140
      %p142 = scmp.eq.s32.totalorder %s24, 0
      %p143 = por %p141, %p142
      %s144 = sadd.s32 %s26, 1
      %s145 = smul.u32 %s144, 3
      %p146 = scmp.lt.s32.totalorder %s145, 2
      %s147 = scalar_select %p146, %s145, 2
      %s148 = sadd.s32 %s33, 1
      %s149 = smul.u32 %s148, 3
      %p150 = scmp.lt.s32.totalorder %s149, 2
      %s151 = scalar_select %p150, %s149, 2
      %s152 = ssub.s32 %s25, %s37
      %s153 = ssub.s32 %s147, %s151
      %s154 = sor.u32 %s152, %s153
      %p155 = scmp.eq.s32.totalorder %s154, 0
      %s157 = sadd.s32 %s156, 1
      %s158 = scalar_select %p155, %s156, %s157
      %p161 = pneg %p155
      %p162 = scmp.eq.s32.totalorder %s18, 1
      %p163 = por %p161, %p162
      %p164 = scmp.ne.s32.totalorder %s156, %s159
      %p165 = scmp.eq.s32.totalorder %s18, 0
      %p166 = por %p164, %p165
      %p167 = scmp.ne.s32.totalorder %s156, %s159
      %p168 = scmp.eq.s32.totalorder %s23, 1
      %p169 = por %p167, %p168
      %p170 = scmp.ne.s32.totalorder %s159, %s160
      %p171 = scmp.eq.s32.totalorder %s23, 0
      %p172 = por %p170, %p171
      %p173 = scmp.ne.s32.totalorder %s159, %s160
      %p174 = scmp.eq.s32.totalorder %s24, 1
      %p175 = por %p173, %p174
      %p177 = scmp.ne.s32.totalorder %s160, %s176
      %p178 = scmp.eq.s32.totalorder %s24, 0
      %p179 = por %p177, %p178
      %s180 = ssub.s32 %s25, %s37
      %s181 = ssub.s32 %s26, %s33
      %s182 = sor.u32 %s180, %s181
      %p183 = scmp.eq.s32.totalorder %s182, 0
      %s185 = sadd.s32 %s184, 1
      %s186 = scalar_select %p183, %s184, %s185
      %p189 = pneg %p183
      %p190 = scmp.eq.s32.totalorder %s18, 1
      %p191 = por %p189, %p190
      %p192 = scmp.ne.s32.totalorder %s184, %s187
      %p193 = scmp.eq.s32.totalorder %s18, 0
      %p194 = por %p192, %p193
      %p195 = scmp.ne.s32.totalorder %s184, %s187
      %p196 = scmp.eq.s32.totalorder %s23, 1
      %p197 = por %p195, %p196
      %p198 = scmp.ne.s32.totalorder %s187, %s188
      %p199 = scmp.eq.s32.totalorder %s23, 0
      %p200 = por %p198, %p199
      %p201 = scmp.ne.s32.totalorder %s187, %s188
      %p202 = scmp.eq.s32.totalorder %s24, 1
      %p203 = por %p201, %p202
      %p205 = scmp.ne.s32.totalorder %s188, %s204
      %p206 = scmp.eq.s32.totalorder %s24, 0
      %p207 = por %p205, %p206
      %p208 = scmp.le.s32.totalorder 1, %s18
      %p209 = scmp.lt.s32.totalorder %s18, 3
      %p210 = pnand %p208, %p209
      %p211 = pneg %p210
      // Predicated region
      $region9: #{tpu_custom_call.1} parent=5 // pred_check
        _
      $region10: #{tpu_custom_call.1} parent=5 // pred_check_branch
        %213 = sbr.rel (%p210) target = $region12
      $region11: #{tpu_custom_call.1} parent=5 // pred_region
        %s214 = ssub.s32 %s18, 1
        // Predicated region
        $region13: #{tpu_custom_call.1} parent=11 // pred_check
          %p215 = pneg %p51
        $region14: #{tpu_custom_call.1} parent=11 // pred_check_branch
          %217 = sbr.rel (%p215) target = $region16
        $region15: #{tpu_custom_call.1} parent=11 // pred_region
          %s219 = ssub.s32 2048, 2048
          %220 = vsyncadd [#allocation4], %s219
          %s221 = sshll.u32 [#allocation3], 4
          %s222 = int_to_ptr.vmem [resolvable:$true] %s221
          %227 = dma.hbm_to_vmem [thread:$0]  %s0, 2048, %s222, [#allocation4], 64, 64, 4
        $region16: #{tpu_custom_call.1} parent=11 // pred_fallthru
          _
        // Predicated region
        $region17: #{tpu_custom_call.1} parent=11 // pred_check
          %p228 = pneg %p72
        $region18: #{tpu_custom_call.1} parent=11 // pred_check_branch
          %230 = sbr.rel (%p228) target = $region20
        $region19: #{tpu_custom_call.1} parent=11 // pred_region
          _
        $region20: #{tpu_custom_call.1} parent=11 // pred_fallthru
          _
      $region12: #{tpu_custom_call.1} parent=5 // pred_fallthru
        _
      %p231 = scmp.lt.s32.totalorder %s18, 2
      // Predicated region
      $region21: #{tpu_custom_call.1} parent=5 // pred_check
        %p232 = pneg %p231
      $region22: #{tpu_custom_call.1} parent=5 // pred_check_branch
        %234 = sbr.rel (%p232) target = $region24
      $region23: #{tpu_custom_call.1} parent=5 // pred_region
        // Predicated region
        $region25: #{tpu_custom_call.1} parent=23 // pred_check
          %p235 = pneg %p102
        $region26: #{tpu_custom_call.1} parent=23 // pred_check_branch
          %237 = sbr.rel (%p235) target = $region28
        $region27: #{tpu_custom_call.1} parent=23 // pred_region
          %s238 = sand.u32 %s92, 1
          %s239 = sand.u32 %s92, 1
          %s240 = smul.addr %s239, 32
          %s241 = scalar_lea.vmem [#allocation6], %s240
          %s242 = smul.u32 %s26, 3
          %s243 = ssub.s32 %s242, 1
          %p244 = scmp.gt.s32.totalorder %s243, 0
          %s245 = scalar_select %p244, %s243, 0
          %s246 = smul.addr %s25, 12
          %s247 = sadd.s32 %s245, %s246
          %s248 = smul.addr %s247, 8
          %s249 = scalar_lea.vmem %s2, %s248
          // Predicated region
          $region29: #{tpu_custom_call.1} parent=27 // pred_check
            _
          $region30: #{tpu_custom_call.1} parent=27 // pred_check_branch
            %251 = sbr.rel (0) target = $region32
          $region31: #{tpu_custom_call.1} parent=27 // pred_region
            // Predicated region
            $region33: #{tpu_custom_call.1} parent=31 // pred_check
              _
            $region34: #{tpu_custom_call.1} parent=31 // pred_check_branch
              %253 = sbr.rel (0) target = $region36
            $region35: #{tpu_custom_call.1} parent=31 // pred_region
              // Predicated region
              $region48: #{tpu_custom_call.1} parent=35 // pred_check
                _
              $region49: #{tpu_custom_call.1} parent=35 // pred_check_branch
                %274 = sbr.rel (0) target = $region51
              $region50: #{tpu_custom_call.1} parent=35 // pred_region
                loop: start=0, step=1, limit=1
                $region52: #{tpu_custom_call.1} parent=50 // loop_pre_header
                  _
                $region53: #{tpu_custom_call.1} parent=50 // loop_header
                  %s276 = sphi 0, %s280
                  %p277 = scmp.ge.s32.totalorder %s276, 1
                  %s281 = sphi %s249, %s249
                  %s282 = sphi %s241, %s241
                $region54: #{tpu_custom_call.1} parent=50 // loop_header_branch
                  %279 = sbr.rel (%p277) target = $region58
                $region55: #{tpu_custom_call.1} parent=50 // loop_body
                  %v283 = vld [vmem:[%s281] sm:$0xff]
                  %284 = vst [vmem:[%s282] sm:$0xff] %v283
                  %v285 = vld [vmem:[%s281 + $0x18] sm:$0xff]
                  %286 = vst [vmem:[%s282 + $0x8] sm:$0xff] %v285
                  %v287 = vld [vmem:[%s281 + $0x30] sm:$0xff]
                  %288 = vst [vmem:[%s282 + $0x10] sm:$0xff] %v287
                  %v289 = vld [vmem:[%s281 + $0x48] sm:$0xff]
                  %290 = vst [vmem:[%s282 + $0x18] sm:$0xff] %v289
                $region56: #{tpu_custom_call.1} parent=50 // loop_footer
                  %s280 = sadd.s32 1, %s276
                $region57: #{tpu_custom_call.1} parent=50 // loop_footer_branch
                  %275 = sbr.rel target = $region53
                $region58: #{tpu_custom_call.1} parent=50 // loop_exit
                  _
              $region51: #{tpu_custom_call.1} parent=35 // pred_fallthru
                _
              // Predicated region
              $region59: #{tpu_custom_call.1} parent=35 // pred_check
                _
              $region60: #{tpu_custom_call.1} parent=35 // pred_check_branch
                %292 = sbr.rel target = $region62
              $region61: #{tpu_custom_call.1} parent=35 // pred_region
                _
              $region62: #{tpu_custom_call.1} parent=35 // pred_fallthru
                _
            $region36: #{tpu_custom_call.1} parent=31 // pred_fallthru
              _
            // Predicated region
            $region37: #{tpu_custom_call.1} parent=31 // pred_check
              _
            $region38: #{tpu_custom_call.1} parent=31 // pred_check_branch
              %255 = sbr.rel target = $region40
            $region39: #{tpu_custom_call.1} parent=31 // pred_region
              loop: start=0, step=1, limit=1
              $region41: #{tpu_custom_call.1} parent=39 // loop_pre_header
                _
              $region42: #{tpu_custom_call.1} parent=39 // loop_header
                %s258 = sphi 0, %s262
                %p259 = scmp.ge.s32.totalorder %s258, 1
                %s263 = sphi %s249, %s249
                %s264 = sphi %s241, %s241
              $region43: #{tpu_custom_call.1} parent=39 // loop_header_branch
                %261 = sbr.rel (%p259) target = $region47
              $region44: #{tpu_custom_call.1} parent=39 // loop_body
                %v265 = vld [vmem:[%s263] sm:$0xff]
                %266 = vst [vmem:[%s264] sm:$0xff] %v265
                %v267 = vld [vmem:[%s263 + $0x18] sm:$0xff]
                %268 = vst [vmem:[%s264 + $0x8] sm:$0xff] %v267
                %v269 = vld [vmem:[%s263 + $0x30] sm:$0xff]
                %270 = vst [vmem:[%s264 + $0x10] sm:$0xff] %v269
                %v271 = vld [vmem:[%s263 + $0x48] sm:$0xff]
                %272 = vst [vmem:[%s264 + $0x18] sm:$0xff] %v271
              $region45: #{tpu_custom_call.1} parent=39 // loop_footer
                %s262 = sadd.s32 1, %s258
              $region46: #{tpu_custom_call.1} parent=39 // loop_footer_branch
                %257 = sbr.rel target = $region42
              $region47: #{tpu_custom_call.1} parent=39 // loop_exit
                _
            $region40: #{tpu_custom_call.1} parent=31 // pred_fallthru
              _
          $region32: #{tpu_custom_call.1} parent=27 // pred_fallthru
            _
          %293 = vnop
        $region28: #{tpu_custom_call.1} parent=23 // pred_fallthru
          _
        // Predicated region
        $region63: #{tpu_custom_call.1} parent=23 // pred_check
          %p294 = pneg %p130
        $region64: #{tpu_custom_call.1} parent=23 // pred_check_branch
          %296 = sbr.rel (%p294) target = $region66
        $region65: #{tpu_custom_call.1} parent=23 // pred_region
          %s297 = sand.u32 %s18, 1
          %s298 = scalar_lea.sflag [#allocation8], %s297
          %s299 = sand.u32 %s120, 1
          %s300 = smul.addr %s299, 96
          %s301 = scalar_lea.vmem [#allocation7], %s300
          %s302 = smul.u32 3, %s26
          %s304 = ssub.s32 1536, 1536
          %305 = vsyncadd %s298, %s304
          %s306 = smul.addr %s25, 12
          %s307 = sadd.s32 %s302, %s306
          %s308 = smul.addr %s307, 128
          %s309 = scalar_lea.hbm %s3, %s308
          %s310 = sshll.u32 %s301, 4
          %s311 = int_to_ptr.vmem [resolvable:$true] %s310
          %316 = dma.hbm_to_vmem [thread:$0]  %s309, 1536, %s311, %s298, 384, 384, 24
        $region66: #{tpu_custom_call.1} parent=23 // pred_fallthru
          _
        // Predicated region
        $region67: #{tpu_custom_call.1} parent=23 // pred_check
          %p317 = pneg %p166
        $region68: #{tpu_custom_call.1} parent=23 // pred_check_branch
          %319 = sbr.rel (%p317) target = $region70
        $region69: #{tpu_custom_call.1} parent=23 // pred_region
          %s320 = sand.u32 %s18, 1
          %s321 = scalar_lea.sflag [#allocation8], %s320
          %s322 = sand.u32 %s156, 1
          %s323 = smul.addr %s322, 32
          %s324 = scalar_lea.vmem [#allocation9], %s323
          %s325 = sadd.s32 %s26, 1
          %s326 = smul.u32 %s325, 3
          %p327 = scmp.lt.s32.totalorder %s326, 2
          %s328 = scalar_select %p327, %s326, 2
          %s330 = ssub.s32 512, 512
          %331 = vsyncadd %s321, %s330
          %s332 = smul.addr %s25, 12
          %s333 = sadd.s32 %s328, %s332
          %s334 = smul.addr %s333, 128
          %s335 = scalar_lea.hbm %s4, %s334
          %s336 = sshll.u32 %s324, 4
          %s337 = int_to_ptr.vmem [resolvable:$true] %s336
          %342 = dma.hbm_to_vmem [thread:$0]  %s335, 512, %s337, %s321, 384, 128, 8
        $region70: #{tpu_custom_call.1} parent=23 // pred_fallthru
          _
      $region24: #{tpu_custom_call.1} parent=5 // pred_fallthru
        _
      %p343 = scmp.le.s32.totalorder 1, %s18
      %p344 = scmp.lt.s32.totalorder %s18, 3
      %p345 = pnand %p343, %p344
      %p346 = pneg %p345
      // Predicated region
      $region71: #{tpu_custom_call.1} parent=5 // pred_check
        _
      $region72: #{tpu_custom_call.1} parent=5 // pred_check_branch
        %348 = sbr.rel (%p345) target = $region74
      $region73: #{tpu_custom_call.1} parent=5 // pred_region
        %s349 = ssub.s32 %s18, 1
        // Predicated region
        $region75: #{tpu_custom_call.1} parent=73 // pred_check
          %p350 = pneg %p51
        $region76: #{tpu_custom_call.1} parent=73 // pred_check_branch
          %352 = sbr.rel (%p350) target = $region78
        $region77: #{tpu_custom_call.1} parent=73 // pred_region
          %353 = dma.done [#allocation4], 2048
        $region78: #{tpu_custom_call.1} parent=73 // pred_fallthru
          _
        %s354 = sand.u32 %s95, 1
        %s355 = sand.u32 %s95, 1
        %s356 = smul.addr %s355, 32
        %s357 = scalar_lea.vmem [#allocation6], %s356
        // Predicated region
        $region79: #{tpu_custom_call.1} parent=73 // pred_check
          %p358 = pneg %p108
        $region80: #{tpu_custom_call.1} parent=73 // pred_check_branch
          %360 = sbr.rel (%p358) target = $region82
        $region81: #{tpu_custom_call.1} parent=73 // pred_region
          _
        $region82: #{tpu_custom_call.1} parent=73 // pred_fallthru
          _
        %s361 = sand.u32 %s23, 1
        %s362 = scalar_lea.sflag [#allocation8], %s361
        %s363 = sand.u32 %s123, 1
        %s364 = smul.addr %s363, 96
        %s365 = scalar_lea.vmem [#allocation7], %s364
        // Predicated region
        $region83: #{tpu_custom_call.1} parent=73 // pred_check
          %p366 = pneg %p136
        $region84: #{tpu_custom_call.1} parent=73 // pred_check_branch
          %368 = sbr.rel (%p366) target = $region86
        $region85: #{tpu_custom_call.1} parent=73 // pred_region
          %369 = dma.done %s362, 1536
        $region86: #{tpu_custom_call.1} parent=73 // pred_fallthru
          _
        %s370 = sand.u32 %s23, 1
        %s371 = scalar_lea.sflag [#allocation8], %s370
        %s372 = sand.u32 %s159, 1
        %s373 = smul.addr %s372, 32
        %s374 = scalar_lea.vmem [#allocation9], %s373
        // Predicated region
        $region87: #{tpu_custom_call.1} parent=73 // pred_check
          %p375 = pneg %p172
        $region88: #{tpu_custom_call.1} parent=73 // pred_check_branch
          %377 = sbr.rel (%p375) target = $region90
        $region89: #{tpu_custom_call.1} parent=73 // pred_region
          %378 = dma.done %s371, 512
        $region90: #{tpu_custom_call.1} parent=73 // pred_fallthru
          _
        %p379 = pneg %p51
        %p380 = pneg %p48
        %p381 = pneg %p72
        %p382 = pneg %p69
        %s383 = sand.u32 %s95, 1
        %s384 = sand.u32 %s95, 1
        %s385 = smul.addr %s384, 32
        %s386 = scalar_lea.vmem [#allocation6], %s385
        %p387 = pneg %p108
        %p388 = pneg %p105
        %s389 = sand.u32 %s23, 1
        %s390 = scalar_lea.sflag [#allocation8], %s389
        %s391 = sand.u32 %s123, 1
        %s392 = smul.addr %s391, 96
        %s393 = scalar_lea.vmem [#allocation7], %s392
        %p394 = pneg %p136
        %p395 = pneg %p133
        %s396 = sand.u32 %s23, 1
        %s397 = scalar_lea.sflag [#allocation8], %s396
        %s398 = sand.u32 %s159, 1
        %s399 = smul.addr %s398, 32
        %s400 = scalar_lea.vmem [#allocation9], %s399
        %p401 = pneg %p172
        %p402 = pneg %p169
        %p403 = pneg %p200
        %p404 = pneg %p197
        %s405 = sand.u32 %s187, 1
        %s406 = scalar_lea.sflag [#allocation5], %s405
        %s407 = sand.u32 %s187, 1
        %s408 = smul.addr %s407, 96
        %s409 = scalar_lea.vmem [#allocation10], %s408
        %s410 = smul.u32 %s28, 3
        %s411 = ssub.s32 %s410, 1
        %p412 = scmp.gt.s32.totalorder %s411, 0
        %s413 = scalar_select %p412, %s411, 0
        %s414 = smul.u32 3, %s28
        %s415 = sadd.s32 %s28, 1
        %s416 = smul.u32 %s415, 3
        %p417 = scmp.lt.s32.totalorder %s416, 2
        %s418 = scalar_select %p417, %s416, 2
        %s419 = smul.u32 3, %s28
        %s421 = smul.u32 %s28, 384
        %v422 = vld [vmem:[%s357] sm:$0xff]
        %v423 = vld [vmem:[%s357 + $0x8] sm:$0xff]
        %v424 = vld [vmem:[%s357 + $0x10] sm:$0xff]
        %v425 = vld [vmem:[%s357 + $0x18] sm:$0xff]
        %v426 = vld [vmem:[%s365] sm:$0xff]
        %v427 = vld [vmem:[%s365 + $0x8] sm:$0xff]
        %v428 = vld [vmem:[%s365 + $0x10] sm:$0xff]
        %v429 = vld [vmem:[%s365 + $0x18] sm:$0xff]
        %v430 = vld [vmem:[%s365 + $0x20] sm:$0xff]
        %v431 = vld [vmem:[%s365 + $0x28] sm:$0xff]
        %v432 = vld [vmem:[%s365 + $0x30] sm:$0xff]
        %v433 = vld [vmem:[%s365 + $0x38] sm:$0xff]
        %v434 = vld [vmem:[%s365 + $0x40] sm:$0xff]
        %v435 = vld [vmem:[%s365 + $0x48] sm:$0xff]
        %v436 = vld [vmem:[%s365 + $0x50] sm:$0xff]
        %v437 = vld [vmem:[%s365 + $0x58] sm:$0xff]
        %v438 = vld [vmem:[%s374] sm:$0xff]
        %v439 = vld [vmem:[%s374 + $0x8] sm:$0xff]
        %v440 = vld [vmem:[%s374 + $0x10] sm:$0xff]
        %v441 = vld [vmem:[%s374 + $0x18] sm:$0xff]
        %v442 = vlaneseq
        %v443 = vand.u32 %v442, 127
        %v444 = vadd.s32 %v443, 128
        %v445 = vadd.s32 %v443, 256
        %v446 = vadd.s32 %v443, 384
        %v447 = vadd.s32 %v443, 512
        %s448 = ssub.s32 128, %s421
        %p449 = scmp.gt.s32.totalorder %s448, 0
        %s450 = scalar_select %p449, %s448, 0
        %s451 = ssub.s32 428, %s421
        %p452 = scmp.lt.s32.totalorder %s451, 640
        %s453 = scalar_select %p452, %s451, 640
        %s454 = ssub.s32 %s450, 1
        %v455 = vstv %s454
        %vm456 = vcmp.ge.s32.totalorder %v443, %v455
        %vm457 = vcmp.ge.s32.totalorder %v444, %v455
        %vm458 = vcmp.ge.s32.totalorder %v445, %v455
        %vm459 = vcmp.ge.s32.totalorder %v446, %v455
        %vm460 = vcmp.ge.s32.totalorder %v447, %v455
        %s461 = ssub.s32 %s453, 1
        %v462 = vstv %s461
        %vm463 = vcmp.lt.s32.totalorder %v443, %v462
        %vm464 = vcmp.lt.s32.totalorder %v444, %v462
        %vm465 = vcmp.lt.s32.totalorder %v445, %v462
        %vm466 = vcmp.lt.s32.totalorder %v446, %v462
        %vm467 = vcmp.lt.s32.totalorder %v447, %v462
        %vm468 = vmand %vm456, %vm463
        %vm469 = vmand %vm457, %vm464
        %vm470 = vmand %vm458, %vm465
        %vm471 = vmand %vm459, %vm466
        %vm472 = vmand %vm460, %vm467
        %s473 = ssub.s32 %s450, 4294967295
        %v474 = vstv %s473
        %vm475 = vcmp.ge.s32.totalorder %v443, %v474
        %vm476 = vcmp.ge.s32.totalorder %v444, %v474
        %vm477 = vcmp.ge.s32.totalorder %v445, %v474
        %vm478 = vcmp.ge.s32.totalorder %v446, %v474
        %vm479 = vcmp.ge.s32.totalorder %v447, %v474
        %s480 = ssub.s32 %s453, 4294967295
        %v481 = vstv %s480
        %vm482 = vcmp.lt.s32.totalorder %v443, %v481
        %vm483 = vcmp.lt.s32.totalorder %v444, %v481
        %vm484 = vcmp.lt.s32.totalorder %v445, %v481
        %vm485 = vcmp.lt.s32.totalorder %v446, %v481
        %vm486 = vcmp.lt.s32.totalorder %v447, %v481
        %vm487 = vmand %vm475, %vm482
        %vm488 = vmand %vm476, %vm483
        %vm489 = vmand %vm477, %vm484
        %vm490 = vmand %vm478, %vm485
        %vm491 = vmand %vm479, %vm486
        %s492 = ssub.s32 %s450, 3
        %v493 = vstv %s492
        %vm494 = vcmp.ge.s32.totalorder %v443, %v493
        %vm495 = vcmp.ge.s32.totalorder %v444, %v493
        %vm496 = vcmp.ge.s32.totalorder %v445, %v493
        %vm497 = vcmp.ge.s32.totalorder %v446, %v493
        %vm498 = vcmp.ge.s32.totalorder %v447, %v493
        %s499 = ssub.s32 %s453, 3
        %v500 = vstv %s499
        %vm501 = vcmp.lt.s32.totalorder %v443, %v500
        %vm502 = vcmp.lt.s32.totalorder %v444, %v500
        %vm503 = vcmp.lt.s32.totalorder %v445, %v500
        %vm504 = vcmp.lt.s32.totalorder %v446, %v500
        %vm505 = vcmp.lt.s32.totalorder %v447, %v500
        %vm506 = vmand %vm494, %vm501
        %vm507 = vmand %vm495, %vm502
        %vm508 = vmand %vm496, %vm503
        %vm509 = vmand %vm497, %vm504
        %vm510 = vmand %vm498, %vm505
        %s511 = ssub.s32 %s450, 4294967293
        %v512 = vstv %s511
        %vm513 = vcmp.ge.s32.totalorder %v443, %v512
        %vm514 = vcmp.ge.s32.totalorder %v444, %v512
        %vm515 = vcmp.ge.s32.totalorder %v445, %v512
        %vm516 = vcmp.ge.s32.totalorder %v446, %v512
        %vm517 = vcmp.ge.s32.totalorder %v447, %v512
        %s518 = ssub.s32 %s453, 4294967293
        %v519 = vstv %s518
        %vm520 = vcmp.lt.s32.totalorder %v443, %v519
        %vm521 = vcmp.lt.s32.totalorder %v444, %v519
        %vm522 = vcmp.lt.s32.totalorder %v445, %v519
        %vm523 = vcmp.lt.s32.totalorder %v446, %v519
        %vm524 = vcmp.lt.s32.totalorder %v447, %v519
        %vm525 = vmand %vm513, %vm520
        %vm526 = vmand %vm514, %vm521
        %vm527 = vmand %vm515, %vm522
        %vm528 = vmand %vm516, %vm523
        %vm529 = vmand %vm517, %vm524
        %s530 = ssub.s32 %s450, 9
        %v531 = vstv %s530
        %vm532 = vcmp.ge.s32.totalorder %v443, %v531
        %vm533 = vcmp.ge.s32.totalorder %v444, %v531
        %vm534 = vcmp.ge.s32.totalorder %v445, %v531
        %vm535 = vcmp.ge.s32.totalorder %v446, %v531
        %vm536 = vcmp.ge.s32.totalorder %v447, %v531
        %s537 = ssub.s32 %s453, 9
        %v538 = vstv %s537
        %vm539 = vcmp.lt.s32.totalorder %v443, %v538
        %vm540 = vcmp.lt.s32.totalorder %v444, %v538
        %vm541 = vcmp.lt.s32.totalorder %v445, %v538
        %vm542 = vcmp.lt.s32.totalorder %v446, %v538
        %vm543 = vcmp.lt.s32.totalorder %v447, %v538
        %vm544 = vmand %vm532, %vm539
        %vm545 = vmand %vm533, %vm540
        %vm546 = vmand %vm534, %vm541
        %vm547 = vmand %vm535, %vm542
        %vm548 = vmand %vm536, %vm543
        %s549 = ssub.s32 %s450, 4294967287
        %v550 = vstv %s549
        %vm551 = vcmp.ge.s32.totalorder %v443, %v550
        %vm552 = vcmp.ge.s32.totalorder %v444, %v550
        %vm553 = vcmp.ge.s32.totalorder %v445, %v550
        %vm554 = vcmp.ge.s32.totalorder %v446, %v550
        %vm555 = vcmp.ge.s32.totalorder %v447, %v550
        %s556 = ssub.s32 %s453, 4294967287
        %v557 = vstv %s556
        %vm558 = vcmp.lt.s32.totalorder %v443, %v557
        %vm559 = vcmp.lt.s32.totalorder %v444, %v557
        %vm560 = vcmp.lt.s32.totalorder %v445, %v557
        %vm561 = vcmp.lt.s32.totalorder %v446, %v557
        %vm562 = vcmp.lt.s32.totalorder %v447, %v557
        %vm563 = vmand %vm551, %vm558
        %vm564 = vmand %vm552, %vm559
        %vm565 = vmand %vm553, %vm560
        %vm566 = vmand %vm554, %vm561
        %vm567 = vmand %vm555, %vm562
        %s568 = ssub.s32 %s450, 27
        %v569 = vstv %s568
        %vm570 = vcmp.ge.s32.totalorder %v443, %v569
        %vm571 = vcmp.ge.s32.totalorder %v444, %v569
        %vm572 = vcmp.ge.s32.totalorder %v445, %v569
        %vm573 = vcmp.ge.s32.totalorder %v446, %v569
        %vm574 = vcmp.ge.s32.totalorder %v447, %v569
        %s575 = ssub.s32 %s453, 27
        %v576 = vstv %s575
        %vm577 = vcmp.lt.s32.totalorder %v443, %v576
        %vm578 = vcmp.lt.s32.totalorder %v444, %v576
        %vm579 = vcmp.lt.s32.totalorder %v445, %v576
        %vm580 = vcmp.lt.s32.totalorder %v446, %v576
        %vm581 = vcmp.lt.s32.totalorder %v447, %v576
        %vm582 = vmand %vm570, %vm577
        %vm583 = vmand %vm571, %vm578
        %vm584 = vmand %vm572, %vm579
        %vm585 = vmand %vm573, %vm580
        %vm586 = vmand %vm574, %vm581
        %s587 = ssub.s32 %s450, 4294967269
        %v588 = vstv %s587
        %vm589 = vcmp.ge.s32.totalorder %v443, %v588
        %vm590 = vcmp.ge.s32.totalorder %v444, %v588
        %vm591 = vcmp.ge.s32.totalorder %v445, %v588
        %vm592 = vcmp.ge.s32.totalorder %v446, %v588
        %vm593 = vcmp.ge.s32.totalorder %v447, %v588
        %s594 = ssub.s32 %s453, 4294967269
        %v595 = vstv %s594
        %vm596 = vcmp.lt.s32.totalorder %v443, %v595
        %vm597 = vcmp.lt.s32.totalorder %v444, %v595
        %vm598 = vcmp.lt.s32.totalorder %v445, %v595
        %vm599 = vcmp.lt.s32.totalorder %v446, %v595
        %vm600 = vcmp.lt.s32.totalorder %v447, %v595
        %vm601 = vmand %vm589, %vm596
        %vm602 = vmand %vm590, %vm597
        %vm603 = vmand %vm591, %vm598
        %vm604 = vmand %vm592, %vm599
        %vm605 = vmand %vm593, %vm600
        %v606 = vmul.f32 %v422, 0.01
        %v607 = vmul.f32 %v426, 0.01
        %v608 = vmul.f32 %v427, 0.01
        %v609 = vmul.f32 %v428, 0.01
        %v610 = vmul.f32 %v438, 0.01
        %v611 = vmul.f32 %v423, 0.01
        %v612 = vmul.f32 %v429, 0.01
        %v613 = vmul.f32 %v430, 0.01
        %v614 = vmul.f32 %v431, 0.01
        %v615 = vmul.f32 %v439, 0.01
        %v616 = vmul.f32 %v424, 0.01
        %v617 = vmul.f32 %v432, 0.01
        %v618 = vmul.f32 %v433, 0.01
        %v619 = vmul.f32 %v434, 0.01
        %v620 = vmul.f32 %v440, 0.01
        %v621 = vmul.f32 %v425, 0.01
        %v622 = vmul.f32 %v435, 0.01
        %v623 = vmul.f32 %v436, 0.01
        %v624 = vmul.f32 %v437, 0.01
        %v625 = vmul.f32 %v441, 0.01
        %v626 = vmax.f32 %v422, %v606
        %v627 = vmax.f32 %v426, %v607
        %v628 = vmax.f32 %v427, %v608
        %v629 = vmax.f32 %v428, %v609
        %v630 = vmax.f32 %v438, %v610
        %v631 = vmax.f32 %v423, %v611
        %v632 = vmax.f32 %v429, %v612
        %v633 = vmax.f32 %v430, %v613
        %v634 = vmax.f32 %v431, %v614
        %v635 = vmax.f32 %v439, %v615
        %v636 = vmax.f32 %v424, %v616
        %v637 = vmax.f32 %v432, %v617
        %v638 = vmax.f32 %v433, %v618
        %v639 = vmax.f32 %v434, %v619
        %v640 = vmax.f32 %v440, %v620
        %v641 = vmax.f32 %v425, %v621
        %v642 = vmax.f32 %v435, %v622
        %v643 = vmax.f32 %v436, %v623
        %v644 = vmax.f32 %v437, %v624
        %v645 = vmax.f32 %v441, %v625
        %646 = vrot.lane.b32.xlu0 %v626, 1
        %v647 = vpop.permute.xlu0 %646
        %648 = vrot.lane.b32.xlu0 %v631, 1
        %v649 = vpop.permute.xlu0 %648
        %650 = vrot.lane.b32.xlu0 %v636, 1
        %v651 = vpop.permute.xlu0 %650
        %652 = vrot.lane.b32.xlu0 %v641, 1
        %v653 = vpop.permute.xlu0 %652
        %654 = vrot.lane.b32.xlu0 %v627, 1
        %v655 = vpop.permute.xlu0 %654
        %656 = vrot.lane.b32.xlu0 %v632, 1
        %v657 = vpop.permute.xlu0 %656
        %658 = vrot.lane.b32.xlu0 %v637, 1
        %v659 = vpop.permute.xlu0 %658
        %660 = vrot.lane.b32.xlu0 %v642, 1
        %v661 = vpop.permute.xlu0 %660
        %662 = vrot.lane.b32.xlu0 %v628, 1
        %v663 = vpop.permute.xlu0 %662
        %664 = vrot.lane.b32.xlu0 %v633, 1
        %v665 = vpop.permute.xlu0 %664
        %666 = vrot.lane.b32.xlu0 %v638, 1
        %v667 = vpop.permute.xlu0 %666
        %668 = vrot.lane.b32.xlu0 %v643, 1
        %v669 = vpop.permute.xlu0 %668
        %670 = vrot.lane.b32.xlu0 %v629, 1
        %v671 = vpop.permute.xlu0 %670
        %672 = vrot.lane.b32.xlu0 %v634, 1
        %v673 = vpop.permute.xlu0 %672
        %674 = vrot.lane.b32.xlu0 %v639, 1
        %v675 = vpop.permute.xlu0 %674
        %676 = vrot.lane.b32.xlu0 %v644, 1
        %v677 = vpop.permute.xlu0 %676
        %678 = vrot.lane.b32.xlu0 %v630, 1
        %v679 = vpop.permute.xlu0 %678
        %680 = vrot.lane.b32.xlu0 %v635, 1
        %v681 = vpop.permute.xlu0 %680
        %682 = vrot.lane.b32.xlu0 %v640, 1
        %v683 = vpop.permute.xlu0 %682
        %684 = vrot.lane.b32.xlu0 %v645, 1
        %v685 = vpop.permute.xlu0 %684
        %vm686 = vcmp.lt.s32.totalorder %v443, 1
        %v687 = vsel %vm686, %v671, %v679
        %v688 = vsel %vm686, %v673, %v681
        %v689 = vsel %vm686, %v675, %v683
        %v690 = vsel %vm686, %v677, %v685
        %v691 = vsel %vm686, %v663, %v671
        %v692 = vsel %vm686, %v665, %v673
        %v693 = vsel %vm686, %v667, %v675
        %v694 = vsel %vm686, %v669, %v677
        %v695 = vsel %vm686, %v655, %v663
        %v696 = vsel %vm686, %v657, %v665
        %v697 = vsel %vm686, %v659, %v667
        %v698 = vsel %vm686, %v661, %v669
        %v699 = vsel %vm686, %v647, %v655
        %v700 = vsel %vm686, %v649, %v657
        %v701 = vsel %vm686, %v651, %v659
        %v702 = vsel %vm686, %v653, %v661
        %v703 = vsel %vm686, %v679, %v647
        %v704 = vsel %vm686, %v681, %v649
        %v705 = vsel %vm686, %v683, %v651
        %v706 = vsel %vm686, %v685, %v653
        %v707 = vsel %vm487, 1, 0
        %v708 = vsel %vm488, 1, 0
        %v709 = vsel %vm489, 1, 0
        %v710 = vsel %vm490, 1, 0
        %v711 = vsel %vm491, 1, 0
        %vm712 = vcmp.eq.s32.totalorder %v707, 1
        %vm713 = vcmp.eq.s32.totalorder %v708, 1
        %vm714 = vcmp.eq.s32.totalorder %v709, 1
        %vm715 = vcmp.eq.s32.totalorder %v710, 1
        %vm716 = vcmp.eq.s32.totalorder %v711, 1
        %v717 = vsel %vm712, %v703, 0.0
        %v718 = vsel %vm713, %v699, 0.0
        %v719 = vsel %vm714, %v695, 0.0
        %v720 = vsel %vm715, %v691, 0.0
        %v721 = vsel %vm716, %v687, 0.0
        %v722 = vsel %vm712, %v704, 0.0
        %v723 = vsel %vm713, %v700, 0.0
        %v724 = vsel %vm714, %v696, 0.0
        %v725 = vsel %vm715, %v692, 0.0
        %v726 = vsel %vm716, %v688, 0.0
        %v727 = vsel %vm712, %v705, 0.0
        %v728 = vsel %vm713, %v701, 0.0
        %v729 = vsel %vm714, %v697, 0.0
        %v730 = vsel %vm715, %v693, 0.0
        %v731 = vsel %vm716, %v689, 0.0
        %v732 = vsel %vm712, %v706, 0.0
        %v733 = vsel %vm713, %v702, 0.0
        %v734 = vsel %vm714, %v698, 0.0
        %v735 = vsel %vm715, %v694, 0.0
        %v736 = vsel %vm716, %v690, 0.0
        %v737 = vpack.c.bf16 %v722, %v717
        %v738 = vpack.c.bf16 %v723, %v718
        %v739 = vpack.c.bf16 %v724, %v719
        %v740 = vpack.c.bf16 %v725, %v720
        %v741 = vpack.c.bf16 %v726, %v721
        %v742 = vpack.c.bf16 %v732, %v727
        %v743 = vpack.c.bf16 %v733, %v728
        %v744 = vpack.c.bf16 %v734, %v729
        %v745 = vpack.c.bf16 %v735, %v730
        %v746 = vpack.c.bf16 %v736, %v731
        %747 = vst [vmem:[#allocation2] sm:$0xff] %v737
        %748 = vst [vmem:[#allocation2 + $0x8] sm:$0xff] %v738
        %749 = vst [vmem:[#allocation2 + $0x10] sm:$0xff] %v739
        %750 = vst [vmem:[#allocation2 + $0x18] sm:$0xff] %v740
        %751 = vst [vmem:[#allocation2 + $0x20] sm:$0xff] %v741
        %752 = vst [vmem:[#allocation2 + $0x28] sm:$0xff] %v742
        %753 = vst [vmem:[#allocation2 + $0x30] sm:$0xff] %v743
        %754 = vst [vmem:[#allocation2 + $0x38] sm:$0xff] %v744
        %755 = vst [vmem:[#allocation2 + $0x40] sm:$0xff] %v745
        %756 = vst [vmem:[#allocation2 + $0x48] sm:$0xff] %v746
        %v757 = vpack.c.bf16 %v631, %v626
        %v758 = vpack.c.bf16 %v632, %v627
        %v759 = vpack.c.bf16 %v633, %v628
        %v760 = vpack.c.bf16 %v634, %v629
        %v761 = vpack.c.bf16 %v635, %v630
        %v762 = vpack.c.bf16 %v641, %v636
        %v763 = vpack.c.bf16 %v642, %v637
        %v764 = vpack.c.bf16 %v643, %v638
        %v765 = vpack.c.bf16 %v644, %v639
        %v766 = vpack.c.bf16 %v645, %v640
        %767 = vst [vmem:[#allocation2 + $0x50] sm:$0xff] %v757
        %768 = vst [vmem:[#allocation2 + $0x58] sm:$0xff] %v758
        %769 = vst [vmem:[#allocation2 + $0x60] sm:$0xff] %v759
        %770 = vst [vmem:[#allocation2 + $0x68] sm:$0xff] %v760
        %771 = vst [vmem:[#allocation2 + $0x70] sm:$0xff] %v761
        %772 = vst [vmem:[#allocation2 + $0x78] sm:$0xff] %v762
        %773 = vst [vmem:[#allocation2 + $0x80] sm:$0xff] %v763
        %774 = vst [vmem:[#allocation2 + $0x88] sm:$0xff] %v764
        %775 = vst [vmem:[#allocation2 + $0x90] sm:$0xff] %v765
        %776 = vst [vmem:[#allocation2 + $0x98] sm:$0xff] %v766
        %777 = vrot.lane.b32.xlu0 %v626, 127
        %v778 = vpop.permute.xlu0 %777
        %779 = vrot.lane.b32.xlu0 %v631, 127
        %v780 = vpop.permute.xlu0 %779
        %781 = vrot.lane.b32.xlu0 %v636, 127
        %v782 = vpop.permute.xlu0 %781
        %783 = vrot.lane.b32.xlu0 %v641, 127
        %v784 = vpop.permute.xlu0 %783
        %785 = vrot.lane.b32.xlu0 %v627, 127
        %v786 = vpop.permute.xlu0 %785
        %787 = vrot.lane.b32.xlu0 %v632, 127
        %v788 = vpop.permute.xlu0 %787
        %789 = vrot.lane.b32.xlu0 %v637, 127
        %v790 = vpop.permute.xlu0 %789
        %791 = vrot.lane.b32.xlu0 %v642, 127
        %v792 = vpop.permute.xlu0 %791
        %793 = vrot.lane.b32.xlu0 %v628, 127
        %v794 = vpop.permute.xlu0 %793
        %795 = vrot.lane.b32.xlu0 %v633, 127
        %v796 = vpop.permute.xlu0 %795
        %797 = vrot.lane.b32.xlu0 %v638, 127
        %v798 = vpop.permute.xlu0 %797
        %799 = vrot.lane.b32.xlu0 %v643, 127
        %v800 = vpop.permute.xlu0 %799
        %801 = vrot.lane.b32.xlu0 %v629, 127
        %v802 = vpop.permute.xlu0 %801
        %803 = vrot.lane.b32.xlu0 %v634, 127
        %v804 = vpop.permute.xlu0 %803
        %805 = vrot.lane.b32.xlu0 %v639, 127
        %v806 = vpop.permute.xlu0 %805
        %807 = vrot.lane.b32.xlu0 %v644, 127
        %v808 = vpop.permute.xlu0 %807
        %809 = vrot.lane.b32.xlu0 %v630, 127
        %v810 = vpop.permute.xlu0 %809
        %811 = vrot.lane.b32.xlu0 %v635, 127
        %v812 = vpop.permute.xlu0 %811
        %813 = vrot.lane.b32.xlu0 %v640, 127
        %v814 = vpop.permute.xlu0 %813
        %815 = vrot.lane.b32.xlu0 %v645, 127
        %v816 = vpop.permute.xlu0 %815
        %vm817 = vcmp.lt.s32.totalorder %v443, 127
        %v818 = vsel %vm817, %v802, %v810
        %v819 = vsel %vm817, %v804, %v812
        %v820 = vsel %vm817, %v806, %v814
        %v821 = vsel %vm817, %v808, %v816
        %v822 = vsel %vm817, %v794, %v802
        %v823 = vsel %vm817, %v796, %v804
        %v824 = vsel %vm817, %v798, %v806
        %v825 = vsel %vm817, %v800, %v808
        %v826 = vsel %vm817, %v786, %v794
        %v827 = vsel %vm817, %v788, %v796
        %v828 = vsel %vm817, %v790, %v798
        %v829 = vsel %vm817, %v792, %v800
        %v830 = vsel %vm817, %v778, %v786
        %v831 = vsel %vm817, %v780, %v788
        %v832 = vsel %vm817, %v782, %v790
        %v833 = vsel %vm817, %v784, %v792
        %v834 = vsel %vm817, %v810, %v778
        %v835 = vsel %vm817, %v812, %v780
        %v836 = vsel %vm817, %v814, %v782
        %v837 = vsel %vm817, %v816, %v784
        %v838 = vsel %vm468, 1, 0
        %v839 = vsel %vm469, 1, 0
        %v840 = vsel %vm470, 1, 0
        %v841 = vsel %vm471, 1, 0
        %v842 = vsel %vm472, 1, 0
        %vm843 = vcmp.eq.s32.totalorder %v838, 1
        %vm844 = vcmp.eq.s32.totalorder %v839, 1
        %vm845 = vcmp.eq.s32.totalorder %v840, 1
        %vm846 = vcmp.eq.s32.totalorder %v841, 1
        %vm847 = vcmp.eq.s32.totalorder %v842, 1
        %v848 = vsel %vm843, %v830, 0.0
        %v849 = vsel %vm844, %v826, 0.0
        %v850 = vsel %vm845, %v822, 0.0
        %v851 = vsel %vm846, %v818, 0.0
        %v852 = vsel %vm847, %v834, 0.0
        %v853 = vsel %vm843, %v831, 0.0
        %v854 = vsel %vm844, %v827, 0.0
        %v855 = vsel %vm845, %v823, 0.0
        %v856 = vsel %vm846, %v819, 0.0
        %v857 = vsel %vm847, %v835, 0.0
        %v858 = vsel %vm843, %v832, 0.0
        %v859 = vsel %vm844, %v828, 0.0
        %v860 = vsel %vm845, %v824, 0.0
        %v861 = vsel %vm846, %v820, 0.0
        %v862 = vsel %vm847, %v836, 0.0
        %v863 = vsel %vm843, %v833, 0.0
        %v864 = vsel %vm844, %v829, 0.0
        %v865 = vsel %vm845, %v825, 0.0
        %v866 = vsel %vm846, %v821, 0.0
        %v867 = vsel %vm847, %v837, 0.0
        %v868 = vpack.c.bf16 %v853, %v848
        %v869 = vpack.c.bf16 %v854, %v849
        %v870 = vpack.c.bf16 %v855, %v850
        %v871 = vpack.c.bf16 %v856, %v851
        %v872 = vpack.c.bf16 %v857, %v852
        %v873 = vpack.c.bf16 %v863, %v858
        %v874 = vpack.c.bf16 %v864, %v859
        %v875 = vpack.c.bf16 %v865, %v860
        %v876 = vpack.c.bf16 %v866, %v861
        %v877 = vpack.c.bf16 %v867, %v862
        %878 = vst [vmem:[#allocation2 + $0xa0] sm:$0xff] %v868
        %879 = vst [vmem:[#allocation2 + $0xa8] sm:$0xff] %v869
        %880 = vst [vmem:[#allocation2 + $0xb0] sm:$0xff] %v870
        %881 = vst [vmem:[#allocation2 + $0xb8] sm:$0xff] %v871
        %882 = vst [vmem:[#allocation2 + $0xc0] sm:$0xff] %v872
        %883 = vst [vmem:[#allocation2 + $0xc8] sm:$0xff] %v873
        %884 = vst [vmem:[#allocation2 + $0xd0] sm:$0xff] %v874
        %885 = vst [vmem:[#allocation2 + $0xd8] sm:$0xff] %v875
        %886 = vst [vmem:[#allocation2 + $0xe0] sm:$0xff] %v876
        %887 = vst [vmem:[#allocation2 + $0xe8] sm:$0xff] %v877
        %v888 = vld [vmem:[#allocation3] sm:$0xf]
        %v889 = vld [vmem:[#allocation3 + $0x4] sm:$0xf]
        %v890 = vld [vmem:[#allocation3 + $0x8] sm:$0xf]
        %v891 = vld [vmem:[#allocation3 + $0xc] sm:$0xf]
        %v892 = vld [vmem:[#allocation2] sm:$0xff]
        %v893 = vld [vmem:[#allocation2 + $0x8] sm:$0xff]
        %v894 = vld [vmem:[#allocation2 + $0x10] sm:$0xff]
        %v895 = vld [vmem:[#allocation2 + $0x18] sm:$0xff]
        %v896 = vld [vmem:[#allocation2 + $0x20] sm:$0xff]
        %v897 = vld [vmem:[#allocation2 + $0x28] sm:$0xff]
        %v898 = vld [vmem:[#allocation2 + $0x30] sm:$0xff]
        %v899 = vld [vmem:[#allocation2 + $0x38] sm:$0xff]
        %v900 = vld [vmem:[#allocation2 + $0x40] sm:$0xff]
        %v901 = vld [vmem:[#allocation2 + $0x48] sm:$0xff]
        %v902 = vld [vmem:[#allocation2 + $0x50] sm:$0xff]
        %v903 = vld [vmem:[#allocation2 + $0x58] sm:$0xff]
        %v904 = vld [vmem:[#allocation2 + $0x60] sm:$0xff]
        %v905 = vld [vmem:[#allocation2 + $0x68] sm:$0xff]
        %v906 = vld [vmem:[#allocation2 + $0x70] sm:$0xff]
        %v907 = vld [vmem:[#allocation2 + $0x78] sm:$0xff]
        %v908 = vld [vmem:[#allocation2 + $0x80] sm:$0xff]
        %v909 = vld [vmem:[#allocation2 + $0x88] sm:$0xff]
        %v910 = vld [vmem:[#allocation2 + $0x90] sm:$0xff]
        %v911 = vld [vmem:[#allocation2 + $0x98] sm:$0xff]
        %v912 = vld [vmem:[#allocation2 + $0xa0] sm:$0xff]
        %v913 = vld [vmem:[#allocation2 + $0xa8] sm:$0xff]
        %v914 = vld [vmem:[#allocation2 + $0xb0] sm:$0xff]
        %v915 = vld [vmem:[#allocation2 + $0xb8] sm:$0xff]
        %v916 = vld [vmem:[#allocation2 + $0xc0] sm:$0xff]
        %v917 = vld [vmem:[#allocation2 + $0xc8] sm:$0xff]
        %v918 = vld [vmem:[#allocation2 + $0xd0] sm:$0xff]
        %v919 = vld [vmem:[#allocation2 + $0xd8] sm:$0xff]
        %v920 = vld [vmem:[#allocation2 + $0xe0] sm:$0xff]
        %v921 = vld [vmem:[#allocation2 + $0xe8] sm:$0xff]
        %v922 = vld [vmem:[%s1] sm:$0xff]
        %v923 = vld [vmem:[%s1 + $0x8] sm:$0xff]
        %v924 = vld [vmem:[%s1 + $0x10] sm:$0xff]
        %v925 = vld [vmem:[%s1 + $0x18] sm:$0xff]
        %927 = vset.pattern.permute.xlu0 0
        %928 = vperm.xlu0 %927, %v922
        %v929 = vpop.permute.xlu0 %928
        %932 = vset.pattern.permute.xlu0 0
        %933 = vperm.xlu0 %932, %v923
        %v934 = vpop.permute.xlu0 %933
        %937 = vset.pattern.permute.xlu0 0
        %938 = vperm.xlu0 %937, %v924
        %v939 = vpop.permute.xlu0 %938
        %942 = vset.pattern.permute.xlu0 0
        %943 = vperm.xlu0 %942, %v925
        %v944 = vpop.permute.xlu0 %943
        %v950 = vunpack.c.l.b16 %v888
        %v951 = vunpack.c.l.b16 %v889
        %v952 = vunpack.c.l.b16 %v890
        %v953 = vunpack.c.l.b16 %v891
        %v954 = vpack.c.b16 %v951, %v950
        %v955 = vpack.c.b16 %v953, %v952
        %vm956 = vcmask 785408
        %v958 = vsel %vm956, %v954, 0
        %v961 = vsel %vm956, %v955, 0
        %963 = vmatprep.subr.bf16.mxu0 %v893
        %964 = vmatpush1.bf16.msra.mxu0 %v892
        %965 = vmatprep.subr.bf16.mxu0 %v898
        %966 = vmatpush1.bf16.msra.mxu0 %v897
        %967 = vmatprep.subr.bf16.mxu0 %v903
        %968 = vmatpush1.bf16.msra.mxu0 %v902
        %969 = vmatprep.subr.bf16.mxu0 %v908
        %970 = vmatpush1.bf16.msra.mxu0 %v907
        %971 = vmatprep.subr.bf16.mxu0 %v913
        %972 = vmatpush1.bf16.msra.mxu0 %v912
        %973 = vmatprep.subr.bf16.mxu0 %v918
        %974 = vmatpush1.bf16.msra.mxu0 %v917
        %975 = vmatprep.subr.bf16.mxu0 0
        %976 = vmatpush1.bf16.msra.mxu0 0
        %977 = vmatprep.subr.bf16.mxu0 0
        %978 = vmatpush1.bf16.msra.mxu0 0
        %979 = vmatprep.subr.bf16.mxu0 0
        %980 = vmatpush1.bf16.msra.mxu0 0
        %981 = vmatprep.subr.bf16.mxu0 0
        %982 = vmatpush1.bf16.msra.mxu0 0
        %983 = vmatprep.subr.bf16.mxu0 0
        %984 = vmatpush1.bf16.msra.mxu0 0
        %985 = vmatprep.subr.bf16.mxu0 0
        %986 = vmatpush1.bf16.msra.mxu0 0
        %987 = vmatprep.subr.bf16.mxu0 0
        %988 = vmatpush1.bf16.msra.mxu0 0
        %989 = vmatprep.subr.bf16.mxu0 0
        %990 = vmatpush1.bf16.msra.mxu0 0
        %991 = vmatprep.subr.bf16.mxu0 0
        %992 = vmatpush1.bf16.msra.mxu0 0
        %993 = vmatprep.subr.bf16.mxu0 0
        %994 = vmatpush1.bf16.msra.mxu0 0
        %995 = vmatprep.mubr.bf16.mxu0 0
        %996 = vmatmul.mubr.bf16.gmra.mrb[0].mxu0 %v958
        %v997 = vpop.f32.mrb[0].mxu0
        %v998 = vadd.f32 %v929, %v997
        %v999 = vpop.f32.mrb[0].mxu0
        %v1000 = vadd.f32 %v929, %v999
        %v1001 = vpop.f32.mrb[0].mxu0
        %v1002 = vadd.f32 %v934, %v1001
        %v1003 = vpop.f32.mrb[0].mxu0
        %v1004 = vadd.f32 %v934, %v1003
        %1005 = vmatprep.mubr.bf16.mxu0 0
        %1006 = vmatmul.mubr.bf16.gmra.mrb[0].mxu0 %v961
        %v1007 = vpop.f32.mrb[0].mxu0
        %v1008 = vadd.f32 %v939, %v1007
        %v1009 = vpop.f32.mrb[0].mxu0
        %v1010 = vadd.f32 %v939, %v1009
        %v1011 = vpop.f32.mrb[0].mxu0
        %v1012 = vadd.f32 %v944, %v1011
        %v1013 = vpop.f32.mrb[0].mxu0
        %v1014 = vadd.f32 %v944, %v1013
        %1015 = vdwg.mxu0
        %1016 = vmatprep.subr.bf16.mxu0 %v895
        %1017 = vmatpush1.bf16.msra.mxu0 %v894
        %1018 = vmatprep.subr.bf16.mxu0 %v900
        %1019 = vmatpush1.bf16.msra.mxu0 %v899
        %1020 = vmatprep.subr.bf16.mxu0 %v905
        %1021 = vmatpush1.bf16.msra.mxu0 %v904
        %1022 = vmatprep.subr.bf16.mxu0 %v910
        %1023 = vmatpush1.bf16.msra.mxu0 %v909
        %1024 = vmatprep.subr.bf16.mxu0 %v915
        %1025 = vmatpush1.bf16.msra.mxu0 %v914
        %1026 = vmatprep.subr.bf16.mxu0 %v920
        %1027 = vmatpush1.bf16.msra.mxu0 %v919
        %1028 = vmatprep.subr.bf16.mxu0 0
        %1029 = vmatpush1.bf16.msra.mxu0 0
        %1030 = vmatprep.subr.bf16.mxu0 0
        %1031 = vmatpush1.bf16.msra.mxu0 0
        %1032 = vmatprep.subr.bf16.mxu0 0
        %1033 = vmatpush1.bf16.msra.mxu0 0
        %1034 = vmatprep.subr.bf16.mxu0 0
        %1035 = vmatpush1.bf16.msra.mxu0 0
        %1036 = vmatprep.subr.bf16.mxu0 0
        %1037 = vmatpush1.bf16.msra.mxu0 0
        %1038 = vmatprep.subr.bf16.mxu0 0
        %1039 = vmatpush1.bf16.msra.mxu0 0
        %1040 = vmatprep.subr.bf16.mxu0 0
        %1041 = vmatpush1.bf16.msra.mxu0 0
        %1042 = vmatprep.subr.bf16.mxu0 0
        %1043 = vmatpush1.bf16.msra.mxu0 0
        %1044 = vmatprep.subr.bf16.mxu0 0
        %1045 = vmatpush1.bf16.msra.mxu0 0
        %1046 = vmatprep.subr.bf16.mxu0 0
        %1047 = vmatpush1.bf16.msra.mxu0 0
        %1048 = vmatprep.mubr.bf16.mxu0 0
        %1049 = vmatmul.mubr.bf16.gmra.mrb[0].mxu0 %v958
        %v1050 = vpop.f32.mrb[0].mxu0
        %v1051 = vadd.f32 %v929, %v1050
        %v1052 = vpop.f32.mrb[0].mxu0
        %v1053 = vadd.f32 %v929, %v1052
        %v1054 = vpop.f32.mrb[0].mxu0
        %v1055 = vadd.f32 %v934, %v1054
        %v1056 = vpop.f32.mrb[0].mxu0
        %v1057 = vadd.f32 %v934, %v1056
        %1058 = vmatprep.mubr.bf16.mxu0 0
        %1059 = vmatmul.mubr.bf16.gmra.mrb[0].mxu0 %v961
        %v1060 = vpop.f32.mrb[0].mxu0
        %v1061 = vadd.f32 %v939, %v1060
        %v1062 = vpop.f32.mrb[0].mxu0
        %v1063 = vadd.f32 %v939, %v1062
        %v1064 = vpop.f32.mrb[0].mxu0
        %v1065 = vadd.f32 %v944, %v1064
        %v1066 = vpop.f32.mrb[0].mxu0
        %v1067 = vadd.f32 %v944, %v1066
        %1068 = vdwg.mxu0
        %1069 = vmatprep.subr.bf16.mxu0 0
        %1070 = vmatpush1.bf16.msra.mxu0 %v896
        %1071 = vmatprep.subr.bf16.mxu0 0
        %1072 = vmatpush1.bf16.msra.mxu0 %v901
        %1073 = vmatprep.subr.bf16.mxu0 0
        %1074 = vmatpush1.bf16.msra.mxu0 %v906
        %1075 = vmatprep.subr.bf16.mxu0 0
        %1076 = vmatpush1.bf16.msra.mxu0 %v911
        %1077 = vmatprep.subr.bf16.mxu0 0
        %1078 = vmatpush1.bf16.msra.mxu0 %v916
        %1079 = vmatprep.subr.bf16.mxu0 0
        %1080 = vmatpush1.bf16.msra.mxu0 %v921
        %1081 = vmatprep.subr.bf16.mxu0 0
        %1082 = vmatpush1.bf16.msra.mxu0 0
        %1083 = vmatprep.subr.bf16.mxu0 0
        %1084 = vmatpush1.bf16.msra.mxu0 0
        %1085 = vmatprep.subr.bf16.mxu0 0
        %1086 = vmatpush1.bf16.msra.mxu0 0
        %1087 = vmatprep.subr.bf16.mxu0 0
        %1088 = vmatpush1.bf16.msra.mxu0 0
        %1089 = vmatprep.subr.bf16.mxu0 0
        %1090 = vmatpush1.bf16.msra.mxu0 0
        %1091 = vmatprep.subr.bf16.mxu0 0
        %1092 = vmatpush1.bf16.msra.mxu0 0
        %1093 = vmatprep.subr.bf16.mxu0 0
        %1094 = vmatpush1.bf16.msra.mxu0 0
        %1095 = vmatprep.subr.bf16.mxu0 0
        %1096 = vmatpush1.bf16.msra.mxu0 0
        %1097 = vmatprep.subr.bf16.mxu0 0
        %1098 = vmatpush1.bf16.msra.mxu0 0
        %1099 = vmatprep.subr.bf16.mxu0 0
        %1100 = vmatpush1.bf16.msra.mxu0 0
        %1101 = vmatprep.mubr.bf16.mxu0 0
        %1102 = vmatmul.mubr.bf16.gmra.mrb[0].mxu0 %v958
        %v1103 = vpop.f32.mrb[0].mxu0
        %v1104 = vadd.f32 %v929, %v1103
        %v1105 = vpop.f32.mrb[0].mxu0
        %v1106 = vpop.f32.mrb[0].mxu0
        %v1107 = vadd.f32 %v934, %v1106
        %v1108 = vpop.f32.mrb[0].mxu0
        %1109 = vmatprep.mubr.bf16.mxu0 0
        %1110 = vmatmul.mubr.bf16.gmra.mrb[0].mxu0 %v961
        %v1111 = vpop.f32.mrb[0].mxu0
        %v1112 = vadd.f32 %v939, %v1111
        %v1113 = vpop.f32.mrb[0].mxu0
        %v1114 = vpop.f32.mrb[0].mxu0
        %v1115 = vadd.f32 %v944, %v1114
        %v1116 = vpop.f32.mrb[0].mxu0
        %1117 = vdwg.mxu0
        %v1118 = vmul.f32 %v998, 0.01
        %v1119 = vmul.f32 %v1000, 0.01
        %v1120 = vmul.f32 %v1051, 0.01
        %v1121 = vmul.f32 %v1053, 0.01
        %v1122 = vmul.f32 %v1104, 0.01
        %v1123 = vmul.f32 %v1002, 0.01
        %v1124 = vmul.f32 %v1004, 0.01
        %v1125 = vmul.f32 %v1055, 0.01
        %v1126 = vmul.f32 %v1057, 0.01
        %v1127 = vmul.f32 %v1107, 0.01
        %v1128 = vmul.f32 %v1008, 0.01
        %v1129 = vmul.f32 %v1010, 0.01
        %v1130 = vmul.f32 %v1061, 0.01
        %v1131 = vmul.f32 %v1063, 0.01
        %v1132 = vmul.f32 %v1112, 0.01
        %v1133 = vmul.f32 %v1012, 0.01
        %v1134 = vmul.f32 %v1014, 0.01
        %v1135 = vmul.f32 %v1065, 0.01
        %v1136 = vmul.f32 %v1067, 0.01
        %v1137 = vmul.f32 %v1115, 0.01
        %v1138 = vmax.f32 %v998, %v1118
        %v1139 = vmax.f32 %v1000, %v1119
        %v1140 = vmax.f32 %v1051, %v1120
        %v1141 = vmax.f32 %v1053, %v1121
        %v1142 = vmax.f32 %v1104, %v1122
        %v1143 = vmax.f32 %v1002, %v1123
        %v1144 = vmax.f32 %v1004, %v1124
        %v1145 = vmax.f32 %v1055, %v1125
        %v1146 = vmax.f32 %v1057, %v1126
        %v1147 = vmax.f32 %v1107, %v1127
        %v1148 = vmax.f32 %v1008, %v1128
        %v1149 = vmax.f32 %v1010, %v1129
        %v1150 = vmax.f32 %v1061, %v1130
        %v1151 = vmax.f32 %v1063, %v1131
        %v1152 = vmax.f32 %v1112, %v1132
        %v1153 = vmax.f32 %v1012, %v1133
        %v1154 = vmax.f32 %v1014, %v1134
        %v1155 = vmax.f32 %v1065, %v1135
        %v1156 = vmax.f32 %v1067, %v1136
        %v1157 = vmax.f32 %v1115, %v1137
        %1158 = vrot.lane.b32.xlu0 %v1138, 1
        %v1159 = vpop.permute.xlu0 %1158
        %1160 = vrot.lane.b32.xlu0 %v1143, 1
        %v1161 = vpop.permute.xlu0 %1160
        %1162 = vrot.lane.b32.xlu0 %v1148, 1
        %v1163 = vpop.permute.xlu0 %1162
        %1164 = vrot.lane.b32.xlu0 %v1153, 1
        %v1165 = vpop.permute.xlu0 %1164
        %1166 = vrot.lane.b32.xlu0 %v1139, 1
        %v1167 = vpop.permute.xlu0 %1166
        %1168 = vrot.lane.b32.xlu0 %v1144, 1
        %v1169 = vpop.permute.xlu0 %1168
        %1170 = vrot.lane.b32.xlu0 %v1149, 1
        %v1171 = vpop.permute.xlu0 %1170
        %1172 = vrot.lane.b32.xlu0 %v1154, 1
        %v1173 = vpop.permute.xlu0 %1172
        %1174 = vrot.lane.b32.xlu0 %v1140, 1
        %v1175 = vpop.permute.xlu0 %1174
        %1176 = vrot.lane.b32.xlu0 %v1145, 1
        %v1177 = vpop.permute.xlu0 %1176
        %1178 = vrot.lane.b32.xlu0 %v1150, 1
        %v1179 = vpop.permute.xlu0 %1178
        %1180 = vrot.lane.b32.xlu0 %v1155, 1
        %v1181 = vpop.permute.xlu0 %1180
        %1182 = vrot.lane.b32.xlu0 %v1141, 1
        %v1183 = vpop.permute.xlu0 %1182
        %1184 = vrot.lane.b32.xlu0 %v1146, 1
        %v1185 = vpop.permute.xlu0 %1184
        %1186 = vrot.lane.b32.xlu0 %v1151, 1
        %v1187 = vpop.permute.xlu0 %1186
        %1188 = vrot.lane.b32.xlu0 %v1156, 1
        %v1189 = vpop.permute.xlu0 %1188
        %1190 = vrot.lane.b32.xlu0 %v1142, 1
        %v1191 = vpop.permute.xlu0 %1190
        %1192 = vrot.lane.b32.xlu0 %v1147, 1
        %v1193 = vpop.permute.xlu0 %1192
        %1194 = vrot.lane.b32.xlu0 %v1152, 1
        %v1195 = vpop.permute.xlu0 %1194
        %1196 = vrot.lane.b32.xlu0 %v1157, 1
        %v1197 = vpop.permute.xlu0 %1196
        %v1198 = vsel %vm686, %v1183, %v1191
        %v1199 = vsel %vm686, %v1185, %v1193
        %v1200 = vsel %vm686, %v1187, %v1195
        %v1201 = vsel %vm686, %v1189, %v1197
        %v1202 = vsel %vm686, %v1175, %v1183
        %v1203 = vsel %vm686, %v1177, %v1185
        %v1204 = vsel %vm686, %v1179, %v1187
        %v1205 = vsel %vm686, %v1181, %v1189
        %v1206 = vsel %vm686, %v1167, %v1175
        %v1207 = vsel %vm686, %v1169, %v1177
        %v1208 = vsel %vm686, %v1171, %v1179
        %v1209 = vsel %vm686, %v1173, %v1181
        %v1210 = vsel %vm686, %v1159, %v1167
        %v1211 = vsel %vm686, %v1161, %v1169
        %v1212 = vsel %vm686, %v1163, %v1171
        %v1213 = vsel %vm686, %v1165, %v1173
        %v1214 = vsel %vm686, %v1191, %v1159
        %v1215 = vsel %vm686, %v1193, %v1161
        %v1216 = vsel %vm686, %v1195, %v1163
        %v1217 = vsel %vm686, %v1197, %v1165
        %v1218 = vsel %vm712, %v1214, 0.0
        %v1219 = vsel %vm713, %v1210, 0.0
        %v1220 = vsel %vm714, %v1206, 0.0
        %v1221 = vsel %vm715, %v1202, 0.0
        %v1222 = vsel %vm716, %v1198, 0.0
        %v1223 = vsel %vm712, %v1215, 0.0
        %v1224 = vsel %vm713, %v1211, 0.0
        %v1225 = vsel %vm714, %v1207, 0.0
        %v1226 = vsel %vm715, %v1203, 0.0
        %v1227 = vsel %vm716, %v1199, 0.0
        %v1228 = vsel %vm712, %v1216, 0.0
        %v1229 = vsel %vm713, %v1212, 0.0
        %v1230 = vsel %vm714, %v1208, 0.0
        %v1231 = vsel %vm715, %v1204, 0.0
        %v1232 = vsel %vm716, %v1200, 0.0
        %v1233 = vsel %vm712, %v1217, 0.0
        %v1234 = vsel %vm713, %v1213, 0.0
        %v1235 = vsel %vm714, %v1209, 0.0
        %v1236 = vsel %vm715, %v1205, 0.0
        %v1237 = vsel %vm716, %v1201, 0.0
        %v1238 = vpack.c.bf16 %v1223, %v1218
        %v1239 = vpack.c.bf16 %v1224, %v1219
        %v1240 = vpack.c.bf16 %v1225, %v1220
        %v1241 = vpack.c.bf16 %v1226, %v1221
        %v1242 = vpack.c.bf16 %v1227, %v1222
        %v1243 = vpack.c.bf16 %v1233, %v1228
        %v1244 = vpack.c.bf16 %v1234, %v1229
        %v1245 = vpack.c.bf16 %v1235, %v1230
        %v1246 = vpack.c.bf16 %v1236, %v1231
        %v1247 = vpack.c.bf16 %v1237, %v1232
        %1248 = vst [vmem:[#allocation2] sm:$0xff] %v1238
        %1249 = vst [vmem:[#allocation2 + $0x8] sm:$0xff] %v1239
        %1250 = vst [vmem:[#allocation2 + $0x10] sm:$0xff] %v1240
        %1251 = vst [vmem:[#allocation2 + $0x18] sm:$0xff] %v1241
        %1252 = vst [vmem:[#allocation2 + $0x20] sm:$0xff] %v1242
        %1253 = vst [vmem:[#allocation2 + $0x28] sm:$0xff] %v1243
        %1254 = vst [vmem:[#allocation2 + $0x30] sm:$0xff] %v1244
        %1255 = vst [vmem:[#allocation2 + $0x38] sm:$0xff] %v1245
        %1256 = vst [vmem:[#allocation2 + $0x40] sm:$0xff] %v1246
        %1257 = vst [vmem:[#allocation2 + $0x48] sm:$0xff] %v1247
        %v1258 = vpack.c.bf16 %v1143, %v1138
        %v1259 = vpack.c.bf16 %v1144, %v1139
        %v1260 = vpack.c.bf16 %v1145, %v1140
        %v1261 = vpack.c.bf16 %v1146, %v1141
        %v1262 = vpack.c.bf16 %v1147, %v1142
        %v1263 = vpack.c.bf16 %v1153, %v1148
        %v1264 = vpack.c.bf16 %v1154, %v1149
        %v1265 = vpack.c.bf16 %v1155, %v1150
        %v1266 = vpack.c.bf16 %v1156, %v1151
        %v1267 = vpack.c.bf16 %v1157, %v1152
        %1268 = vst [vmem:[#allocation2 + $0x50] sm:$0xff] %v1258
        %1269 = vst [vmem:[#allocation2 + $0x58] sm:$0xff] %v1259
        %1270 = vst [vmem:[#allocation2 + $0x60] sm:$0xff] %v1260
        %1271 = vst [vmem:[#allocation2 + $0x68] sm:$0xff] %v1261
        %1272 = vst [vmem:[#allocation2 + $0x70] sm:$0xff] %v1262
        %1273 = vst [vmem:[#allocation2 + $0x78] sm:$0xff] %v1263
        %1274 = vst [vmem:[#allocation2 + $0x80] sm:$0xff] %v1264
        %1275 = vst [vmem:[#allocation2 + $0x88] sm:$0xff] %v1265
        %1276 = vst [vmem:[#allocation2 + $0x90] sm:$0xff] %v1266
        %1277 = vst [vmem:[#allocation2 + $0x98] sm:$0xff] %v1267
        %1278 = vrot.lane.b32.xlu0 %v1138, 127
        %v1279 = vpop.permute.xlu0 %1278
        %1280 = vrot.lane.b32.xlu0 %v1143, 127
        %v1281 = vpop.permute.xlu0 %1280
        %1282 = vrot.lane.b32.xlu0 %v1148, 127
        %v1283 = vpop.permute.xlu0 %1282
        %1284 = vrot.lane.b32.xlu0 %v1153, 127
        %v1285 = vpop.permute.xlu0 %1284
        %1286 = vrot.lane.b32.xlu0 %v1139, 127
        %v1287 = vpop.permute.xlu0 %1286
        %1288 = vrot.lane.b32.xlu0 %v1144, 127
        %v1289 = vpop.permute.xlu0 %1288
        %1290 = vrot.lane.b32.xlu0 %v1149, 127
        %v1291 = vpop.permute.xlu0 %1290
        %1292 = vrot.lane.b32.xlu0 %v1154, 127
        %v1293 = vpop.permute.xlu0 %1292
        %1294 = vrot.lane.b32.xlu0 %v1140, 127
        %v1295 = vpop.permute.xlu0 %1294
        %1296 = vrot.lane.b32.xlu0 %v1145, 127
        %v1297 = vpop.permute.xlu0 %1296
        %1298 = vrot.lane.b32.xlu0 %v1150, 127
        %v1299 = vpop.permute.xlu0 %1298
        %1300 = vrot.lane.b32.xlu0 %v1155, 127
        %v1301 = vpop.permute.xlu0 %1300
        %1302 = vrot.lane.b32.xlu0 %v1141, 127
        %v1303 = vpop.permute.xlu0 %1302
        %1304 = vrot.lane.b32.xlu0 %v1146, 127
        %v1305 = vpop.permute.xlu0 %1304
        %1306 = vrot.lane.b32.xlu0 %v1151, 127
        %v1307 = vpop.permute.xlu0 %1306
        %1308 = vrot.lane.b32.xlu0 %v1156, 127
        %v1309 = vpop.permute.xlu0 %1308
        %1310 = vrot.lane.b32.xlu0 %v1142, 127
        %v1311 = vpop.permute.xlu0 %1310
        %1312 = vrot.lane.b32.xlu0 %v1147, 127
        %v1313 = vpop.permute.xlu0 %1312
        %1314 = vrot.lane.b32.xlu0 %v1152, 127
        %v1315 = vpop.permute.xlu0 %1314
        %1316 = vrot.lane.b32.xlu0 %v1157, 127
        %v1317 = vpop.permute.xlu0 %1316
        %v1318 = vsel %vm817, %v1303, %v1311
        %v1319 = vsel %vm817, %v1305, %v1313
        %v1320 = vsel %vm817, %v1307, %v1315
        %v1321 = vsel %vm817, %v1309, %v1317
        %v1322 = vsel %vm817, %v1295, %v1303
        %v1323 = vsel %vm817, %v1297, %v1305
        %v1324 = vsel %vm817, %v1299, %v1307
        %v1325 = vsel %vm817, %v1301, %v1309
        %v1326 = vsel %vm817, %v1287, %v1295
        %v1327 = vsel %vm817, %v1289, %v1297
        %v1328 = vsel %vm817, %v1291, %v1299
        %v1329 = vsel %vm817, %v1293, %v1301
        %v1330 = vsel %vm817, %v1279, %v1287
        %v1331 = vsel %vm817, %v1281, %v1289
        %v1332 = vsel %vm817, %v1283, %v1291
        %v1333 = vsel %vm817, %v1285, %v1293
        %v1334 = vsel %vm817, %v1311, %v1279
        %v1335 = vsel %vm817, %v1313, %v1281
        %v1336 = vsel %vm817, %v1315, %v1283
        %v1337 = vsel %vm817, %v1317, %v1285
        %v1338 = vsel %vm843, %v1330, 0.0
        %v1339 = vsel %vm844, %v1326, 0.0
        %v1340 = vsel %vm845, %v1322, 0.0
        %v1341 = vsel %vm846, %v1318, 0.0
        %v1342 = vsel %vm847, %v1334, 0.0
        %v1343 = vsel %vm843, %v1331, 0.0
        %v1344 = vsel %vm844, %v1327, 0.0
        %v1345 = vsel %vm845, %v1323, 0.0
        %v1346 = vsel %vm846, %v1319, 0.0
        %v1347 = vsel %vm847, %v1335, 0.0
        %v1348 = vsel %vm843, %v1332, 0.0
        %v1349 = vsel %vm844, %v1328, 0.0
        %v1350 = vsel %vm845, %v1324, 0.0
        %v1351 = vsel %vm846, %v1320, 0.0
        %v1352 = vsel %vm847, %v1336, 0.0
        %v1353 = vsel %vm843, %v1333, 0.0
        %v1354 = vsel %vm844, %v1329, 0.0
        %v1355 = vsel %vm845, %v1325, 0.0
        %v1356 = vsel %vm846, %v1321, 0.0
        %v1357 = vsel %vm847, %v1337, 0.0
        %v1358 = vpack.c.bf16 %v1343, %v1338
        %v1359 = vpack.c.bf16 %v1344, %v1339
        %v1360 = vpack.c.bf16 %v1345, %v1340
        %v1361 = vpack.c.bf16 %v1346, %v1341
        %v1362 = vpack.c.bf16 %v1347, %v1342
        %v1363 = vpack.c.bf16 %v1353, %v1348
        %v1364 = vpack.c.bf16 %v1354, %v1349
        %v1365 = vpack.c.bf16 %v1355, %v1350
        %v1366 = vpack.c.bf16 %v1356, %v1351
        %v1367 = vpack.c.bf16 %v1357, %v1352
        %1368 = vst [vmem:[#allocation2 + $0xa0] sm:$0xff] %v1358
        %1369 = vst [vmem:[#allocation2 + $0xa8] sm:$0xff] %v1359
        %1370 = vst [vmem:[#allocation2 + $0xb0] sm:$0xff] %v1360
        %1371 = vst [vmem:[#allocation2 + $0xb8] sm:$0xff] %v1361
        %1372 = vst [vmem:[#allocation2 + $0xc0] sm:$0xff] %v1362
        %1373 = vst [vmem:[#allocation2 + $0xc8] sm:$0xff] %v1363
        %1374 = vst [vmem:[#allocation2 + $0xd0] sm:$0xff] %v1364
        %1375 = vst [vmem:[#allocation2 + $0xd8] sm:$0xff] %v1365
        %1376 = vst [vmem:[#allocation2 + $0xe0] sm:$0xff] %v1366
        %1377 = vst [vmem:[#allocation2 + $0xe8] sm:$0xff] %v1367
        %s1378 = scalar_lea.vmem [#allocation3], 16
        %v1379 = vld [vmem:[%s1378] sm:$0xf]
        %v1380 = vld [vmem:[%s1378 + $0x4] sm:$0xf]
        %v1381 = vld [vmem:[%s1378 + $0x8] sm:$0xf]
        %v1382 = vld [vmem:[%s1378 + $0xc] sm:$0xf]
        %v1383 = vld [vmem:[#allocation2] sm:$0xff]
        %v1384 = vld [vmem:[#allocation2 + $0x8] sm:$0xff]
        %v1385 = vld [vmem:[#allocation2 + $0x10] sm:$0xff]
        %v1386 = vld [vmem:[#allocation2 + $0x18] sm:$0xff]
        %v1387 = vld [vmem:[#allocation2 + $0x20] sm:$0xff]
        %v1388 = vld [vmem:[#allocation2 + $0x28] sm:$0xff]
        %v1389 = vld [vmem:[#allocation2 + $0x30] sm:$0xff]
        %v1390 = vld [vmem:[#allocation2 + $0x38] sm:$0xff]
        %v1391 = vld [vmem:[#allocation2 + $0x40] sm:$0xff]
        %v1392 = vld [vmem:[#allocation2 + $0x48] sm:$0xff]
        %v1393 = vld [vmem:[#allocation2 + $0x50] sm:$0xff]
        %v1394 = vld [vmem:[#allocation2 + $0x58] sm:$0xff]
        %v1395 = vld [vmem:[#allocation2 + $0x60] sm:$0xff]
        %v1396 = vld [vmem:[#allocation2 + $0x68] sm:$0xff]
        %v1397 = vld [vmem:[#allocation2 + $0x70] sm:$0xff]
        %v1398 = vld [vmem:[#allocation2 + $0x78] sm:$0xff]
        %v1399 = vld [vmem:[#allocation2 + $0x80] sm:$0xff]
        %v1400 = vld [vmem:[#allocation2 + $0x88] sm:$0xff]
        %v1401 = vld [vmem:[#allocation2 + $0x90] sm:$0xff]
        %v1402 = vld [vmem:[#allocation2 + $0x98] sm:$0xff]
        %v1403 = vld [vmem:[#allocation2 + $0xa0] sm:$0xff]
        %v1404 = vld [vmem:[#allocation2 + $0xa8] sm:$0xff]
        %v1405 = vld [vmem:[#allocation2 + $0xb0] sm:$0xff]
        %v1406 = vld [vmem:[#allocation2 + $0xb8] sm:$0xff]
        %v1407 = vld [vmem:[#allocation2 + $0xc0] sm:$0xff]
        %v1408 = vld [vmem:[#allocation2 + $0xc8] sm:$0xff]
        %v1409 = vld [vmem:[#allocation2 + $0xd0] sm:$0xff]
        %v1410 = vld [vmem:[#allocation2 + $0xd8] sm:$0xff]
        %v1411 = vld [vmem:[#allocation2 + $0xe0] sm:$0xff]
        %v1412 = vld [vmem:[#allocation2 + $0xe8] sm:$0xff]
        %s1413 = scalar_lea.vmem %s1, 32
        %v1414 = vld [vmem:[%s1413] sm:$0xff]
        %v1415 = vld [vmem:[%s1413 + $0x8] sm:$0xff]
        %v1416 = vld [vmem:[%s1413 + $0x10] sm:$0xff]
        %v1417 = vld [vmem:[%s1413 + $0x18] sm:$0xff]
        %1419 = vset.pattern.permute.xlu0 0
        %1420 = vperm.xlu0 %1419, %v1414
        %v1421 = vpop.permute.xlu0 %1420
        %1424 = vset.pattern.permute.xlu0 0
        %1425 = vperm.xlu0 %1424, %v1415
        %v1426 = vpop.permute.xlu0 %1425
        %1429 = vset.pattern.permute.xlu0 0
        %1430 = vperm.xlu0 %1429, %v1416
        %v1431 = vpop.permute.xlu0 %1430
        %1434 = vset.pattern.permute.xlu0 0
        %1435 = vperm.xlu0 %1434, %v1417
        %v1436 = vpop.permute.xlu0 %1435
        %v1442 = vunpack.c.l.b16 %v1379
        %v1443 = vunpack.c.l.b16 %v1380
        %v1444 = vunpack.c.l.b16 %v1381
        %v1445 = vunpack.c.l.b16 %v1382
        %v1446 = vpack.c.b16 %v1443, %v1442
        %v1447 = vpack.c.b16 %v1445, %v1444
        %v1449 = vsel %vm956, %v1446, 0
        %v1452 = vsel %vm956, %v1447, 0
        %1454 = vmatprep.subr.bf16.mxu0 %v1384
        %1455 = vmatpush1.bf16.msra.mxu0 %v1383
        %1456 = vmatprep.subr.bf16.mxu0 %v1389
        %1457 = vmatpush1.bf16.msra.mxu0 %v1388
        %1458 = vmatprep.subr.bf16.mxu0 %v1394
        %1459 = vmatpush1.bf16.msra.mxu0 %v1393
        %1460 = vmatprep.subr.bf16.mxu0 %v1399
        %1461 = vmatpush1.bf16.msra.mxu0 %v1398
        %1462 = vmatprep.subr.bf16.mxu0 %v1404
        %1463 = vmatpush1.bf16.msra.mxu0 %v1403
        %1464 = vmatprep.subr.bf16.mxu0 %v1409
        %1465 = vmatpush1.bf16.msra.mxu0 %v1408
        %1466 = vmatprep.subr.bf16.mxu0 0
        %1467 = vmatpush1.bf16.msra.mxu0 0
        %1468 = vmatprep.subr.bf16.mxu0 0
        %1469 = vmatpush1.bf16.msra.mxu0 0
        %1470 = vmatprep.subr.bf16.mxu0 0
        %1471 = vmatpush1.bf16.msra.mxu0 0
        %1472 = vmatprep.subr.bf16.mxu0 0
        %1473 = vmatpush1.bf16.msra.mxu0 0
        %1474 = vmatprep.subr.bf16.mxu0 0
        %1475 = vmatpush1.bf16.msra.mxu0 0
        %1476 = vmatprep.subr.bf16.mxu0 0
        %1477 = vmatpush1.bf16.msra.mxu0 0
        %1478 = vmatprep.subr.bf16.mxu0 0
        %1479 = vmatpush1.bf16.msra.mxu0 0
        %1480 = vmatprep.subr.bf16.mxu0 0
        %1481 = vmatpush1.bf16.msra.mxu0 0
        %1482 = vmatprep.subr.bf16.mxu0 0
        %1483 = vmatpush1.bf16.msra.mxu0 0
        %1484 = vmatprep.subr.bf16.mxu0 0
        %1485 = vmatpush1.bf16.msra.mxu0 0
        %1486 = vmatprep.mubr.bf16.mxu0 0
        %1487 = vmatmul.mubr.bf16.gmra.mrb[0].mxu0 %v1449
        %v1488 = vpop.f32.mrb[0].mxu0
        %v1489 = vadd.f32 %v1421, %v1488
        %v1490 = vpop.f32.mrb[0].mxu0
        %v1491 = vadd.f32 %v1421, %v1490
        %v1492 = vpop.f32.mrb[0].mxu0
        %v1493 = vadd.f32 %v1426, %v1492
        %v1494 = vpop.f32.mrb[0].mxu0
        %v1495 = vadd.f32 %v1426, %v1494
        %1496 = vmatprep.mubr.bf16.mxu0 0
        %1497 = vmatmul.mubr.bf16.gmra.mrb[0].mxu0 %v1452
        %v1498 = vpop.f32.mrb[0].mxu0
        %v1499 = vadd.f32 %v1431, %v1498
        %v1500 = vpop.f32.mrb[0].mxu0
        %v1501 = vadd.f32 %v1431, %v1500
        %v1502 = vpop.f32.mrb[0].mxu0
        %v1503 = vadd.f32 %v1436, %v1502
        %v1504 = vpop.f32.mrb[0].mxu0
        %v1505 = vadd.f32 %v1436, %v1504
        %1506 = vdwg.mxu0
        %1507 = vmatprep.subr.bf16.mxu0 %v1386
        %1508 = vmatpush1.bf16.msra.mxu0 %v1385
        %1509 = vmatprep.subr.bf16.mxu0 %v1391
        %1510 = vmatpush1.bf16.msra.mxu0 %v1390
        %1511 = vmatprep.subr.bf16.mxu0 %v1396
        %1512 = vmatpush1.bf16.msra.mxu0 %v1395
        %1513 = vmatprep.subr.bf16.mxu0 %v1401
        %1514 = vmatpush1.bf16.msra.mxu0 %v1400
        %1515 = vmatprep.subr.bf16.mxu0 %v1406
        %1516 = vmatpush1.bf16.msra.mxu0 %v1405
        %1517 = vmatprep.subr.bf16.mxu0 %v1411
        %1518 = vmatpush1.bf16.msra.mxu0 %v1410
        %1519 = vmatprep.subr.bf16.mxu0 0
        %1520 = vmatpush1.bf16.msra.mxu0 0
        %1521 = vmatprep.subr.bf16.mxu0 0
        %1522 = vmatpush1.bf16.msra.mxu0 0
        %1523 = vmatprep.subr.bf16.mxu0 0
        %1524 = vmatpush1.bf16.msra.mxu0 0
        %1525 = vmatprep.subr.bf16.mxu0 0
        %1526 = vmatpush1.bf16.msra.mxu0 0
        %1527 = vmatprep.subr.bf16.mxu0 0
        %1528 = vmatpush1.bf16.msra.mxu0 0
        %1529 = vmatprep.subr.bf16.mxu0 0
        %1530 = vmatpush1.bf16.msra.mxu0 0
        %1531 = vmatprep.subr.bf16.mxu0 0
        %1532 = vmatpush1.bf16.msra.mxu0 0
        %1533 = vmatprep.subr.bf16.mxu0 0
        %1534 = vmatpush1.bf16.msra.mxu0 0
        %1535 = vmatprep.subr.bf16.mxu0 0
        %1536 = vmatpush1.bf16.msra.mxu0 0
        %1537 = vmatprep.subr.bf16.mxu0 0
        %1538 = vmatpush1.bf16.msra.mxu0 0
        %1539 = vmatprep.mubr.bf16.mxu0 0
        %1540 = vmatmul.mubr.bf16.gmra.mrb[0].mxu0 %v1449
        %v1541 = vpop.f32.mrb[0].mxu0
        %v1542 = vadd.f32 %v1421, %v1541
        %v1543 = vpop.f32.mrb[0].mxu0
        %v1544 = vadd.f32 %v1421, %v1543
        %v1545 = vpop.f32.mrb[0].mxu0
        %v1546 = vadd.f32 %v1426, %v1545
        %v1547 = vpop.f32.mrb[0].mxu0
        %v1548 = vadd.f32 %v1426, %v1547
        %1549 = vmatprep.mubr.bf16.mxu0 0
        %1550 = vmatmul.mubr.bf16.gmra.mrb[0].mxu0 %v1452
        %v1551 = vpop.f32.mrb[0].mxu0
        %v1552 = vadd.f32 %v1431, %v1551
        %v1553 = vpop.f32.mrb[0].mxu0
        %v1554 = vadd.f32 %v1431, %v1553
        %v1555 = vpop.f32.mrb[0].mxu0
        %v1556 = vadd.f32 %v1436, %v1555
        %v1557 = vpop.f32.mrb[0].mxu0
        %v1558 = vadd.f32 %v1436, %v1557
        %1559 = vdwg.mxu0
        %1560 = vmatprep.subr.bf16.mxu0 0
        %1561 = vmatpush1.bf16.msra.mxu0 %v1387
        %1562 = vmatprep.subr.bf16.mxu0 0
        %1563 = vmatpush1.bf16.msra.mxu0 %v1392
        %1564 = vmatprep.subr.bf16.mxu0 0
        %1565 = vmatpush1.bf16.msra.mxu0 %v1397
        %1566 = vmatprep.subr.bf16.mxu0 0
        %1567 = vmatpush1.bf16.msra.mxu0 %v1402
        %1568 = vmatprep.subr.bf16.mxu0 0
        %1569 = vmatpush1.bf16.msra.mxu0 %v1407
        %1570 = vmatprep.subr.bf16.mxu0 0
        %1571 = vmatpush1.bf16.msra.mxu0 %v1412
        %1572 = vmatprep.subr.bf16.mxu0 0
        %1573 = vmatpush1.bf16.msra.mxu0 0
        %1574 = vmatprep.subr.bf16.mxu0 0
        %1575 = vmatpush1.bf16.msra.mxu0 0
        %1576 = vmatprep.subr.bf16.mxu0 0
        %1577 = vmatpush1.bf16.msra.mxu0 0
        %1578 = vmatprep.subr.bf16.mxu0 0
        %1579 = vmatpush1.bf16.msra.mxu0 0
        %1580 = vmatprep.subr.bf16.mxu0 0
        %1581 = vmatpush1.bf16.msra.mxu0 0
        %1582 = vmatprep.subr.bf16.mxu0 0
        %1583 = vmatpush1.bf16.msra.mxu0 0
        %1584 = vmatprep.subr.bf16.mxu0 0
        %1585 = vmatpush1.bf16.msra.mxu0 0
        %1586 = vmatprep.subr.bf16.mxu0 0
        %1587 = vmatpush1.bf16.msra.mxu0 0
        %1588 = vmatprep.subr.bf16.mxu0 0
        %1589 = vmatpush1.bf16.msra.mxu0 0
        %1590 = vmatprep.subr.bf16.mxu0 0
        %1591 = vmatpush1.bf16.msra.mxu0 0
        %1592 = vmatprep.mubr.bf16.mxu0 0
        %1593 = vmatmul.mubr.bf16.gmra.mrb[0].mxu0 %v1449
        %v1594 = vpop.f32.mrb[0].mxu0
        %v1595 = vadd.f32 %v1421, %v1594
        %v1596 = vpop.f32.mrb[0].mxu0
        %v1597 = vpop.f32.mrb[0].mxu0
        %v1598 = vadd.f32 %v1426, %v1597
        %v1599 = vpop.f32.mrb[0].mxu0
        %1600 = vmatprep.mubr.bf16.mxu0 0
        %1601 = vmatmul.mubr.bf16.gmra.mrb[0].mxu0 %v1452
        %v1602 = vpop.f32.mrb[0].mxu0
        %v1603 = vadd.f32 %v1431, %v1602
        %v1604 = vpop.f32.mrb[0].mxu0
        %v1605 = vpop.f32.mrb[0].mxu0
        %v1606 = vadd.f32 %v1436, %v1605
        %v1607 = vpop.f32.mrb[0].mxu0
        %1608 = vdwg.mxu0
        %v1609 = vadd.f32 %v422, %v1489
        %v1610 = vadd.f32 %v426, %v1491
        %v1611 = vadd.f32 %v427, %v1542
        %v1612 = vadd.f32 %v428, %v1544
        %v1613 = vadd.f32 %v438, %v1595
        %v1614 = vadd.f32 %v423, %v1493
        %v1615 = vadd.f32 %v429, %v1495
        %v1616 = vadd.f32 %v430, %v1546
        %v1617 = vadd.f32 %v431, %v1548
        %v1618 = vadd.f32 %v439, %v1598
        %v1619 = vadd.f32 %v424, %v1499
        %v1620 = vadd.f32 %v432, %v1501
        %v1621 = vadd.f32 %v433, %v1552
        %v1622 = vadd.f32 %v434, %v1554
        %v1623 = vadd.f32 %v440, %v1603
        %v1624 = vadd.f32 %v425, %v1503
        %v1625 = vadd.f32 %v435, %v1505
        %v1626 = vadd.f32 %v436, %v1556
        %v1627 = vadd.f32 %v437, %v1558
        %v1628 = vadd.f32 %v441, %v1606
        %v1629 = vmul.f32 %v1609, 0.01
        %v1630 = vmul.f32 %v1610, 0.01
        %v1631 = vmul.f32 %v1611, 0.01
        %v1632 = vmul.f32 %v1612, 0.01
        %v1633 = vmul.f32 %v1613, 0.01
        %v1634 = vmul.f32 %v1614, 0.01
        %v1635 = vmul.f32 %v1615, 0.01
        %v1636 = vmul.f32 %v1616, 0.01
        %v1637 = vmul.f32 %v1617, 0.01
        %v1638 = vmul.f32 %v1618, 0.01
        %v1639 = vmul.f32 %v1619, 0.01
        %v1640 = vmul.f32 %v1620, 0.01
        %v1641 = vmul.f32 %v1621, 0.01
        %v1642 = vmul.f32 %v1622, 0.01
        %v1643 = vmul.f32 %v1623, 0.01
        %v1644 = vmul.f32 %v1624, 0.01
        %v1645 = vmul.f32 %v1625, 0.01
        %v1646 = vmul.f32 %v1626, 0.01
        %v1647 = vmul.f32 %v1627, 0.01
        %v1648 = vmul.f32 %v1628, 0.01
        %v1649 = vmax.f32 %v1609, %v1629
        %v1650 = vmax.f32 %v1610, %v1630
        %v1651 = vmax.f32 %v1611, %v1631
        %v1652 = vmax.f32 %v1612, %v1632
        %v1653 = vmax.f32 %v1613, %v1633
        %v1654 = vmax.f32 %v1614, %v1634
        %v1655 = vmax.f32 %v1615, %v1635
        %v1656 = vmax.f32 %v1616, %v1636
        %v1657 = vmax.f32 %v1617, %v1637
        %v1658 = vmax.f32 %v1618, %v1638
        %v1659 = vmax.f32 %v1619, %v1639
        %v1660 = vmax.f32 %v1620, %v1640
        %v1661 = vmax.f32 %v1621, %v1641
        %v1662 = vmax.f32 %v1622, %v1642
        %v1663 = vmax.f32 %v1623, %v1643
        %v1664 = vmax.f32 %v1624, %v1644
        %v1665 = vmax.f32 %v1625, %v1645
        %v1666 = vmax.f32 %v1626, %v1646
        %v1667 = vmax.f32 %v1627, %v1647
        %v1668 = vmax.f32 %v1628, %v1648
        %1669 = vrot.lane.b32.xlu0 %v1649, 3
        %v1670 = vpop.permute.xlu0 %1669
        %1671 = vrot.lane.b32.xlu0 %v1654, 3
        %v1672 = vpop.permute.xlu0 %1671
        %1673 = vrot.lane.b32.xlu0 %v1659, 3
        %v1674 = vpop.permute.xlu0 %1673
        %1675 = vrot.lane.b32.xlu0 %v1664, 3
        %v1676 = vpop.permute.xlu0 %1675
        %1677 = vrot.lane.b32.xlu0 %v1650, 3
        %v1678 = vpop.permute.xlu0 %1677
        %1679 = vrot.lane.b32.xlu0 %v1655, 3
        %v1680 = vpop.permute.xlu0 %1679
        %1681 = vrot.lane.b32.xlu0 %v1660, 3
        %v1682 = vpop.permute.xlu0 %1681
        %1683 = vrot.lane.b32.xlu0 %v1665, 3
        %v1684 = vpop.permute.xlu0 %1683
        %1685 = vrot.lane.b32.xlu0 %v1651, 3
        %v1686 = vpop.permute.xlu0 %1685
        %1687 = vrot.lane.b32.xlu0 %v1656, 3
        %v1688 = vpop.permute.xlu0 %1687
        %1689 = vrot.lane.b32.xlu0 %v1661, 3
        %v1690 = vpop.permute.xlu0 %1689
        %1691 = vrot.lane.b32.xlu0 %v1666, 3
        %v1692 = vpop.permute.xlu0 %1691
        %1693 = vrot.lane.b32.xlu0 %v1652, 3
        %v1694 = vpop.permute.xlu0 %1693
        %1695 = vrot.lane.b32.xlu0 %v1657, 3
        %v1696 = vpop.permute.xlu0 %1695
        %1697 = vrot.lane.b32.xlu0 %v1662, 3
        %v1698 = vpop.permute.xlu0 %1697
        %1699 = vrot.lane.b32.xlu0 %v1667, 3
        %v1700 = vpop.permute.xlu0 %1699
        %1701 = vrot.lane.b32.xlu0 %v1653, 3
        %v1702 = vpop.permute.xlu0 %1701
        %1703 = vrot.lane.b32.xlu0 %v1658, 3
        %v1704 = vpop.permute.xlu0 %1703
        %1705 = vrot.lane.b32.xlu0 %v1663, 3
        %v1706 = vpop.permute.xlu0 %1705
        %1707 = vrot.lane.b32.xlu0 %v1668, 3
        %v1708 = vpop.permute.xlu0 %1707
        %vm1709 = vcmp.lt.s32.totalorder %v443, 3
        %v1710 = vsel %vm1709, %v1694, %v1702
        %v1711 = vsel %vm1709, %v1696, %v1704
        %v1712 = vsel %vm1709, %v1698, %v1706
        %v1713 = vsel %vm1709, %v1700, %v1708
        %v1714 = vsel %vm1709, %v1686, %v1694
        %v1715 = vsel %vm1709, %v1688, %v1696
        %v1716 = vsel %vm1709, %v1690, %v1698
        %v1717 = vsel %vm1709, %v1692, %v1700
        %v1718 = vsel %vm1709, %v1678, %v1686
        %v1719 = vsel %vm1709, %v1680, %v1688
        %v1720 = vsel %vm1709, %v1682, %v1690
        %v1721 = vsel %vm1709, %v1684, %v1692
        %v1722 = vsel %vm1709, %v1670, %v1678
        %v1723 = vsel %vm1709, %v1672, %v1680
        %v1724 = vsel %vm1709, %v1674, %v1682
        %v1725 = vsel %vm1709, %v1676, %v1684
        %v1726 = vsel %vm1709, %v1702, %v1670
        %v1727 = vsel %vm1709, %v1704, %v1672
        %v1728 = vsel %vm1709, %v1706, %v1674
        %v1729 = vsel %vm1709, %v1708, %v1676
        %v1730 = vsel %vm525, 1, 0
        %v1731 = vsel %vm526, 1, 0
        %v1732 = vsel %vm527, 1, 0
        %v1733 = vsel %vm528, 1, 0
        %v1734 = vsel %vm529, 1, 0
        %vm1735 = vcmp.eq.s32.totalorder %v1730, 1
        %vm1736 = vcmp.eq.s32.totalorder %v1731, 1
        %vm1737 = vcmp.eq.s32.totalorder %v1732, 1
        %vm1738 = vcmp.eq.s32.totalorder %v1733, 1
        %vm1739 = vcmp.eq.s32.totalorder %v1734, 1
        %v1740 = vsel %vm1735, %v1726, 0.0
        %v1741 = vsel %vm1736, %v1722, 0.0
        %v1742 = vsel %vm1737, %v1718, 0.0
        %v1743 = vsel %vm1738, %v1714, 0.0
        %v1744 = vsel %vm1739, %v1710, 0.0
        %v1745 = vsel %vm1735, %v1727, 0.0
        %v1746 = vsel %vm1736, %v1723, 0.0
        %v1747 = vsel %vm1737, %v1719, 0.0
        %v1748 = vsel %vm1738, %v1715, 0.0
        %v1749 = vsel %vm1739, %v1711, 0.0
        %v1750 = vsel %vm1735, %v1728, 0.0
        %v1751 = vsel %vm1736, %v1724, 0.0
        %v1752 = vsel %vm1737, %v1720, 0.0
        %v1753 = vsel %vm1738, %v1716, 0.0
        %v1754 = vsel %vm1739, %v1712, 0.0
        %v1755 = vsel %vm1735, %v1729, 0.0
        %v1756 = vsel %vm1736, %v1725, 0.0
        %v1757 = vsel %vm1737, %v1721, 0.0
        %v1758 = vsel %vm1738, %v1717, 0.0
        %v1759 = vsel %vm1739, %v1713, 0.0
        %v1760 = vpack.c.bf16 %v1745, %v1740
        %v1761 = vpack.c.bf16 %v1746, %v1741
        %v1762 = vpack.c.bf16 %v1747, %v1742
        %v1763 = vpack.c.bf16 %v1748, %v1743
        %v1764 = vpack.c.bf16 %v1749, %v1744
        %v1765 = vpack.c.bf16 %v1755, %v1750
        %v1766 = vpack.c.bf16 %v1756, %v1751
        %v1767 = vpack.c.bf16 %v1757, %v1752
        %v1768 = vpack.c.bf16 %v1758, %v1753
        %v1769 = vpack.c.bf16 %v1759, %v1754
        %1770 = vst [vmem:[#allocation2] sm:$0xff] %v1760
        %1771 = vst [vmem:[#allocation2 + $0x8] sm:$0xff] %v1761
        %1772 = vst [vmem:[#allocation2 + $0x10] sm:$0xff] %v1762
        %1773 = vst [vmem:[#allocation2 + $0x18] sm:$0xff] %v1763
        %1774 = vst [vmem:[#allocation2 + $0x20] sm:$0xff] %v1764
        %1775 = vst [vmem:[#allocation2 + $0x28] sm:$0xff] %v1765
        %1776 = vst [vmem:[#allocation2 + $0x30] sm:$0xff] %v1766
        %1777 = vst [vmem:[#allocation2 + $0x38] sm:$0xff] %v1767
        %1778 = vst [vmem:[#allocation2 + $0x40] sm:$0xff] %v1768
        %1779 = vst [vmem:[#allocation2 + $0x48] sm:$0xff] %v1769
        %v1780 = vpack.c.bf16 %v1654, %v1649
        %v1781 = vpack.c.bf16 %v1655, %v1650
        %v1782 = vpack.c.bf16 %v1656, %v1651
        %v1783 = vpack.c.bf16 %v1657, %v1652
        %v1784 = vpack.c.bf16 %v1658, %v1653
        %v1785 = vpack.c.bf16 %v1664, %v1659
        %v1786 = vpack.c.bf16 %v1665, %v1660
        %v1787 = vpack.c.bf16 %v1666, %v1661
        %v1788 = vpack.c.bf16 %v1667, %v1662
        %v1789 = vpack.c.bf16 %v1668, %v1663
        %1790 = vst [vmem:[#allocation2 + $0x50] sm:$0xff] %v1780
        %1791 = vst [vmem:[#allocation2 + $0x58] sm:$0xff] %v1781
        %1792 = vst [vmem:[#allocation2 + $0x60] sm:$0xff] %v1782
        %1793 = vst [vmem:[#allocation2 + $0x68] sm:$0xff] %v1783
        %1794 = vst [vmem:[#allocation2 + $0x70] sm:$0xff] %v1784
        %1795 = vst [vmem:[#allocation2 + $0x78] sm:$0xff] %v1785
        %1796 = vst [vmem:[#allocation2 + $0x80] sm:$0xff] %v1786
        %1797 = vst [vmem:[#allocation2 + $0x88] sm:$0xff] %v1787
        %1798 = vst [vmem:[#allocation2 + $0x90] sm:$0xff] %v1788
        %1799 = vst [vmem:[#allocation2 + $0x98] sm:$0xff] %v1789
        %1800 = vrot.lane.b32.xlu0 %v1649, 125
        %v1801 = vpop.permute.xlu0 %1800
        %1802 = vrot.lane.b32.xlu0 %v1654, 125
        %v1803 = vpop.permute.xlu0 %1802
        %1804 = vrot.lane.b32.xlu0 %v1659, 125
        %v1805 = vpop.permute.xlu0 %1804
        %1806 = vrot.lane.b32.xlu0 %v1664, 125
        %v1807 = vpop.permute.xlu0 %1806
        %1808 = vrot.lane.b32.xlu0 %v1650, 125
        %v1809 = vpop.permute.xlu0 %1808
        %1810 = vrot.lane.b32.xlu0 %v1655, 125
        %v1811 = vpop.permute.xlu0 %1810
        %1812 = vrot.lane.b32.xlu0 %v1660, 125
        %v1813 = vpop.permute.xlu0 %1812
        %1814 = vrot.lane.b32.xlu0 %v1665, 125
        %v1815 = vpop.permute.xlu0 %1814
        %1816 = vrot.lane.b32.xlu0 %v1651, 125
        %v1817 = vpop.permute.xlu0 %1816
        %1818 = vrot.lane.b32.xlu0 %v1656, 125
        %v1819 = vpop.permute.xlu0 %1818
        %1820 = vrot.lane.b32.xlu0 %v1661, 125
        %v1821 = vpop.permute.xlu0 %1820
        %1822 = vrot.lane.b32.xlu0 %v1666, 125
        %v1823 = vpop.permute.xlu0 %1822
        %1824 = vrot.lane.b32.xlu0 %v1652, 125
        %v1825 = vpop.permute.xlu0 %1824
        %1826 = vrot.lane.b32.xlu0 %v1657, 125
        %v1827 = vpop.permute.xlu0 %1826
        %1828 = vrot.lane.b32.xlu0 %v1662, 125
        %v1829 = vpop.permute.xlu0 %1828
        %1830 = vrot.lane.b32.xlu0 %v1667, 125
        %v1831 = vpop.permute.xlu0 %1830
        %1832 = vrot.lane.b32.xlu0 %v1653, 125
        %v1833 = vpop.permute.xlu0 %1832
        %1834 = vrot.lane.b32.xlu0 %v1658, 125
        %v1835 = vpop.permute.xlu0 %1834
        %1836 = vrot.lane.b32.xlu0 %v1663, 125
        %v1837 = vpop.permute.xlu0 %1836
        %1838 = vrot.lane.b32.xlu0 %v1668, 125
        %v1839 = vpop.permute.xlu0 %1838
        %vm1840 = vcmp.lt.s32.totalorder %v443, 125
        %v1841 = vsel %vm1840, %v1825, %v1833
        %v1842 = vsel %vm1840, %v1827, %v1835
        %v1843 = vsel %vm1840, %v1829, %v1837
        %v1844 = vsel %vm1840, %v1831, %v1839
        %v1845 = vsel %vm1840, %v1817, %v1825
        %v1846 = vsel %vm1840, %v1819, %v1827
        %v1847 = vsel %vm1840, %v1821, %v1829
        %v1848 = vsel %vm1840, %v1823, %v1831
        %v1849 = vsel %vm1840, %v1809, %v1817
        %v1850 = vsel %vm1840, %v1811, %v1819
        %v1851 = vsel %vm1840, %v1813, %v1821
        %v1852 = vsel %vm1840, %v1815, %v1823
        %v1853 = vsel %vm1840, %v1801, %v1809
        %v1854 = vsel %vm1840, %v1803, %v1811
        %v1855 = vsel %vm1840, %v1805, %v1813
        %v1856 = vsel %vm1840, %v1807, %v1815
        %v1857 = vsel %vm1840, %v1833, %v1801
        %v1858 = vsel %vm1840, %v1835, %v1803
        %v1859 = vsel %vm1840, %v1837, %v1805
        %v1860 = vsel %vm1840, %v1839, %v1807
        %v1861 = vsel %vm506, 1, 0
        %v1862 = vsel %vm507, 1, 0
        %v1863 = vsel %vm508, 1, 0
        %v1864 = vsel %vm509, 1, 0
        %v1865 = vsel %vm510, 1, 0
        %vm1866 = vcmp.eq.s32.totalorder %v1861, 1
        %vm1867 = vcmp.eq.s32.totalorder %v1862, 1
        %vm1868 = vcmp.eq.s32.totalorder %v1863, 1
        %vm1869 = vcmp.eq.s32.totalorder %v1864, 1
        %vm1870 = vcmp.eq.s32.totalorder %v1865, 1
        %v1871 = vsel %vm1866, %v1853, 0.0
        %v1872 = vsel %vm1867, %v1849, 0.0
        %v1873 = vsel %vm1868, %v1845, 0.0
        %v1874 = vsel %vm1869, %v1841, 0.0
        %v1875 = vsel %vm1870, %v1857, 0.0
        %v1876 = vsel %vm1866, %v1854, 0.0
        %v1877 = vsel %vm1867, %v1850, 0.0
        %v1878 = vsel %vm1868, %v1846, 0.0
        %v1879 = vsel %vm1869, %v1842, 0.0
        %v1880 = vsel %vm1870, %v1858, 0.0
        %v1881 = vsel %vm1866, %v1855, 0.0
        %v1882 = vsel %vm1867, %v1851, 0.0
        %v1883 = vsel %vm1868, %v1847, 0.0
        %v1884 = vsel %vm1869, %v1843, 0.0
        %v1885 = vsel %vm1870, %v1859, 0.0
        %v1886 = vsel %vm1866, %v1856, 0.0
        %v1887 = vsel %vm1867, %v1852, 0.0
        %v1888 = vsel %vm1868, %v1848, 0.0
        %v1889 = vsel %vm1869, %v1844, 0.0
        %v1890 = vsel %vm1870, %v1860, 0.0
        %v1891 = vpack.c.bf16 %v1876, %v1871
        %v1892 = vpack.c.bf16 %v1877, %v1872
        %v1893 = vpack.c.bf16 %v1878, %v1873
        %v1894 = vpack.c.bf16 %v1879, %v1874
        %v1895 = vpack.c.bf16 %v1880, %v1875
        %v1896 = vpack.c.bf16 %v1886, %v1881
        %v1897 = vpack.c.bf16 %v1887, %v1882
        %v1898 = vpack.c.bf16 %v1888, %v1883
        %v1899 = vpack.c.bf16 %v1889, %v1884
        %v1900 = vpack.c.bf16 %v1890, %v1885
        %1901 = vst [vmem:[#allocation2 + $0xa0] sm:$0xff] %v1891
        %1902 = vst [vmem:[#allocation2 + $0xa8] sm:$0xff] %v1892
        %1903 = vst [vmem:[#allocation2 + $0xb0] sm:$0xff] %v1893
        %1904 = vst [vmem:[#allocation2 + $0xb8] sm:$0xff] %v1894
        %1905 = vst [vmem:[#allocation2 + $0xc0] sm:$0xff] %v1895
        %1906 = vst [vmem:[#allocation2 + $0xc8] sm:$0xff] %v1896
        %1907 = vst [vmem:[#allocation2 + $0xd0] sm:$0xff] %v1897
        %1908 = vst [vmem:[#allocation2 + $0xd8] sm:$0xff] %v1898
        %1909 = vst [vmem:[#allocation2 + $0xe0] sm:$0xff] %v1899
        %1910 = vst [vmem:[#allocation2 + $0xe8] sm:$0xff] %v1900
        %s1911 = scalar_lea.vmem [#allocation3], 32
        %v1912 = vld [vmem:[%s1911] sm:$0xf]
        %v1913 = vld [vmem:[%s1911 + $0x4] sm:$0xf]
        %v1914 = vld [vmem:[%s1911 + $0x8] sm:$0xf]
        %v1915 = vld [vmem:[%s1911 + $0xc] sm:$0xf]
        %v1916 = vld [vmem:[#allocation2] sm:$0xff]
        %v1917 = vld [vmem:[#allocation2 + $0x8] sm:$0xff]
        %v1918 = vld [vmem:[#allocation2 + $0x10] sm:$0xff]
        %v1919 = vld [vmem:[#allocation2 + $0x18] sm:$0xff]
        %v1920 = vld [vmem:[#allocation2 + $0x20] sm:$0xff]
        %v1921 = vld [vmem:[#allocation2 + $0x28] sm:$0xff]
        %v1922 = vld [vmem:[#allocation2 + $0x30] sm:$0xff]
        %v1923 = vld [vmem:[#allocation2 + $0x38] sm:$0xff]
        %v1924 = vld [vmem:[#allocation2 + $0x40] sm:$0xff]
        %v1925 = vld [vmem:[#allocation2 + $0x48] sm:$0xff]
        %v1926 = vld [vmem:[#allocation2 + $0x50] sm:$0xff]
        %v1927 = vld [vmem:[#allocation2 + $0x58] sm:$0xff]
        %v1928 = vld [vmem:[#allocation2 + $0x60] sm:$0xff]
        %v1929 = vld [vmem:[#allocation2 + $0x68] sm:$0xff]
        %v1930 = vld [vmem:[#allocation2 + $0x70] sm:$0xff]
        %v1931 = vld [vmem:[#allocation2 + $0x78] sm:$0xff]
        %v1932 = vld [vmem:[#allocation2 + $0x80] sm:$0xff]
        %v1933 = vld [vmem:[#allocation2 + $0x88] sm:$0xff]
        %v1934 = vld [vmem:[#allocation2 + $0x90] sm:$0xff]
        %v1935 = vld [vmem:[#allocation2 + $0x98] sm:$0xff]
        %v1936 = vld [vmem:[#allocation2 + $0xa0] sm:$0xff]
        %v1937 = vld [vmem:[#allocation2 + $0xa8] sm:$0xff]
        %v1938 = vld [vmem:[#allocation2 + $0xb0] sm:$0xff]
        %v1939 = vld [vmem:[#allocation2 + $0xb8] sm:$0xff]
        %v1940 = vld [vmem:[#allocation2 + $0xc0] sm:$0xff]
        %v1941 = vld [vmem:[#allocation2 + $0xc8] sm:$0xff]
        %v1942 = vld [vmem:[#allocation2 + $0xd0] sm:$0xff]
        %v1943 = vld [vmem:[#allocation2 + $0xd8] sm:$0xff]
        %v1944 = vld [vmem:[#allocation2 + $0xe0] sm:$0xff]
        %v1945 = vld [vmem:[#allocation2 + $0xe8] sm:$0xff]
        %s1946 = scalar_lea.vmem %s1, 64
        %v1947 = vld [vmem:[%s1946] sm:$0xff]
        %v1948 = vld [vmem:[%s1946 + $0x8] sm:$0xff]
        %v1949 = vld [vmem:[%s1946 + $0x10] sm:$0xff]
        %v1950 = vld [vmem:[%s1946 + $0x18] sm:$0xff]
        %1952 = vset.pattern.permute.xlu0 0
        %1953 = vperm.xlu0 %1952, %v1947
        %v1954 = vpop.permute.xlu0 %1953
        %1957 = vset.pattern.permute.xlu0 0
        %1958 = vperm.xlu0 %1957, %v1948
        %v1959 = vpop.permute.xlu0 %1958
        %1962 = vset.pattern.permute.xlu0 0
        %1963 = vperm.xlu0 %1962, %v1949
        %v1964 = vpop.permute.xlu0 %1963
        %1967 = vset.pattern.permute.xlu0 0
        %1968 = vperm.xlu0 %1967, %v1950
        %v1969 = vpop.permute.xlu0 %1968
        %v1975 = vunpack.c.l.b16 %v1912
        %v1976 = vunpack.c.l.b16 %v1913
        %v1977 = vunpack.c.l.b16 %v1914
        %v1978 = vunpack.c.l.b16 %v1915
        %v1979 = vpack.c.b16 %v1976, %v1975
        %v1980 = vpack.c.b16 %v1978, %v1977
        %v1982 = vsel %vm956, %v1979, 0
        %v1985 = vsel %vm956, %v1980, 0
        %1987 = vmatprep.subr.bf16.mxu0 %v1917
        %1988 = vmatpush1.bf16.msra.mxu0 %v1916
        %1989 = vmatprep.subr.bf16.mxu0 %v1922
        %1990 = vmatpush1.bf16.msra.mxu0 %v1921
        %1991 = vmatprep.subr.bf16.mxu0 %v1927
        %1992 = vmatpush1.bf16.msra.mxu0 %v1926
        %1993 = vmatprep.subr.bf16.mxu0 %v1932
        %1994 = vmatpush1.bf16.msra.mxu0 %v1931
        %1995 = vmatprep.subr.bf16.mxu0 %v1937
        %1996 = vmatpush1.bf16.msra.mxu0 %v1936
        %1997 = vmatprep.subr.bf16.mxu0 %v1942
        %1998 = vmatpush1.bf16.msra.mxu0 %v1941
        %1999 = vmatprep.subr.bf16.mxu0 0
        %2000 = vmatpush1.bf16.msra.mxu0 0
        %2001 = vmatprep.subr.bf16.mxu0 0
        %2002 = vmatpush1.bf16.msra.mxu0 0
        %2003 = vmatprep.subr.bf16.mxu0 0
        %2004 = vmatpush1.bf16.msra.mxu0 0
        %2005 = vmatprep.subr.bf16.mxu0 0
        %2006 = vmatpush1.bf16.msra.mxu0 0
        %2007 = vmatprep.subr.bf16.mxu0 0
        %2008 = vmatpush1.bf16.msra.mxu0 0
        %2009 = vmatprep.subr.bf16.mxu0 0
        %2010 = vmatpush1.bf16.msra.mxu0 0
        %2011 = vmatprep.subr.bf16.mxu0 0
        %2012 = vmatpush1.bf16.msra.mxu0 0
        %2013 = vmatprep.subr.bf16.mxu0 0
        %2014 = vmatpush1.bf16.msra.mxu0 0
        %2015 = vmatprep.subr.bf16.mxu0 0
        %2016 = vmatpush1.bf16.msra.mxu0 0
        %2017 = vmatprep.subr.bf16.mxu0 0
        %2018 = vmatpush1.bf16.msra.mxu0 0
        %2019 = vmatprep.mubr.bf16.mxu0 0
        %2020 = vmatmul.mubr.bf16.gmra.mrb[0].mxu0 %v1982
        %v2021 = vpop.f32.mrb[0].mxu0
        %v2022 = vadd.f32 %v1954, %v2021
        %v2023 = vpop.f32.mrb[0].mxu0
        %v2024 = vadd.f32 %v1954, %v2023
        %v2025 = vpop.f32.mrb[0].mxu0
        %v2026 = vadd.f32 %v1959, %v2025
        %v2027 = vpop.f32.mrb[0].mxu0
        %v2028 = vadd.f32 %v1959, %v2027
        %2029 = vmatprep.mubr.bf16.mxu0 0
        %2030 = vmatmul.mubr.bf16.gmra.mrb[0].mxu0 %v1985
        %v2031 = vpop.f32.mrb[0].mxu0
        %v2032 = vadd.f32 %v1964, %v2031
        %v2033 = vpop.f32.mrb[0].mxu0
        %v2034 = vadd.f32 %v1964, %v2033
        %v2035 = vpop.f32.mrb[0].mxu0
        %v2036 = vadd.f32 %v1969, %v2035
        %v2037 = vpop.f32.mrb[0].mxu0
        %v2038 = vadd.f32 %v1969, %v2037
        %2039 = vdwg.mxu0
        %2040 = vmatprep.subr.bf16.mxu0 %v1919
        %2041 = vmatpush1.bf16.msra.mxu0 %v1918
        %2042 = vmatprep.subr.bf16.mxu0 %v1924
        %2043 = vmatpush1.bf16.msra.mxu0 %v1923
        %2044 = vmatprep.subr.bf16.mxu0 %v1929
        %2045 = vmatpush1.bf16.msra.mxu0 %v1928
        %2046 = vmatprep.subr.bf16.mxu0 %v1934
        %2047 = vmatpush1.bf16.msra.mxu0 %v1933
        %2048 = vmatprep.subr.bf16.mxu0 %v1939
        %2049 = vmatpush1.bf16.msra.mxu0 %v1938
        %2050 = vmatprep.subr.bf16.mxu0 %v1944
        %2051 = vmatpush1.bf16.msra.mxu0 %v1943
        %2052 = vmatprep.subr.bf16.mxu0 0
        %2053 = vmatpush1.bf16.msra.mxu0 0
        %2054 = vmatprep.subr.bf16.mxu0 0
        %2055 = vmatpush1.bf16.msra.mxu0 0
        %2056 = vmatprep.subr.bf16.mxu0 0
        %2057 = vmatpush1.bf16.msra.mxu0 0
        %2058 = vmatprep.subr.bf16.mxu0 0
        %2059 = vmatpush1.bf16.msra.mxu0 0
        %2060 = vmatprep.subr.bf16.mxu0 0
        %2061 = vmatpush1.bf16.msra.mxu0 0
        %2062 = vmatprep.subr.bf16.mxu0 0
        %2063 = vmatpush1.bf16.msra.mxu0 0
        %2064 = vmatprep.subr.bf16.mxu0 0
        %2065 = vmatpush1.bf16.msra.mxu0 0
        %2066 = vmatprep.subr.bf16.mxu0 0
        %2067 = vmatpush1.bf16.msra.mxu0 0
        %2068 = vmatprep.subr.bf16.mxu0 0
        %2069 = vmatpush1.bf16.msra.mxu0 0
        %2070 = vmatprep.subr.bf16.mxu0 0
        %2071 = vmatpush1.bf16.msra.mxu0 0
        %2072 = vmatprep.mubr.bf16.mxu0 0
        %2073 = vmatmul.mubr.bf16.gmra.mrb[0].mxu0 %v1982
        %v2074 = vpop.f32.mrb[0].mxu0
        %v2075 = vadd.f32 %v1954, %v2074
        %v2076 = vpop.f32.mrb[0].mxu0
        %v2077 = vadd.f32 %v1954, %v2076
        %v2078 = vpop.f32.mrb[0].mxu0
        %v2079 = vadd.f32 %v1959, %v2078
        %v2080 = vpop.f32.mrb[0].mxu0
        %v2081 = vadd.f32 %v1959, %v2080
        %2082 = vmatprep.mubr.bf16.mxu0 0
        %2083 = vmatmul.mubr.bf16.gmra.mrb[0].mxu0 %v1985
        %v2084 = vpop.f32.mrb[0].mxu0
        %v2085 = vadd.f32 %v1964, %v2084
        %v2086 = vpop.f32.mrb[0].mxu0
        %v2087 = vadd.f32 %v1964, %v2086
        %v2088 = vpop.f32.mrb[0].mxu0
        %v2089 = vadd.f32 %v1969, %v2088
        %v2090 = vpop.f32.mrb[0].mxu0
        %v2091 = vadd.f32 %v1969, %v2090
        %2092 = vdwg.mxu0
        %2093 = vmatprep.subr.bf16.mxu0 0
        %2094 = vmatpush1.bf16.msra.mxu0 %v1920
        %2095 = vmatprep.subr.bf16.mxu0 0
        %2096 = vmatpush1.bf16.msra.mxu0 %v1925
        %2097 = vmatprep.subr.bf16.mxu0 0
        %2098 = vmatpush1.bf16.msra.mxu0 %v1930
        %2099 = vmatprep.subr.bf16.mxu0 0
        %2100 = vmatpush1.bf16.msra.mxu0 %v1935
        %2101 = vmatprep.subr.bf16.mxu0 0
        %2102 = vmatpush1.bf16.msra.mxu0 %v1940
        %2103 = vmatprep.subr.bf16.mxu0 0
        %2104 = vmatpush1.bf16.msra.mxu0 %v1945
        %2105 = vmatprep.subr.bf16.mxu0 0
        %2106 = vmatpush1.bf16.msra.mxu0 0
        %2107 = vmatprep.subr.bf16.mxu0 0
        %2108 = vmatpush1.bf16.msra.mxu0 0
        %2109 = vmatprep.subr.bf16.mxu0 0
        %2110 = vmatpush1.bf16.msra.mxu0 0
        %2111 = vmatprep.subr.bf16.mxu0 0
        %2112 = vmatpush1.bf16.msra.mxu0 0
        %2113 = vmatprep.subr.bf16.mxu0 0
        %2114 = vmatpush1.bf16.msra.mxu0 0
        %2115 = vmatprep.subr.bf16.mxu0 0
        %2116 = vmatpush1.bf16.msra.mxu0 0
        %2117 = vmatprep.subr.bf16.mxu0 0
        %2118 = vmatpush1.bf16.msra.mxu0 0
        %2119 = vmatprep.subr.bf16.mxu0 0
        %2120 = vmatpush1.bf16.msra.mxu0 0
        %2121 = vmatprep.subr.bf16.mxu0 0
        %2122 = vmatpush1.bf16.msra.mxu0 0
        %2123 = vmatprep.subr.bf16.mxu0 0
        %2124 = vmatpush1.bf16.msra.mxu0 0
        %2125 = vmatprep.mubr.bf16.mxu0 0
        %2126 = vmatmul.mubr.bf16.gmra.mrb[0].mxu0 %v1982
        %v2127 = vpop.f32.mrb[0].mxu0
        %v2128 = vadd.f32 %v1954, %v2127
        %v2129 = vpop.f32.mrb[0].mxu0
        %v2130 = vpop.f32.mrb[0].mxu0
        %v2131 = vadd.f32 %v1959, %v2130
        %v2132 = vpop.f32.mrb[0].mxu0
        %2133 = vmatprep.mubr.bf16.mxu0 0
        %2134 = vmatmul.mubr.bf16.gmra.mrb[0].mxu0 %v1985
        %v2135 = vpop.f32.mrb[0].mxu0
        %v2136 = vadd.f32 %v1964, %v2135
        %v2137 = vpop.f32.mrb[0].mxu0
        %v2138 = vpop.f32.mrb[0].mxu0
        %v2139 = vadd.f32 %v1969, %v2138
        %v2140 = vpop.f32.mrb[0].mxu0
        %2141 = vdwg.mxu0
        %v2142 = vmul.f32 %v2022, 0.01
        %v2143 = vmul.f32 %v2024, 0.01
        %v2144 = vmul.f32 %v2075, 0.01
        %v2145 = vmul.f32 %v2077, 0.01
        %v2146 = vmul.f32 %v2128, 0.01
        %v2147 = vmul.f32 %v2026, 0.01
        %v2148 = vmul.f32 %v2028, 0.01
        %v2149 = vmul.f32 %v2079, 0.01
        %v2150 = vmul.f32 %v2081, 0.01
        %v2151 = vmul.f32 %v2131, 0.01
        %v2152 = vmul.f32 %v2032, 0.01
        %v2153 = vmul.f32 %v2034, 0.01
        %v2154 = vmul.f32 %v2085, 0.01
        %v2155 = vmul.f32 %v2087, 0.01
        %v2156 = vmul.f32 %v2136, 0.01
        %v2157 = vmul.f32 %v2036, 0.01
        %v2158 = vmul.f32 %v2038, 0.01
        %v2159 = vmul.f32 %v2089, 0.01
        %v2160 = vmul.f32 %v2091, 0.01
        %v2161 = vmul.f32 %v2139, 0.01
        %v2162 = vmax.f32 %v2022, %v2142
        %v2163 = vmax.f32 %v2024, %v2143
        %v2164 = vmax.f32 %v2075, %v2144
        %v2165 = vmax.f32 %v2077, %v2145
        %v2166 = vmax.f32 %v2128, %v2146
        %v2167 = vmax.f32 %v2026, %v2147
        %v2168 = vmax.f32 %v2028, %v2148
        %v2169 = vmax.f32 %v2079, %v2149
        %v2170 = vmax.f32 %v2081, %v2150
        %v2171 = vmax.f32 %v2131, %v2151
        %v2172 = vmax.f32 %v2032, %v2152
        %v2173 = vmax.f32 %v2034, %v2153
        %v2174 = vmax.f32 %v2085, %v2154
        %v2175 = vmax.f32 %v2087, %v2155
        %v2176 = vmax.f32 %v2136, %v2156
        %v2177 = vmax.f32 %v2036, %v2157
        %v2178 = vmax.f32 %v2038, %v2158
        %v2179 = vmax.f32 %v2089, %v2159
        %v2180 = vmax.f32 %v2091, %v2160
        %v2181 = vmax.f32 %v2139, %v2161
        %2182 = vrot.lane.b32.xlu0 %v2162, 1
        %v2183 = vpop.permute.xlu0 %2182
        %2184 = vrot.lane.b32.xlu0 %v2167, 1
        %v2185 = vpop.permute.xlu0 %2184
        %2186 = vrot.lane.b32.xlu0 %v2172, 1
        %v2187 = vpop.permute.xlu0 %2186
        %2188 = vrot.lane.b32.xlu0 %v2177, 1
        %v2189 = vpop.permute.xlu0 %2188
        %2190 = vrot.lane.b32.xlu0 %v2163, 1
        %v2191 = vpop.permute.xlu0 %2190
        %2192 = vrot.lane.b32.xlu0 %v2168, 1
        %v2193 = vpop.permute.xlu0 %2192
        %2194 = vrot.lane.b32.xlu0 %v2173, 1
        %v2195 = vpop.permute.xlu0 %2194
        %2196 = vrot.lane.b32.xlu0 %v2178, 1
        %v2197 = vpop.permute.xlu0 %2196
        %2198 = vrot.lane.b32.xlu0 %v2164, 1
        %v2199 = vpop.permute.xlu0 %2198
        %2200 = vrot.lane.b32.xlu0 %v2169, 1
        %v2201 = vpop.permute.xlu0 %2200
        %2202 = vrot.lane.b32.xlu0 %v2174, 1
        %v2203 = vpop.permute.xlu0 %2202
        %2204 = vrot.lane.b32.xlu0 %v2179, 1
        %v2205 = vpop.permute.xlu0 %2204
        %2206 = vrot.lane.b32.xlu0 %v2165, 1
        %v2207 = vpop.permute.xlu0 %2206
        %2208 = vrot.lane.b32.xlu0 %v2170, 1
        %v2209 = vpop.permute.xlu0 %2208
        %2210 = vrot.lane.b32.xlu0 %v2175, 1
        %v2211 = vpop.permute.xlu0 %2210
        %2212 = vrot.lane.b32.xlu0 %v2180, 1
        %v2213 = vpop.permute.xlu0 %2212
        %2214 = vrot.lane.b32.xlu0 %v2166, 1
        %v2215 = vpop.permute.xlu0 %2214
        %2216 = vrot.lane.b32.xlu0 %v2171, 1
        %v2217 = vpop.permute.xlu0 %2216
        %2218 = vrot.lane.b32.xlu0 %v2176, 1
        %v2219 = vpop.permute.xlu0 %2218
        %2220 = vrot.lane.b32.xlu0 %v2181, 1
        %v2221 = vpop.permute.xlu0 %2220
        %v2222 = vsel %vm686, %v2207, %v2215
        %v2223 = vsel %vm686, %v2209, %v2217
        %v2224 = vsel %vm686, %v2211, %v2219
        %v2225 = vsel %vm686, %v2213, %v2221
        %v2226 = vsel %vm686, %v2199, %v2207
        %v2227 = vsel %vm686, %v2201, %v2209
        %v2228 = vsel %vm686, %v2203, %v2211
        %v2229 = vsel %vm686, %v2205, %v2213
        %v2230 = vsel %vm686, %v2191, %v2199
        %v2231 = vsel %vm686, %v2193, %v2201
        %v2232 = vsel %vm686, %v2195, %v2203
        %v2233 = vsel %vm686, %v2197, %v2205
        %v2234 = vsel %vm686, %v2183, %v2191
        %v2235 = vsel %vm686, %v2185, %v2193
        %v2236 = vsel %vm686, %v2187, %v2195
        %v2237 = vsel %vm686, %v2189, %v2197
        %v2238 = vsel %vm686, %v2215, %v2183
        %v2239 = vsel %vm686, %v2217, %v2185
        %v2240 = vsel %vm686, %v2219, %v2187
        %v2241 = vsel %vm686, %v2221, %v2189
        %v2242 = vsel %vm712, %v2238, 0.0
        %v2243 = vsel %vm713, %v2234, 0.0
        %v2244 = vsel %vm714, %v2230, 0.0
        %v2245 = vsel %vm715, %v2226, 0.0
        %v2246 = vsel %vm716, %v2222, 0.0
        %v2247 = vsel %vm712, %v2239, 0.0
        %v2248 = vsel %vm713, %v2235, 0.0
        %v2249 = vsel %vm714, %v2231, 0.0
        %v2250 = vsel %vm715, %v2227, 0.0
        %v2251 = vsel %vm716, %v2223, 0.0
        %v2252 = vsel %vm712, %v2240, 0.0
        %v2253 = vsel %vm713, %v2236, 0.0
        %v2254 = vsel %vm714, %v2232, 0.0
        %v2255 = vsel %vm715, %v2228, 0.0
        %v2256 = vsel %vm716, %v2224, 0.0
        %v2257 = vsel %vm712, %v2241, 0.0
        %v2258 = vsel %vm713, %v2237, 0.0
        %v2259 = vsel %vm714, %v2233, 0.0
        %v2260 = vsel %vm715, %v2229, 0.0
        %v2261 = vsel %vm716, %v2225, 0.0
        %v2262 = vpack.c.bf16 %v2247, %v2242
        %v2263 = vpack.c.bf16 %v2248, %v2243
        %v2264 = vpack.c.bf16 %v2249, %v2244
        %v2265 = vpack.c.bf16 %v2250, %v2245
        %v2266 = vpack.c.bf16 %v2251, %v2246
        %v2267 = vpack.c.bf16 %v2257, %v2252
        %v2268 = vpack.c.bf16 %v2258, %v2253
        %v2269 = vpack.c.bf16 %v2259, %v2254
        %v2270 = vpack.c.bf16 %v2260, %v2255
        %v2271 = vpack.c.bf16 %v2261, %v2256
        %2272 = vst [vmem:[#allocation2] sm:$0xff] %v2262
        %2273 = vst [vmem:[#allocation2 + $0x8] sm:$0xff] %v2263
        %2274 = vst [vmem:[#allocation2 + $0x10] sm:$0xff] %v2264
        %2275 = vst [vmem:[#allocation2 + $0x18] sm:$0xff] %v2265
        %2276 = vst [vmem:[#allocation2 + $0x20] sm:$0xff] %v2266
        %2277 = vst [vmem:[#allocation2 + $0x28] sm:$0xff] %v2267
        %2278 = vst [vmem:[#allocation2 + $0x30] sm:$0xff] %v2268
        %2279 = vst [vmem:[#allocation2 + $0x38] sm:$0xff] %v2269
        %2280 = vst [vmem:[#allocation2 + $0x40] sm:$0xff] %v2270
        %2281 = vst [vmem:[#allocation2 + $0x48] sm:$0xff] %v2271
        %v2282 = vpack.c.bf16 %v2167, %v2162
        %v2283 = vpack.c.bf16 %v2168, %v2163
        %v2284 = vpack.c.bf16 %v2169, %v2164
        %v2285 = vpack.c.bf16 %v2170, %v2165
        %v2286 = vpack.c.bf16 %v2171, %v2166
        %v2287 = vpack.c.bf16 %v2177, %v2172
        %v2288 = vpack.c.bf16 %v2178, %v2173
        %v2289 = vpack.c.bf16 %v2179, %v2174
        %v2290 = vpack.c.bf16 %v2180, %v2175
        %v2291 = vpack.c.bf16 %v2181, %v2176
        %2292 = vst [vmem:[#allocation2 + $0x50] sm:$0xff] %v2282
        %2293 = vst [vmem:[#allocation2 + $0x58] sm:$0xff] %v2283
        %2294 = vst [vmem:[#allocation2 + $0x60] sm:$0xff] %v2284
        %2295 = vst [vmem:[#allocation2 + $0x68] sm:$0xff] %v2285
        %2296 = vst [vmem:[#allocation2 + $0x70] sm:$0xff] %v2286
        %2297 = vst [vmem:[#allocation2 + $0x78] sm:$0xff] %v2287
        %2298 = vst [vmem:[#allocation2 + $0x80] sm:$0xff] %v2288
        %2299 = vst [vmem:[#allocation2 + $0x88] sm:$0xff] %v2289
        %2300 = vst [vmem:[#allocation2 + $0x90] sm:$0xff] %v2290
        %2301 = vst [vmem:[#allocation2 + $0x98] sm:$0xff] %v2291
        %2302 = vrot.lane.b32.xlu0 %v2162, 127
        %v2303 = vpop.permute.xlu0 %2302
        %2304 = vrot.lane.b32.xlu0 %v2167, 127
        %v2305 = vpop.permute.xlu0 %2304
        %2306 = vrot.lane.b32.xlu0 %v2172, 127
        %v2307 = vpop.permute.xlu0 %2306
        %2308 = vrot.lane.b32.xlu0 %v2177, 127
        %v2309 = vpop.permute.xlu0 %2308
        %2310 = vrot.lane.b32.xlu0 %v2163, 127
        %v2311 = vpop.permute.xlu0 %2310
        %2312 = vrot.lane.b32.xlu0 %v2168, 127
        %v2313 = vpop.permute.xlu0 %2312
        %2314 = vrot.lane.b32.xlu0 %v2173, 127
        %v2315 = vpop.permute.xlu0 %2314
        %2316 = vrot.lane.b32.xlu0 %v2178, 127
        %v2317 = vpop.permute.xlu0 %2316
        %2318 = vrot.lane.b32.xlu0 %v2164, 127
        %v2319 = vpop.permute.xlu0 %2318
        %2320 = vrot.lane.b32.xlu0 %v2169, 127
        %v2321 = vpop.permute.xlu0 %2320
        %2322 = vrot.lane.b32.xlu0 %v2174, 127
        %v2323 = vpop.permute.xlu0 %2322
        %2324 = vrot.lane.b32.xlu0 %v2179, 127
        %v2325 = vpop.permute.xlu0 %2324
        %2326 = vrot.lane.b32.xlu0 %v2165, 127
        %v2327 = vpop.permute.xlu0 %2326
        %2328 = vrot.lane.b32.xlu0 %v2170, 127
        %v2329 = vpop.permute.xlu0 %2328
        %2330 = vrot.lane.b32.xlu0 %v2175, 127
        %v2331 = vpop.permute.xlu0 %2330
        %2332 = vrot.lane.b32.xlu0 %v2180, 127
        %v2333 = vpop.permute.xlu0 %2332
        %2334 = vrot.lane.b32.xlu0 %v2166, 127
        %v2335 = vpop.permute.xlu0 %2334
        %2336 = vrot.lane.b32.xlu0 %v2171, 127
        %v2337 = vpop.permute.xlu0 %2336
        %2338 = vrot.lane.b32.xlu0 %v2176, 127
        %v2339 = vpop.permute.xlu0 %2338
        %2340 = vrot.lane.b32.xlu0 %v2181, 127
        %v2341 = vpop.permute.xlu0 %2340
        %v2342 = vsel %vm817, %v2327, %v2335
        %v2343 = vsel %vm817, %v2329, %v2337
        %v2344 = vsel %vm817, %v2331, %v2339
        %v2345 = vsel %vm817, %v2333, %v2341
        %v2346 = vsel %vm817, %v2319, %v2327
        %v2347 = vsel %vm817, %v2321, %v2329
        %v2348 = vsel %vm817, %v2323, %v2331
        %v2349 = vsel %vm817, %v2325, %v2333
        %v2350 = vsel %vm817, %v2311, %v2319
        %v2351 = vsel %vm817, %v2313, %v2321
        %v2352 = vsel %vm817, %v2315, %v2323
        %v2353 = vsel %vm817, %v2317, %v2325
        %v2354 = vsel %vm817, %v2303, %v2311
        %v2355 = vsel %vm817, %v2305, %v2313
        %v2356 = vsel %vm817, %v2307, %v2315
        %v2357 = vsel %vm817, %v2309, %v2317
        %v2358 = vsel %vm817, %v2335, %v2303
        %v2359 = vsel %vm817, %v2337, %v2305
        %v2360 = vsel %vm817, %v2339, %v2307
        %v2361 = vsel %vm817, %v2341, %v2309
        %v2362 = vsel %vm843, %v2354, 0.0
        %v2363 = vsel %vm844, %v2350, 0.0
        %v2364 = vsel %vm845, %v2346, 0.0
        %v2365 = vsel %vm846, %v2342, 0.0
        %v2366 = vsel %vm847, %v2358, 0.0
        %v2367 = vsel %vm843, %v2355, 0.0
        %v2368 = vsel %vm844, %v2351, 0.0
        %v2369 = vsel %vm845, %v2347, 0.0
        %v2370 = vsel %vm846, %v2343, 0.0
        %v2371 = vsel %vm847, %v2359, 0.0
        %v2372 = vsel %vm843, %v2356, 0.0
        %v2373 = vsel %vm844, %v2352, 0.0
        %v2374 = vsel %vm845, %v2348, 0.0
        %v2375 = vsel %vm846, %v2344, 0.0
        %v2376 = vsel %vm847, %v2360, 0.0
        %v2377 = vsel %vm843, %v2357, 0.0
        %v2378 = vsel %vm844, %v2353, 0.0
        %v2379 = vsel %vm845, %v2349, 0.0
        %v2380 = vsel %vm846, %v2345, 0.0
        %v2381 = vsel %vm847, %v2361, 0.0
        %v2382 = vpack.c.bf16 %v2367, %v2362
        %v2383 = vpack.c.bf16 %v2368, %v2363
        %v2384 = vpack.c.bf16 %v2369, %v2364
        %v2385 = vpack.c.bf16 %v2370, %v2365
        %v2386 = vpack.c.bf16 %v2371, %v2366
        %v2387 = vpack.c.bf16 %v2377, %v2372
        %v2388 = vpack.c.bf16 %v2378, %v2373
        %v2389 = vpack.c.bf16 %v2379, %v2374
        %v2390 = vpack.c.bf16 %v2380, %v2375
        %v2391 = vpack.c.bf16 %v2381, %v2376
        %2392 = vst [vmem:[#allocation2 + $0xa0] sm:$0xff] %v2382
        %2393 = vst [vmem:[#allocation2 + $0xa8] sm:$0xff] %v2383
        %2394 = vst [vmem:[#allocation2 + $0xb0] sm:$0xff] %v2384
        %2395 = vst [vmem:[#allocation2 + $0xb8] sm:$0xff] %v2385
        %2396 = vst [vmem:[#allocation2 + $0xc0] sm:$0xff] %v2386
        %2397 = vst [vmem:[#allocation2 + $0xc8] sm:$0xff] %v2387
        %2398 = vst [vmem:[#allocation2 + $0xd0] sm:$0xff] %v2388
        %2399 = vst [vmem:[#allocation2 + $0xd8] sm:$0xff] %v2389
        %2400 = vst [vmem:[#allocation2 + $0xe0] sm:$0xff] %v2390
        %2401 = vst [vmem:[#allocation2 + $0xe8] sm:$0xff] %v2391
        %s2402 = scalar_lea.vmem [#allocation3], 48
        %v2403 = vld [vmem:[%s2402] sm:$0xf]
        %v2404 = vld [vmem:[%s2402 + $0x4] sm:$0xf]
        %v2405 = vld [vmem:[%s2402 + $0x8] sm:$0xf]
        %v2406 = vld [vmem:[%s2402 + $0xc] sm:$0xf]
        %v2407 = vld [vmem:[#allocation2] sm:$0xff]
        %v2408 = vld [vmem:[#allocation2 + $0x8] sm:$0xff]
        %v2409 = vld [vmem:[#allocation2 + $0x10] sm:$0xff]
        %v2410 = vld [vmem:[#allocation2 + $0x18] sm:$0xff]
        %v2411 = vld [vmem:[#allocation2 + $0x20] sm:$0xff]
        %v2412 = vld [vmem:[#allocation2 + $0x28] sm:$0xff]
        %v2413 = vld [vmem:[#allocation2 + $0x30] sm:$0xff]
        %v2414 = vld [vmem:[#allocation2 + $0x38] sm:$0xff]
        %v2415 = vld [vmem:[#allocation2 + $0x40] sm:$0xff]
        %v2416 = vld [vmem:[#allocation2 + $0x48] sm:$0xff]
        %v2417 = vld [vmem:[#allocation2 + $0x50] sm:$0xff]
        %v2418 = vld [vmem:[#allocation2 + $0x58] sm:$0xff]
        %v2419 = vld [vmem:[#allocation2 + $0x60] sm:$0xff]
        %v2420 = vld [vmem:[#allocation2 + $0x68] sm:$0xff]
        %v2421 = vld [vmem:[#allocation2 + $0x70] sm:$0xff]
        %v2422 = vld [vmem:[#allocation2 + $0x78] sm:$0xff]
        %v2423 = vld [vmem:[#allocation2 + $0x80] sm:$0xff]
        %v2424 = vld [vmem:[#allocation2 + $0x88] sm:$0xff]
        %v2425 = vld [vmem:[#allocation2 + $0x90] sm:$0xff]
        %v2426 = vld [vmem:[#allocation2 + $0x98] sm:$0xff]
        %v2427 = vld [vmem:[#allocation2 + $0xa0] sm:$0xff]
        %v2428 = vld [vmem:[#allocation2 + $0xa8] sm:$0xff]
        %v2429 = vld [vmem:[#allocation2 + $0xb0] sm:$0xff]
        %v2430 = vld [vmem:[#allocation2 + $0xb8] sm:$0xff]
        %v2431 = vld [vmem:[#allocation2 + $0xc0] sm:$0xff]
        %v2432 = vld [vmem:[#allocation2 + $0xc8] sm:$0xff]
        %v2433 = vld [vmem:[#allocation2 + $0xd0] sm:$0xff]
        %v2434 = vld [vmem:[#allocation2 + $0xd8] sm:$0xff]
        %v2435 = vld [vmem:[#allocation2 + $0xe0] sm:$0xff]
        %v2436 = vld [vmem:[#allocation2 + $0xe8] sm:$0xff]
        %s2437 = scalar_lea.vmem %s1, 96
        %v2438 = vld [vmem:[%s2437] sm:$0xff]
        %v2439 = vld [vmem:[%s2437 + $0x8] sm:$0xff]
        %v2440 = vld [vmem:[%s2437 + $0x10] sm:$0xff]
        %v2441 = vld [vmem:[%s2437 + $0x18] sm:$0xff]
        %2443 = vset.pattern.permute.xlu0 0
        %2444 = vperm.xlu0 %2443, %v2438
        %v2445 = vpop.permute.xlu0 %2444
        %2448 = vset.pattern.permute.xlu0 0
        %2449 = vperm.xlu0 %2448, %v2439
        %v2450 = vpop.permute.xlu0 %2449
        %2453 = vset.pattern.permute.xlu0 0
        %2454 = vperm.xlu0 %2453, %v2440
        %v2455 = vpop.permute.xlu0 %2454
        %2458 = vset.pattern.permute.xlu0 0
        %2459 = vperm.xlu0 %2458, %v2441
        %v2460 = vpop.permute.xlu0 %2459
        %v2466 = vunpack.c.l.b16 %v2403
        %v2467 = vunpack.c.l.b16 %v2404
        %v2468 = vunpack.c.l.b16 %v2405
        %v2469 = vunpack.c.l.b16 %v2406
        %v2470 = vpack.c.b16 %v2467, %v2466
        %v2471 = vpack.c.b16 %v2469, %v2468
        %v2473 = vsel %vm956, %v2470, 0
        %v2476 = vsel %vm956, %v2471, 0
        %2478 = vmatprep.subr.bf16.mxu0 %v2408
        %2479 = vmatpush1.bf16.msra.mxu0 %v2407
        %2480 = vmatprep.subr.bf16.mxu0 %v2413
        %2481 = vmatpush1.bf16.msra.mxu0 %v2412
        %2482 = vmatprep.subr.bf16.mxu0 %v2418
        %2483 = vmatpush1.bf16.msra.mxu0 %v2417
        %2484 = vmatprep.subr.bf16.mxu0 %v2423
        %2485 = vmatpush1.bf16.msra.mxu0 %v2422
        %2486 = vmatprep.subr.bf16.mxu0 %v2428
        %2487 = vmatpush1.bf16.msra.mxu0 %v2427
        %2488 = vmatprep.subr.bf16.mxu0 %v2433
        %2489 = vmatpush1.bf16.msra.mxu0 %v2432
        %2490 = vmatprep.subr.bf16.mxu0 0
        %2491 = vmatpush1.bf16.msra.mxu0 0
        %2492 = vmatprep.subr.bf16.mxu0 0
        %2493 = vmatpush1.bf16.msra.mxu0 0
        %2494 = vmatprep.subr.bf16.mxu0 0
        %2495 = vmatpush1.bf16.msra.mxu0 0
        %2496 = vmatprep.subr.bf16.mxu0 0
        %2497 = vmatpush1.bf16.msra.mxu0 0
        %2498 = vmatprep.subr.bf16.mxu0 0
        %2499 = vmatpush1.bf16.msra.mxu0 0
        %2500 = vmatprep.subr.bf16.mxu0 0
        %2501 = vmatpush1.bf16.msra.mxu0 0
        %2502 = vmatprep.subr.bf16.mxu0 0
        %2503 = vmatpush1.bf16.msra.mxu0 0
        %2504 = vmatprep.subr.bf16.mxu0 0
        %2505 = vmatpush1.bf16.msra.mxu0 0
        %2506 = vmatprep.subr.bf16.mxu0 0
        %2507 = vmatpush1.bf16.msra.mxu0 0
        %2508 = vmatprep.subr.bf16.mxu0 0
        %2509 = vmatpush1.bf16.msra.mxu0 0
        %2510 = vmatprep.mubr.bf16.mxu0 0
        %2511 = vmatmul.mubr.bf16.gmra.mrb[0].mxu0 %v2473
        %v2512 = vpop.f32.mrb[0].mxu0
        %v2513 = vadd.f32 %v2445, %v2512
        %v2514 = vpop.f32.mrb[0].mxu0
        %v2515 = vadd.f32 %v2445, %v2514
        %v2516 = vpop.f32.mrb[0].mxu0
        %v2517 = vadd.f32 %v2450, %v2516
        %v2518 = vpop.f32.mrb[0].mxu0
        %v2519 = vadd.f32 %v2450, %v2518
        %2520 = vmatprep.mubr.bf16.mxu0 0
        %2521 = vmatmul.mubr.bf16.gmra.mrb[0].mxu0 %v2476
        %v2522 = vpop.f32.mrb[0].mxu0
        %v2523 = vadd.f32 %v2455, %v2522
        %v2524 = vpop.f32.mrb[0].mxu0
        %v2525 = vadd.f32 %v2455, %v2524
        %v2526 = vpop.f32.mrb[0].mxu0
        %v2527 = vadd.f32 %v2460, %v2526
        %v2528 = vpop.f32.mrb[0].mxu0
        %v2529 = vadd.f32 %v2460, %v2528
        %2530 = vdwg.mxu0
        %2531 = vmatprep.subr.bf16.mxu0 %v2410
        %2532 = vmatpush1.bf16.msra.mxu0 %v2409
        %2533 = vmatprep.subr.bf16.mxu0 %v2415
        %2534 = vmatpush1.bf16.msra.mxu0 %v2414
        %2535 = vmatprep.subr.bf16.mxu0 %v2420
        %2536 = vmatpush1.bf16.msra.mxu0 %v2419
        %2537 = vmatprep.subr.bf16.mxu0 %v2425
        %2538 = vmatpush1.bf16.msra.mxu0 %v2424
        %2539 = vmatprep.subr.bf16.mxu0 %v2430
        %2540 = vmatpush1.bf16.msra.mxu0 %v2429
        %2541 = vmatprep.subr.bf16.mxu0 %v2435
        %2542 = vmatpush1.bf16.msra.mxu0 %v2434
        %2543 = vmatprep.subr.bf16.mxu0 0
        %2544 = vmatpush1.bf16.msra.mxu0 0
        %2545 = vmatprep.subr.bf16.mxu0 0
        %2546 = vmatpush1.bf16.msra.mxu0 0
        %2547 = vmatprep.subr.bf16.mxu0 0
        %2548 = vmatpush1.bf16.msra.mxu0 0
        %2549 = vmatprep.subr.bf16.mxu0 0
        %2550 = vmatpush1.bf16.msra.mxu0 0
        %2551 = vmatprep.subr.bf16.mxu0 0
        %2552 = vmatpush1.bf16.msra.mxu0 0
        %2553 = vmatprep.subr.bf16.mxu0 0
        %2554 = vmatpush1.bf16.msra.mxu0 0
        %2555 = vmatprep.subr.bf16.mxu0 0
        %2556 = vmatpush1.bf16.msra.mxu0 0
        %2557 = vmatprep.subr.bf16.mxu0 0
        %2558 = vmatpush1.bf16.msra.mxu0 0
        %2559 = vmatprep.subr.bf16.mxu0 0
        %2560 = vmatpush1.bf16.msra.mxu0 0
        %2561 = vmatprep.subr.bf16.mxu0 0
        %2562 = vmatpush1.bf16.msra.mxu0 0
        %2563 = vmatprep.mubr.bf16.mxu0 0
        %2564 = vmatmul.mubr.bf16.gmra.mrb[0].mxu0 %v2473
        %v2565 = vpop.f32.mrb[0].mxu0
        %v2566 = vadd.f32 %v2445, %v2565
        %v2567 = vpop.f32.mrb[0].mxu0
        %v2568 = vadd.f32 %v2445, %v2567
        %v2569 = vpop.f32.mrb[0].mxu0
        %v2570 = vadd.f32 %v2450, %v2569
        %v2571 = vpop.f32.mrb[0].mxu0
        %v2572 = vadd.f32 %v2450, %v2571
        %2573 = vmatprep.mubr.bf16.mxu0 0
        %2574 = vmatmul.mubr.bf16.gmra.mrb[0].mxu0 %v2476
        %v2575 = vpop.f32.mrb[0].mxu0
        %v2576 = vadd.f32 %v2455, %v2575
        %v2577 = vpop.f32.mrb[0].mxu0
        %v2578 = vadd.f32 %v2455, %v2577
        %v2579 = vpop.f32.mrb[0].mxu0
        %v2580 = vadd.f32 %v2460, %v2579
        %v2581 = vpop.f32.mrb[0].mxu0
        %v2582 = vadd.f32 %v2460, %v2581
        %2583 = vdwg.mxu0
        %2584 = vmatprep.subr.bf16.mxu0 0
        %2585 = vmatpush1.bf16.msra.mxu0 %v2411
        %2586 = vmatprep.subr.bf16.mxu0 0
        %2587 = vmatpush1.bf16.msra.mxu0 %v2416
        %2588 = vmatprep.subr.bf16.mxu0 0
        %2589 = vmatpush1.bf16.msra.mxu0 %v2421
        %2590 = vmatprep.subr.bf16.mxu0 0
        %2591 = vmatpush1.bf16.msra.mxu0 %v2426
        %2592 = vmatprep.subr.bf16.mxu0 0
        %2593 = vmatpush1.bf16.msra.mxu0 %v2431
        %2594 = vmatprep.subr.bf16.mxu0 0
        %2595 = vmatpush1.bf16.msra.mxu0 %v2436
        %2596 = vmatprep.subr.bf16.mxu0 0
        %2597 = vmatpush1.bf16.msra.mxu0 0
        %2598 = vmatprep.subr.bf16.mxu0 0
        %2599 = vmatpush1.bf16.msra.mxu0 0
        %2600 = vmatprep.subr.bf16.mxu0 0
        %2601 = vmatpush1.bf16.msra.mxu0 0
        %2602 = vmatprep.subr.bf16.mxu0 0
        %2603 = vmatpush1.bf16.msra.mxu0 0
        %2604 = vmatprep.subr.bf16.mxu0 0
        %2605 = vmatpush1.bf16.msra.mxu0 0
        %2606 = vmatprep.subr.bf16.mxu0 0
        %2607 = vmatpush1.bf16.msra.mxu0 0
        %2608 = vmatprep.subr.bf16.mxu0 0
        %2609 = vmatpush1.bf16.msra.mxu0 0
        %2610 = vmatprep.subr.bf16.mxu0 0
        %2611 = vmatpush1.bf16.msra.mxu0 0
        %2612 = vmatprep.subr.bf16.mxu0 0
        %2613 = vmatpush1.bf16.msra.mxu0 0
        %2614 = vmatprep.subr.bf16.mxu0 0
        %2615 = vmatpush1.bf16.msra.mxu0 0
        %2616 = vmatprep.mubr.bf16.mxu0 0
        %2617 = vmatmul.mubr.bf16.gmra.mrb[0].mxu0 %v2473
        %v2618 = vpop.f32.mrb[0].mxu0
        %v2619 = vadd.f32 %v2445, %v2618
        %v2620 = vpop.f32.mrb[0].mxu0
        %v2621 = vpop.f32.mrb[0].mxu0
        %v2622 = vadd.f32 %v2450, %v2621
        %v2623 = vpop.f32.mrb[0].mxu0
        %2624 = vmatprep.mubr.bf16.mxu0 0
        %2625 = vmatmul.mubr.bf16.gmra.mrb[0].mxu0 %v2476
        %v2626 = vpop.f32.mrb[0].mxu0
        %v2627 = vadd.f32 %v2455, %v2626
        %v2628 = vpop.f32.mrb[0].mxu0
        %v2629 = vpop.f32.mrb[0].mxu0
        %v2630 = vadd.f32 %v2460, %v2629
        %v2631 = vpop.f32.mrb[0].mxu0
        %2632 = vdwg.mxu0
        %v2633 = vadd.f32 %v1609, %v2513
        %v2634 = vadd.f32 %v1610, %v2515
        %v2635 = vadd.f32 %v1611, %v2566
        %v2636 = vadd.f32 %v1612, %v2568
        %v2637 = vadd.f32 %v1613, %v2619
        %v2638 = vadd.f32 %v1614, %v2517
        %v2639 = vadd.f32 %v1615, %v2519
        %v2640 = vadd.f32 %v1616, %v2570
        %v2641 = vadd.f32 %v1617, %v2572
        %v2642 = vadd.f32 %v1618, %v2622
        %v2643 = vadd.f32 %v1619, %v2523
        %v2644 = vadd.f32 %v1620, %v2525
        %v2645 = vadd.f32 %v1621, %v2576
        %v2646 = vadd.f32 %v1622, %v2578
        %v2647 = vadd.f32 %v1623, %v2627
        %v2648 = vadd.f32 %v1624, %v2527
        %v2649 = vadd.f32 %v1625, %v2529
        %v2650 = vadd.f32 %v1626, %v2580
        %v2651 = vadd.f32 %v1627, %v2582
        %v2652 = vadd.f32 %v1628, %v2630
        %v2653 = vmul.f32 %v2633, 0.01
        %v2654 = vmul.f32 %v2634, 0.01
        %v2655 = vmul.f32 %v2635, 0.01
        %v2656 = vmul.f32 %v2636, 0.01
        %v2657 = vmul.f32 %v2637, 0.01
        %v2658 = vmul.f32 %v2638, 0.01
        %v2659 = vmul.f32 %v2639, 0.01
        %v2660 = vmul.f32 %v2640, 0.01
        %v2661 = vmul.f32 %v2641, 0.01
        %v2662 = vmul.f32 %v2642, 0.01
        %v2663 = vmul.f32 %v2643, 0.01
        %v2664 = vmul.f32 %v2644, 0.01
        %v2665 = vmul.f32 %v2645, 0.01
        %v2666 = vmul.f32 %v2646, 0.01
        %v2667 = vmul.f32 %v2647, 0.01
        %v2668 = vmul.f32 %v2648, 0.01
        %v2669 = vmul.f32 %v2649, 0.01
        %v2670 = vmul.f32 %v2650, 0.01
        %v2671 = vmul.f32 %v2651, 0.01
        %v2672 = vmul.f32 %v2652, 0.01
        %v2673 = vmax.f32 %v2633, %v2653
        %v2674 = vmax.f32 %v2634, %v2654
        %v2675 = vmax.f32 %v2635, %v2655
        %v2676 = vmax.f32 %v2636, %v2656
        %v2677 = vmax.f32 %v2637, %v2657
        %v2678 = vmax.f32 %v2638, %v2658
        %v2679 = vmax.f32 %v2639, %v2659
        %v2680 = vmax.f32 %v2640, %v2660
        %v2681 = vmax.f32 %v2641, %v2661
        %v2682 = vmax.f32 %v2642, %v2662
        %v2683 = vmax.f32 %v2643, %v2663
        %v2684 = vmax.f32 %v2644, %v2664
        %v2685 = vmax.f32 %v2645, %v2665
        %v2686 = vmax.f32 %v2646, %v2666
        %v2687 = vmax.f32 %v2647, %v2667
        %v2688 = vmax.f32 %v2648, %v2668
        %v2689 = vmax.f32 %v2649, %v2669
        %v2690 = vmax.f32 %v2650, %v2670
        %v2691 = vmax.f32 %v2651, %v2671
        %v2692 = vmax.f32 %v2652, %v2672
        %2693 = vrot.lane.b32.xlu0 %v2673, 9
        %v2694 = vpop.permute.xlu0 %2693
        %2695 = vrot.lane.b32.xlu0 %v2678, 9
        %v2696 = vpop.permute.xlu0 %2695
        %2697 = vrot.lane.b32.xlu0 %v2683, 9
        %v2698 = vpop.permute.xlu0 %2697
        %2699 = vrot.lane.b32.xlu0 %v2688, 9
        %v2700 = vpop.permute.xlu0 %2699
        %2701 = vrot.lane.b32.xlu0 %v2674, 9
        %v2702 = vpop.permute.xlu0 %2701
        %2703 = vrot.lane.b32.xlu0 %v2679, 9
        %v2704 = vpop.permute.xlu0 %2703
        %2705 = vrot.lane.b32.xlu0 %v2684, 9
        %v2706 = vpop.permute.xlu0 %2705
        %2707 = vrot.lane.b32.xlu0 %v2689, 9
        %v2708 = vpop.permute.xlu0 %2707
        %2709 = vrot.lane.b32.xlu0 %v2675, 9
        %v2710 = vpop.permute.xlu0 %2709
        %2711 = vrot.lane.b32.xlu0 %v2680, 9
        %v2712 = vpop.permute.xlu0 %2711
        %2713 = vrot.lane.b32.xlu0 %v2685, 9
        %v2714 = vpop.permute.xlu0 %2713
        %2715 = vrot.lane.b32.xlu0 %v2690, 9
        %v2716 = vpop.permute.xlu0 %2715
        %2717 = vrot.lane.b32.xlu0 %v2676, 9
        %v2718 = vpop.permute.xlu0 %2717
        %2719 = vrot.lane.b32.xlu0 %v2681, 9
        %v2720 = vpop.permute.xlu0 %2719
        %2721 = vrot.lane.b32.xlu0 %v2686, 9
        %v2722 = vpop.permute.xlu0 %2721
        %2723 = vrot.lane.b32.xlu0 %v2691, 9
        %v2724 = vpop.permute.xlu0 %2723
        %2725 = vrot.lane.b32.xlu0 %v2677, 9
        %v2726 = vpop.permute.xlu0 %2725
        %2727 = vrot.lane.b32.xlu0 %v2682, 9
        %v2728 = vpop.permute.xlu0 %2727
        %2729 = vrot.lane.b32.xlu0 %v2687, 9
        %v2730 = vpop.permute.xlu0 %2729
        %2731 = vrot.lane.b32.xlu0 %v2692, 9
        %v2732 = vpop.permute.xlu0 %2731
        %vm2733 = vcmp.lt.s32.totalorder %v443, 9
        %v2734 = vsel %vm2733, %v2718, %v2726
        %v2735 = vsel %vm2733, %v2720, %v2728
        %v2736 = vsel %vm2733, %v2722, %v2730
        %v2737 = vsel %vm2733, %v2724, %v2732
        %v2738 = vsel %vm2733, %v2710, %v2718
        %v2739 = vsel %vm2733, %v2712, %v2720
        %v2740 = vsel %vm2733, %v2714, %v2722
        %v2741 = vsel %vm2733, %v2716, %v2724
        %v2742 = vsel %vm2733, %v2702, %v2710
        %v2743 = vsel %vm2733, %v2704, %v2712
        %v2744 = vsel %vm2733, %v2706, %v2714
        %v2745 = vsel %vm2733, %v2708, %v2716
        %v2746 = vsel %vm2733, %v2694, %v2702
        %v2747 = vsel %vm2733, %v2696, %v2704
        %v2748 = vsel %vm2733, %v2698, %v2706
        %v2749 = vsel %vm2733, %v2700, %v2708
        %v2750 = vsel %vm2733, %v2726, %v2694
        %v2751 = vsel %vm2733, %v2728, %v2696
        %v2752 = vsel %vm2733, %v2730, %v2698
        %v2753 = vsel %vm2733, %v2732, %v2700
        %v2754 = vsel %vm563, 1, 0
        %v2755 = vsel %vm564, 1, 0
        %v2756 = vsel %vm565, 1, 0
        %v2757 = vsel %vm566, 1, 0
        %v2758 = vsel %vm567, 1, 0
        %vm2759 = vcmp.eq.s32.totalorder %v2754, 1
        %vm2760 = vcmp.eq.s32.totalorder %v2755, 1
        %vm2761 = vcmp.eq.s32.totalorder %v2756, 1
        %vm2762 = vcmp.eq.s32.totalorder %v2757, 1
        %vm2763 = vcmp.eq.s32.totalorder %v2758, 1
        %v2764 = vsel %vm2759, %v2750, 0.0
        %v2765 = vsel %vm2760, %v2746, 0.0
        %v2766 = vsel %vm2761, %v2742, 0.0
        %v2767 = vsel %vm2762, %v2738, 0.0
        %v2768 = vsel %vm2763, %v2734, 0.0
        %v2769 = vsel %vm2759, %v2751, 0.0
        %v2770 = vsel %vm2760, %v2747, 0.0
        %v2771 = vsel %vm2761, %v2743, 0.0
        %v2772 = vsel %vm2762, %v2739, 0.0
        %v2773 = vsel %vm2763, %v2735, 0.0
        %v2774 = vsel %vm2759, %v2752, 0.0
        %v2775 = vsel %vm2760, %v2748, 0.0
        %v2776 = vsel %vm2761, %v2744, 0.0
        %v2777 = vsel %vm2762, %v2740, 0.0
        %v2778 = vsel %vm2763, %v2736, 0.0
        %v2779 = vsel %vm2759, %v2753, 0.0
        %v2780 = vsel %vm2760, %v2749, 0.0
        %v2781 = vsel %vm2761, %v2745, 0.0
        %v2782 = vsel %vm2762, %v2741, 0.0
        %v2783 = vsel %vm2763, %v2737, 0.0
        %v2784 = vpack.c.bf16 %v2769, %v2764
        %v2785 = vpack.c.bf16 %v2770, %v2765
        %v2786 = vpack.c.bf16 %v2771, %v2766
        %v2787 = vpack.c.bf16 %v2772, %v2767
        %v2788 = vpack.c.bf16 %v2773, %v2768
        %v2789 = vpack.c.bf16 %v2779, %v2774
        %v2790 = vpack.c.bf16 %v2780, %v2775
        %v2791 = vpack.c.bf16 %v2781, %v2776
        %v2792 = vpack.c.bf16 %v2782, %v2777
        %v2793 = vpack.c.bf16 %v2783, %v2778
        %2794 = vst [vmem:[#allocation2] sm:$0xff] %v2784
        %2795 = vst [vmem:[#allocation2 + $0x8] sm:$0xff] %v2785
        %2796 = vst [vmem:[#allocation2 + $0x10] sm:$0xff] %v2786
        %2797 = vst [vmem:[#allocation2 + $0x18] sm:$0xff] %v2787
        %2798 = vst [vmem:[#allocation2 + $0x20] sm:$0xff] %v2788
        %2799 = vst [vmem:[#allocation2 + $0x28] sm:$0xff] %v2789
        %2800 = vst [vmem:[#allocation2 + $0x30] sm:$0xff] %v2790
        %2801 = vst [vmem:[#allocation2 + $0x38] sm:$0xff] %v2791
        %2802 = vst [vmem:[#allocation2 + $0x40] sm:$0xff] %v2792
        %2803 = vst [vmem:[#allocation2 + $0x48] sm:$0xff] %v2793
        %v2804 = vpack.c.bf16 %v2678, %v2673
        %v2805 = vpack.c.bf16 %v2679, %v2674
        %v2806 = vpack.c.bf16 %v2680, %v2675
        %v2807 = vpack.c.bf16 %v2681, %v2676
        %v2808 = vpack.c.bf16 %v2682, %v2677
        %v2809 = vpack.c.bf16 %v2688, %v2683
        %v2810 = vpack.c.bf16 %v2689, %v2684
        %v2811 = vpack.c.bf16 %v2690, %v2685
        %v2812 = vpack.c.bf16 %v2691, %v2686
        %v2813 = vpack.c.bf16 %v2692, %v2687
        %2814 = vst [vmem:[#allocation2 + $0x50] sm:$0xff] %v2804
        %2815 = vst [vmem:[#allocation2 + $0x58] sm:$0xff] %v2805
        %2816 = vst [vmem:[#allocation2 + $0x60] sm:$0xff] %v2806
        %2817 = vst [vmem:[#allocation2 + $0x68] sm:$0xff] %v2807
        %2818 = vst [vmem:[#allocation2 + $0x70] sm:$0xff] %v2808
        %2819 = vst [vmem:[#allocation2 + $0x78] sm:$0xff] %v2809
        %2820 = vst [vmem:[#allocation2 + $0x80] sm:$0xff] %v2810
        %2821 = vst [vmem:[#allocation2 + $0x88] sm:$0xff] %v2811
        %2822 = vst [vmem:[#allocation2 + $0x90] sm:$0xff] %v2812
        %2823 = vst [vmem:[#allocation2 + $0x98] sm:$0xff] %v2813
        %2824 = vrot.lane.b32.xlu0 %v2673, 119
        %v2825 = vpop.permute.xlu0 %2824
        %2826 = vrot.lane.b32.xlu0 %v2678, 119
        %v2827 = vpop.permute.xlu0 %2826
        %2828 = vrot.lane.b32.xlu0 %v2683, 119
        %v2829 = vpop.permute.xlu0 %2828
        %2830 = vrot.lane.b32.xlu0 %v2688, 119
        %v2831 = vpop.permute.xlu0 %2830
        %2832 = vrot.lane.b32.xlu0 %v2674, 119
        %v2833 = vpop.permute.xlu0 %2832
        %2834 = vrot.lane.b32.xlu0 %v2679, 119
        %v2835 = vpop.permute.xlu0 %2834
        %2836 = vrot.lane.b32.xlu0 %v2684, 119
        %v2837 = vpop.permute.xlu0 %2836
        %2838 = vrot.lane.b32.xlu0 %v2689, 119
        %v2839 = vpop.permute.xlu0 %2838
        %2840 = vrot.lane.b32.xlu0 %v2675, 119
        %v2841 = vpop.permute.xlu0 %2840
        %2842 = vrot.lane.b32.xlu0 %v2680, 119
        %v2843 = vpop.permute.xlu0 %2842
        %2844 = vrot.lane.b32.xlu0 %v2685, 119
        %v2845 = vpop.permute.xlu0 %2844
        %2846 = vrot.lane.b32.xlu0 %v2690, 119
        %v2847 = vpop.permute.xlu0 %2846
        %2848 = vrot.lane.b32.xlu0 %v2676, 119
        %v2849 = vpop.permute.xlu0 %2848
        %2850 = vrot.lane.b32.xlu0 %v2681, 119
        %v2851 = vpop.permute.xlu0 %2850
        %2852 = vrot.lane.b32.xlu0 %v2686, 119
        %v2853 = vpop.permute.xlu0 %2852
        %2854 = vrot.lane.b32.xlu0 %v2691, 119
        %v2855 = vpop.permute.xlu0 %2854
        %2856 = vrot.lane.b32.xlu0 %v2677, 119
        %v2857 = vpop.permute.xlu0 %2856
        %2858 = vrot.lane.b32.xlu0 %v2682, 119
        %v2859 = vpop.permute.xlu0 %2858
        %2860 = vrot.lane.b32.xlu0 %v2687, 119
        %v2861 = vpop.permute.xlu0 %2860
        %2862 = vrot.lane.b32.xlu0 %v2692, 119
        %v2863 = vpop.permute.xlu0 %2862
        %vm2864 = vcmp.lt.s32.totalorder %v443, 119
        %v2865 = vsel %vm2864, %v2849, %v2857
        %v2866 = vsel %vm2864, %v2851, %v2859
        %v2867 = vsel %vm2864, %v2853, %v2861
        %v2868 = vsel %vm2864, %v2855, %v2863
        %v2869 = vsel %vm2864, %v2841, %v2849
        %v2870 = vsel %vm2864, %v2843, %v2851
        %v2871 = vsel %vm2864, %v2845, %v2853
        %v2872 = vsel %vm2864, %v2847, %v2855
        %v2873 = vsel %vm2864, %v2833, %v2841
        %v2874 = vsel %vm2864, %v2835, %v2843
        %v2875 = vsel %vm2864, %v2837, %v2845
        %v2876 = vsel %vm2864, %v2839, %v2847
        %v2877 = vsel %vm2864, %v2825, %v2833
        %v2878 = vsel %vm2864, %v2827, %v2835
        %v2879 = vsel %vm2864, %v2829, %v2837
        %v2880 = vsel %vm2864, %v2831, %v2839
        %v2881 = vsel %vm2864, %v2857, %v2825
        %v2882 = vsel %vm2864, %v2859, %v2827
        %v2883 = vsel %vm2864, %v2861, %v2829
        %v2884 = vsel %vm2864, %v2863, %v2831
        %v2885 = vsel %vm544, 1, 0
        %v2886 = vsel %vm545, 1, 0
        %v2887 = vsel %vm546, 1, 0
        %v2888 = vsel %vm547, 1, 0
        %v2889 = vsel %vm548, 1, 0
        %vm2890 = vcmp.eq.s32.totalorder %v2885, 1
        %vm2891 = vcmp.eq.s32.totalorder %v2886, 1
        %vm2892 = vcmp.eq.s32.totalorder %v2887, 1
        %vm2893 = vcmp.eq.s32.totalorder %v2888, 1
        %vm2894 = vcmp.eq.s32.totalorder %v2889, 1
        %v2895 = vsel %vm2890, %v2877, 0.0
        %v2896 = vsel %vm2891, %v2873, 0.0
        %v2897 = vsel %vm2892, %v2869, 0.0
        %v2898 = vsel %vm2893, %v2865, 0.0
        %v2899 = vsel %vm2894, %v2881, 0.0
        %v2900 = vsel %vm2890, %v2878, 0.0
        %v2901 = vsel %vm2891, %v2874, 0.0
        %v2902 = vsel %vm2892, %v2870, 0.0
        %v2903 = vsel %vm2893, %v2866, 0.0
        %v2904 = vsel %vm2894, %v2882, 0.0
        %v2905 = vsel %vm2890, %v2879, 0.0
        %v2906 = vsel %vm2891, %v2875, 0.0
        %v2907 = vsel %vm2892, %v2871, 0.0
        %v2908 = vsel %vm2893, %v2867, 0.0
        %v2909 = vsel %vm2894, %v2883, 0.0
        %v2910 = vsel %vm2890, %v2880, 0.0
        %v2911 = vsel %vm2891, %v2876, 0.0
        %v2912 = vsel %vm2892, %v2872, 0.0
        %v2913 = vsel %vm2893, %v2868, 0.0
        %v2914 = vsel %vm2894, %v2884, 0.0
        %v2915 = vpack.c.bf16 %v2900, %v2895
        %v2916 = vpack.c.bf16 %v2901, %v2896
        %v2917 = vpack.c.bf16 %v2902, %v2897
        %v2918 = vpack.c.bf16 %v2903, %v2898
        %v2919 = vpack.c.bf16 %v2904, %v2899
        %v2920 = vpack.c.bf16 %v2910, %v2905
        %v2921 = vpack.c.bf16 %v2911, %v2906
        %v2922 = vpack.c.bf16 %v2912, %v2907
        %v2923 = vpack.c.bf16 %v2913, %v2908
        %v2924 = vpack.c.bf16 %v2914, %v2909
        %2925 = vst [vmem:[#allocation2 + $0xa0] sm:$0xff] %v2915
        %2926 = vst [vmem:[#allocation2 + $0xa8] sm:$0xff] %v2916
        %2927 = vst [vmem:[#allocation2 + $0xb0] sm:$0xff] %v2917
        %2928 = vst [vmem:[#allocation2 + $0xb8] sm:$0xff] %v2918
        %2929 = vst [vmem:[#allocation2 + $0xc0] sm:$0xff] %v2919
        %2930 = vst [vmem:[#allocation2 + $0xc8] sm:$0xff] %v2920
        %2931 = vst [vmem:[#allocation2 + $0xd0] sm:$0xff] %v2921
        %2932 = vst [vmem:[#allocation2 + $0xd8] sm:$0xff] %v2922
        %2933 = vst [vmem:[#allocation2 + $0xe0] sm:$0xff] %v2923
        %2934 = vst [vmem:[#allocation2 + $0xe8] sm:$0xff] %v2924
        %s2935 = scalar_lea.vmem [#allocation3], 64
        %v2936 = vld [vmem:[%s2935] sm:$0xf]
        %v2937 = vld [vmem:[%s2935 + $0x4] sm:$0xf]
        %v2938 = vld [vmem:[%s2935 + $0x8] sm:$0xf]
        %v2939 = vld [vmem:[%s2935 + $0xc] sm:$0xf]
        %v2940 = vld [vmem:[#allocation2] sm:$0xff]
        %v2941 = vld [vmem:[#allocation2 + $0x8] sm:$0xff]
        %v2942 = vld [vmem:[#allocation2 + $0x10] sm:$0xff]
        %v2943 = vld [vmem:[#allocation2 + $0x18] sm:$0xff]
        %v2944 = vld [vmem:[#allocation2 + $0x20] sm:$0xff]
        %v2945 = vld [vmem:[#allocation2 + $0x28] sm:$0xff]
        %v2946 = vld [vmem:[#allocation2 + $0x30] sm:$0xff]
        %v2947 = vld [vmem:[#allocation2 + $0x38] sm:$0xff]
        %v2948 = vld [vmem:[#allocation2 + $0x40] sm:$0xff]
        %v2949 = vld [vmem:[#allocation2 + $0x48] sm:$0xff]
        %v2950 = vld [vmem:[#allocation2 + $0x50] sm:$0xff]
        %v2951 = vld [vmem:[#allocation2 + $0x58] sm:$0xff]
        %v2952 = vld [vmem:[#allocation2 + $0x60] sm:$0xff]
        %v2953 = vld [vmem:[#allocation2 + $0x68] sm:$0xff]
        %v2954 = vld [vmem:[#allocation2 + $0x70] sm:$0xff]
        %v2955 = vld [vmem:[#allocation2 + $0x78] sm:$0xff]
        %v2956 = vld [vmem:[#allocation2 + $0x80] sm:$0xff]
        %v2957 = vld [vmem:[#allocation2 + $0x88] sm:$0xff]
        %v2958 = vld [vmem:[#allocation2 + $0x90] sm:$0xff]
        %v2959 = vld [vmem:[#allocation2 + $0x98] sm:$0xff]
        %v2960 = vld [vmem:[#allocation2 + $0xa0] sm:$0xff]
        %v2961 = vld [vmem:[#allocation2 + $0xa8] sm:$0xff]
        %v2962 = vld [vmem:[#allocation2 + $0xb0] sm:$0xff]
        %v2963 = vld [vmem:[#allocation2 + $0xb8] sm:$0xff]
        %v2964 = vld [vmem:[#allocation2 + $0xc0] sm:$0xff]
        %v2965 = vld [vmem:[#allocation2 + $0xc8] sm:$0xff]
        %v2966 = vld [vmem:[#allocation2 + $0xd0] sm:$0xff]
        %v2967 = vld [vmem:[#allocation2 + $0xd8] sm:$0xff]
        %v2968 = vld [vmem:[#allocation2 + $0xe0] sm:$0xff]
        %v2969 = vld [vmem:[#allocation2 + $0xe8] sm:$0xff]
        %s2970 = scalar_lea.vmem %s1, 128
        %v2971 = vld [vmem:[%s2970] sm:$0xff]
        %v2972 = vld [vmem:[%s2970 + $0x8] sm:$0xff]
        %v2973 = vld [vmem:[%s2970 + $0x10] sm:$0xff]
        %v2974 = vld [vmem:[%s2970 + $0x18] sm:$0xff]
        %2976 = vset.pattern.permute.xlu0 0
        %2977 = vperm.xlu0 %2976, %v2971
        %v2978 = vpop.permute.xlu0 %2977
        %2981 = vset.pattern.permute.xlu0 0
        %2982 = vperm.xlu0 %2981, %v2972
        %v2983 = vpop.permute.xlu0 %2982
        %2986 = vset.pattern.permute.xlu0 0
        %2987 = vperm.xlu0 %2986, %v2973
        %v2988 = vpop.permute.xlu0 %2987
        %2991 = vset.pattern.permute.xlu0 0
        %2992 = vperm.xlu0 %2991, %v2974
        %v2993 = vpop.permute.xlu0 %2992
        %v2999 = vunpack.c.l.b16 %v2936
        %v3000 = vunpack.c.l.b16 %v2937
        %v3001 = vunpack.c.l.b16 %v2938
        %v3002 = vunpack.c.l.b16 %v2939
        %v3003 = vpack.c.b16 %v3000, %v2999
        %v3004 = vpack.c.b16 %v3002, %v3001
        %v3006 = vsel %vm956, %v3003, 0
        %v3009 = vsel %vm956, %v3004, 0
        %3011 = vmatprep.subr.bf16.mxu0 %v2941
        %3012 = vmatpush1.bf16.msra.mxu0 %v2940
        %3013 = vmatprep.subr.bf16.mxu0 %v2946
        %3014 = vmatpush1.bf16.msra.mxu0 %v2945
        %3015 = vmatprep.subr.bf16.mxu0 %v2951
        %3016 = vmatpush1.bf16.msra.mxu0 %v2950
        %3017 = vmatprep.subr.bf16.mxu0 %v2956
        %3018 = vmatpush1.bf16.msra.mxu0 %v2955
        %3019 = vmatprep.subr.bf16.mxu0 %v2961
        %3020 = vmatpush1.bf16.msra.mxu0 %v2960
        %3021 = vmatprep.subr.bf16.mxu0 %v2966
        %3022 = vmatpush1.bf16.msra.mxu0 %v2965
        %3023 = vmatprep.subr.bf16.mxu0 0
        %3024 = vmatpush1.bf16.msra.mxu0 0
        %3025 = vmatprep.subr.bf16.mxu0 0
        %3026 = vmatpush1.bf16.msra.mxu0 0
        %3027 = vmatprep.subr.bf16.mxu0 0
        %3028 = vmatpush1.bf16.msra.mxu0 0
        %3029 = vmatprep.subr.bf16.mxu0 0
        %3030 = vmatpush1.bf16.msra.mxu0 0
        %3031 = vmatprep.subr.bf16.mxu0 0
        %3032 = vmatpush1.bf16.msra.mxu0 0
        %3033 = vmatprep.subr.bf16.mxu0 0
        %3034 = vmatpush1.bf16.msra.mxu0 0
        %3035 = vmatprep.subr.bf16.mxu0 0
        %3036 = vmatpush1.bf16.msra.mxu0 0
        %3037 = vmatprep.subr.bf16.mxu0 0
        %3038 = vmatpush1.bf16.msra.mxu0 0
        %3039 = vmatprep.subr.bf16.mxu0 0
        %3040 = vmatpush1.bf16.msra.mxu0 0
        %3041 = vmatprep.subr.bf16.mxu0 0
        %3042 = vmatpush1.bf16.msra.mxu0 0
        %3043 = vmatprep.mubr.bf16.mxu0 0
        %3044 = vmatmul.mubr.bf16.gmra.mrb[0].mxu0 %v3006
        %v3045 = vpop.f32.mrb[0].mxu0
        %v3046 = vadd.f32 %v2978, %v3045
        %v3047 = vpop.f32.mrb[0].mxu0
        %v3048 = vadd.f32 %v2978, %v3047
        %v3049 = vpop.f32.mrb[0].mxu0
        %v3050 = vadd.f32 %v2983, %v3049
        %v3051 = vpop.f32.mrb[0].mxu0
        %v3052 = vadd.f32 %v2983, %v3051
        %3053 = vmatprep.mubr.bf16.mxu0 0
        %3054 = vmatmul.mubr.bf16.gmra.mrb[0].mxu0 %v3009
        %v3055 = vpop.f32.mrb[0].mxu0
        %v3056 = vadd.f32 %v2988, %v3055
        %v3057 = vpop.f32.mrb[0].mxu0
        %v3058 = vadd.f32 %v2988, %v3057
        %v3059 = vpop.f32.mrb[0].mxu0
        %v3060 = vadd.f32 %v2993, %v3059
        %v3061 = vpop.f32.mrb[0].mxu0
        %v3062 = vadd.f32 %v2993, %v3061
        %3063 = vdwg.mxu0
        %3064 = vmatprep.subr.bf16.mxu0 %v2943
        %3065 = vmatpush1.bf16.msra.mxu0 %v2942
        %3066 = vmatprep.subr.bf16.mxu0 %v2948
        %3067 = vmatpush1.bf16.msra.mxu0 %v2947
        %3068 = vmatprep.subr.bf16.mxu0 %v2953
        %3069 = vmatpush1.bf16.msra.mxu0 %v2952
        %3070 = vmatprep.subr.bf16.mxu0 %v2958
        %3071 = vmatpush1.bf16.msra.mxu0 %v2957
        %3072 = vmatprep.subr.bf16.mxu0 %v2963
        %3073 = vmatpush1.bf16.msra.mxu0 %v2962
        %3074 = vmatprep.subr.bf16.mxu0 %v2968
        %3075 = vmatpush1.bf16.msra.mxu0 %v2967
        %3076 = vmatprep.subr.bf16.mxu0 0
        %3077 = vmatpush1.bf16.msra.mxu0 0
        %3078 = vmatprep.subr.bf16.mxu0 0
        %3079 = vmatpush1.bf16.msra.mxu0 0
        %3080 = vmatprep.subr.bf16.mxu0 0
        %3081 = vmatpush1.bf16.msra.mxu0 0
        %3082 = vmatprep.subr.bf16.mxu0 0
        %3083 = vmatpush1.bf16.msra.mxu0 0
        %3084 = vmatprep.subr.bf16.mxu0 0
        %3085 = vmatpush1.bf16.msra.mxu0 0
        %3086 = vmatprep.subr.bf16.mxu0 0
        %3087 = vmatpush1.bf16.msra.mxu0 0
        %3088 = vmatprep.subr.bf16.mxu0 0
        %3089 = vmatpush1.bf16.msra.mxu0 0
        %3090 = vmatprep.subr.bf16.mxu0 0
        %3091 = vmatpush1.bf16.msra.mxu0 0
        %3092 = vmatprep.subr.bf16.mxu0 0
        %3093 = vmatpush1.bf16.msra.mxu0 0
        %3094 = vmatprep.subr.bf16.mxu0 0
        %3095 = vmatpush1.bf16.msra.mxu0 0
        %3096 = vmatprep.mubr.bf16.mxu0 0
        %3097 = vmatmul.mubr.bf16.gmra.mrb[0].mxu0 %v3006
        %v3098 = vpop.f32.mrb[0].mxu0
        %v3099 = vadd.f32 %v2978, %v3098
        %v3100 = vpop.f32.mrb[0].mxu0
        %v3101 = vadd.f32 %v2978, %v3100
        %v3102 = vpop.f32.mrb[0].mxu0
        %v3103 = vadd.f32 %v2983, %v3102
        %v3104 = vpop.f32.mrb[0].mxu0
        %v3105 = vadd.f32 %v2983, %v3104
        %3106 = vmatprep.mubr.bf16.mxu0 0
        %3107 = vmatmul.mubr.bf16.gmra.mrb[0].mxu0 %v3009
        %v3108 = vpop.f32.mrb[0].mxu0
        %v3109 = vadd.f32 %v2988, %v3108
        %v3110 = vpop.f32.mrb[0].mxu0
        %v3111 = vadd.f32 %v2988, %v3110
        %v3112 = vpop.f32.mrb[0].mxu0
        %v3113 = vadd.f32 %v2993, %v3112
        %v3114 = vpop.f32.mrb[0].mxu0
        %v3115 = vadd.f32 %v2993, %v3114
        %3116 = vdwg.mxu0
        %3117 = vmatprep.subr.bf16.mxu0 0
        %3118 = vmatpush1.bf16.msra.mxu0 %v2944
        %3119 = vmatprep.subr.bf16.mxu0 0
        %3120 = vmatpush1.bf16.msra.mxu0 %v2949
        %3121 = vmatprep.subr.bf16.mxu0 0
        %3122 = vmatpush1.bf16.msra.mxu0 %v2954
        %3123 = vmatprep.subr.bf16.mxu0 0
        %3124 = vmatpush1.bf16.msra.mxu0 %v2959
        %3125 = vmatprep.subr.bf16.mxu0 0
        %3126 = vmatpush1.bf16.msra.mxu0 %v2964
        %3127 = vmatprep.subr.bf16.mxu0 0
        %3128 = vmatpush1.bf16.msra.mxu0 %v2969
        %3129 = vmatprep.subr.bf16.mxu0 0
        %3130 = vmatpush1.bf16.msra.mxu0 0
        %3131 = vmatprep.subr.bf16.mxu0 0
        %3132 = vmatpush1.bf16.msra.mxu0 0
        %3133 = vmatprep.subr.bf16.mxu0 0
        %3134 = vmatpush1.bf16.msra.mxu0 0
        %3135 = vmatprep.subr.bf16.mxu0 0
        %3136 = vmatpush1.bf16.msra.mxu0 0
        %3137 = vmatprep.subr.bf16.mxu0 0
        %3138 = vmatpush1.bf16.msra.mxu0 0
        %3139 = vmatprep.subr.bf16.mxu0 0
        %3140 = vmatpush1.bf16.msra.mxu0 0
        %3141 = vmatprep.subr.bf16.mxu0 0
        %3142 = vmatpush1.bf16.msra.mxu0 0
        %3143 = vmatprep.subr.bf16.mxu0 0
        %3144 = vmatpush1.bf16.msra.mxu0 0
        %3145 = vmatprep.subr.bf16.mxu0 0
        %3146 = vmatpush1.bf16.msra.mxu0 0
        %3147 = vmatprep.subr.bf16.mxu0 0
        %3148 = vmatpush1.bf16.msra.mxu0 0
        %3149 = vmatprep.mubr.bf16.mxu0 0
        %3150 = vmatmul.mubr.bf16.gmra.mrb[0].mxu0 %v3006
        %v3151 = vpop.f32.mrb[0].mxu0
        %v3152 = vadd.f32 %v2978, %v3151
        %v3153 = vpop.f32.mrb[0].mxu0
        %v3154 = vpop.f32.mrb[0].mxu0
        %v3155 = vadd.f32 %v2983, %v3154
        %v3156 = vpop.f32.mrb[0].mxu0
        %3157 = vmatprep.mubr.bf16.mxu0 0
        %3158 = vmatmul.mubr.bf16.gmra.mrb[0].mxu0 %v3009
        %v3159 = vpop.f32.mrb[0].mxu0
        %v3160 = vadd.f32 %v2988, %v3159
        %v3161 = vpop.f32.mrb[0].mxu0
        %v3162 = vpop.f32.mrb[0].mxu0
        %v3163 = vadd.f32 %v2993, %v3162
        %v3164 = vpop.f32.mrb[0].mxu0
        %3165 = vdwg.mxu0
        %v3166 = vmul.f32 %v3046, 0.01
        %v3167 = vmul.f32 %v3048, 0.01
        %v3168 = vmul.f32 %v3099, 0.01
        %v3169 = vmul.f32 %v3101, 0.01
        %v3170 = vmul.f32 %v3152, 0.01
        %v3171 = vmul.f32 %v3050, 0.01
        %v3172 = vmul.f32 %v3052, 0.01
        %v3173 = vmul.f32 %v3103, 0.01
        %v3174 = vmul.f32 %v3105, 0.01
        %v3175 = vmul.f32 %v3155, 0.01
        %v3176 = vmul.f32 %v3056, 0.01
        %v3177 = vmul.f32 %v3058, 0.01
        %v3178 = vmul.f32 %v3109, 0.01
        %v3179 = vmul.f32 %v3111, 0.01
        %v3180 = vmul.f32 %v3160, 0.01
        %v3181 = vmul.f32 %v3060, 0.01
        %v3182 = vmul.f32 %v3062, 0.01
        %v3183 = vmul.f32 %v3113, 0.01
        %v3184 = vmul.f32 %v3115, 0.01
        %v3185 = vmul.f32 %v3163, 0.01
        %v3186 = vmax.f32 %v3046, %v3166
        %v3187 = vmax.f32 %v3048, %v3167
        %v3188 = vmax.f32 %v3099, %v3168
        %v3189 = vmax.f32 %v3101, %v3169
        %v3190 = vmax.f32 %v3152, %v3170
        %v3191 = vmax.f32 %v3050, %v3171
        %v3192 = vmax.f32 %v3052, %v3172
        %v3193 = vmax.f32 %v3103, %v3173
        %v3194 = vmax.f32 %v3105, %v3174
        %v3195 = vmax.f32 %v3155, %v3175
        %v3196 = vmax.f32 %v3056, %v3176
        %v3197 = vmax.f32 %v3058, %v3177
        %v3198 = vmax.f32 %v3109, %v3178
        %v3199 = vmax.f32 %v3111, %v3179
        %v3200 = vmax.f32 %v3160, %v3180
        %v3201 = vmax.f32 %v3060, %v3181
        %v3202 = vmax.f32 %v3062, %v3182
        %v3203 = vmax.f32 %v3113, %v3183
        %v3204 = vmax.f32 %v3115, %v3184
        %v3205 = vmax.f32 %v3163, %v3185
        %3206 = vrot.lane.b32.xlu0 %v3186, 1
        %v3207 = vpop.permute.xlu0 %3206
        %3208 = vrot.lane.b32.xlu0 %v3191, 1
        %v3209 = vpop.permute.xlu0 %3208
        %3210 = vrot.lane.b32.xlu0 %v3196, 1
        %v3211 = vpop.permute.xlu0 %3210
        %3212 = vrot.lane.b32.xlu0 %v3201, 1
        %v3213 = vpop.permute.xlu0 %3212
        %3214 = vrot.lane.b32.xlu0 %v3187, 1
        %v3215 = vpop.permute.xlu0 %3214
        %3216 = vrot.lane.b32.xlu0 %v3192, 1
        %v3217 = vpop.permute.xlu0 %3216
        %3218 = vrot.lane.b32.xlu0 %v3197, 1
        %v3219 = vpop.permute.xlu0 %3218
        %3220 = vrot.lane.b32.xlu0 %v3202, 1
        %v3221 = vpop.permute.xlu0 %3220
        %3222 = vrot.lane.b32.xlu0 %v3188, 1
        %v3223 = vpop.permute.xlu0 %3222
        %3224 = vrot.lane.b32.xlu0 %v3193, 1
        %v3225 = vpop.permute.xlu0 %3224
        %3226 = vrot.lane.b32.xlu0 %v3198, 1
        %v3227 = vpop.permute.xlu0 %3226
        %3228 = vrot.lane.b32.xlu0 %v3203, 1
        %v3229 = vpop.permute.xlu0 %3228
        %3230 = vrot.lane.b32.xlu0 %v3189, 1
        %v3231 = vpop.permute.xlu0 %3230
        %3232 = vrot.lane.b32.xlu0 %v3194, 1
        %v3233 = vpop.permute.xlu0 %3232
        %3234 = vrot.lane.b32.xlu0 %v3199, 1
        %v3235 = vpop.permute.xlu0 %3234
        %3236 = vrot.lane.b32.xlu0 %v3204, 1
        %v3237 = vpop.permute.xlu0 %3236
        %3238 = vrot.lane.b32.xlu0 %v3190, 1
        %v3239 = vpop.permute.xlu0 %3238
        %3240 = vrot.lane.b32.xlu0 %v3195, 1
        %v3241 = vpop.permute.xlu0 %3240
        %3242 = vrot.lane.b32.xlu0 %v3200, 1
        %v3243 = vpop.permute.xlu0 %3242
        %3244 = vrot.lane.b32.xlu0 %v3205, 1
        %v3245 = vpop.permute.xlu0 %3244
        %v3246 = vsel %vm686, %v3231, %v3239
        %v3247 = vsel %vm686, %v3233, %v3241
        %v3248 = vsel %vm686, %v3235, %v3243
        %v3249 = vsel %vm686, %v3237, %v3245
        %v3250 = vsel %vm686, %v3223, %v3231
        %v3251 = vsel %vm686, %v3225, %v3233
        %v3252 = vsel %vm686, %v3227, %v3235
        %v3253 = vsel %vm686, %v3229, %v3237
        %v3254 = vsel %vm686, %v3215, %v3223
        %v3255 = vsel %vm686, %v3217, %v3225
        %v3256 = vsel %vm686, %v3219, %v3227
        %v3257 = vsel %vm686, %v3221, %v3229
        %v3258 = vsel %vm686, %v3207, %v3215
        %v3259 = vsel %vm686, %v3209, %v3217
        %v3260 = vsel %vm686, %v3211, %v3219
        %v3261 = vsel %vm686, %v3213, %v3221
        %v3262 = vsel %vm686, %v3239, %v3207
        %v3263 = vsel %vm686, %v3241, %v3209
        %v3264 = vsel %vm686, %v3243, %v3211
        %v3265 = vsel %vm686, %v3245, %v3213
        %v3266 = vsel %vm712, %v3262, 0.0
        %v3267 = vsel %vm713, %v3258, 0.0
        %v3268 = vsel %vm714, %v3254, 0.0
        %v3269 = vsel %vm715, %v3250, 0.0
        %v3270 = vsel %vm716, %v3246, 0.0
        %v3271 = vsel %vm712, %v3263, 0.0
        %v3272 = vsel %vm713, %v3259, 0.0
        %v3273 = vsel %vm714, %v3255, 0.0
        %v3274 = vsel %vm715, %v3251, 0.0
        %v3275 = vsel %vm716, %v3247, 0.0
        %v3276 = vsel %vm712, %v3264, 0.0
        %v3277 = vsel %vm713, %v3260, 0.0
        %v3278 = vsel %vm714, %v3256, 0.0
        %v3279 = vsel %vm715, %v3252, 0.0
        %v3280 = vsel %vm716, %v3248, 0.0
        %v3281 = vsel %vm712, %v3265, 0.0
        %v3282 = vsel %vm713, %v3261, 0.0
        %v3283 = vsel %vm714, %v3257, 0.0
        %v3284 = vsel %vm715, %v3253, 0.0
        %v3285 = vsel %vm716, %v3249, 0.0
        %v3286 = vpack.c.bf16 %v3271, %v3266
        %v3287 = vpack.c.bf16 %v3272, %v3267
        %v3288 = vpack.c.bf16 %v3273, %v3268
        %v3289 = vpack.c.bf16 %v3274, %v3269
        %v3290 = vpack.c.bf16 %v3275, %v3270
        %v3291 = vpack.c.bf16 %v3281, %v3276
        %v3292 = vpack.c.bf16 %v3282, %v3277
        %v3293 = vpack.c.bf16 %v3283, %v3278
        %v3294 = vpack.c.bf16 %v3284, %v3279
        %v3295 = vpack.c.bf16 %v3285, %v3280
        %3296 = vst [vmem:[#allocation2] sm:$0xff] %v3286
        %3297 = vst [vmem:[#allocation2 + $0x8] sm:$0xff] %v3287
        %3298 = vst [vmem:[#allocation2 + $0x10] sm:$0xff] %v3288
        %3299 = vst [vmem:[#allocation2 + $0x18] sm:$0xff] %v3289
        %3300 = vst [vmem:[#allocation2 + $0x20] sm:$0xff] %v3290
        %3301 = vst [vmem:[#allocation2 + $0x28] sm:$0xff] %v3291
        %3302 = vst [vmem:[#allocation2 + $0x30] sm:$0xff] %v3292
        %3303 = vst [vmem:[#allocation2 + $0x38] sm:$0xff] %v3293
        %3304 = vst [vmem:[#allocation2 + $0x40] sm:$0xff] %v3294
        %3305 = vst [vmem:[#allocation2 + $0x48] sm:$0xff] %v3295
        %v3306 = vpack.c.bf16 %v3191, %v3186
        %v3307 = vpack.c.bf16 %v3192, %v3187
        %v3308 = vpack.c.bf16 %v3193, %v3188
        %v3309 = vpack.c.bf16 %v3194, %v3189
        %v3310 = vpack.c.bf16 %v3195, %v3190
        %v3311 = vpack.c.bf16 %v3201, %v3196
        %v3312 = vpack.c.bf16 %v3202, %v3197
        %v3313 = vpack.c.bf16 %v3203, %v3198
        %v3314 = vpack.c.bf16 %v3204, %v3199
        %v3315 = vpack.c.bf16 %v3205, %v3200
        %3316 = vst [vmem:[#allocation2 + $0x50] sm:$0xff] %v3306
        %3317 = vst [vmem:[#allocation2 + $0x58] sm:$0xff] %v3307
        %3318 = vst [vmem:[#allocation2 + $0x60] sm:$0xff] %v3308
        %3319 = vst [vmem:[#allocation2 + $0x68] sm:$0xff] %v3309
        %3320 = vst [vmem:[#allocation2 + $0x70] sm:$0xff] %v3310
        %3321 = vst [vmem:[#allocation2 + $0x78] sm:$0xff] %v3311
        %3322 = vst [vmem:[#allocation2 + $0x80] sm:$0xff] %v3312
        %3323 = vst [vmem:[#allocation2 + $0x88] sm:$0xff] %v3313
        %3324 = vst [vmem:[#allocation2 + $0x90] sm:$0xff] %v3314
        %3325 = vst [vmem:[#allocation2 + $0x98] sm:$0xff] %v3315
        %3326 = vrot.lane.b32.xlu0 %v3186, 127
        %v3327 = vpop.permute.xlu0 %3326
        %3328 = vrot.lane.b32.xlu0 %v3191, 127
        %v3329 = vpop.permute.xlu0 %3328
        %3330 = vrot.lane.b32.xlu0 %v3196, 127
        %v3331 = vpop.permute.xlu0 %3330
        %3332 = vrot.lane.b32.xlu0 %v3201, 127
        %v3333 = vpop.permute.xlu0 %3332
        %3334 = vrot.lane.b32.xlu0 %v3187, 127
        %v3335 = vpop.permute.xlu0 %3334
        %3336 = vrot.lane.b32.xlu0 %v3192, 127
        %v3337 = vpop.permute.xlu0 %3336
        %3338 = vrot.lane.b32.xlu0 %v3197, 127
        %v3339 = vpop.permute.xlu0 %3338
        %3340 = vrot.lane.b32.xlu0 %v3202, 127
        %v3341 = vpop.permute.xlu0 %3340
        %3342 = vrot.lane.b32.xlu0 %v3188, 127
        %v3343 = vpop.permute.xlu0 %3342
        %3344 = vrot.lane.b32.xlu0 %v3193, 127
        %v3345 = vpop.permute.xlu0 %3344
        %3346 = vrot.lane.b32.xlu0 %v3198, 127
        %v3347 = vpop.permute.xlu0 %3346
        %3348 = vrot.lane.b32.xlu0 %v3203, 127
        %v3349 = vpop.permute.xlu0 %3348
        %3350 = vrot.lane.b32.xlu0 %v3189, 127
        %v3351 = vpop.permute.xlu0 %3350
        %3352 = vrot.lane.b32.xlu0 %v3194, 127
        %v3353 = vpop.permute.xlu0 %3352
        %3354 = vrot.lane.b32.xlu0 %v3199, 127
        %v3355 = vpop.permute.xlu0 %3354
        %3356 = vrot.lane.b32.xlu0 %v3204, 127
        %v3357 = vpop.permute.xlu0 %3356
        %3358 = vrot.lane.b32.xlu0 %v3190, 127
        %v3359 = vpop.permute.xlu0 %3358
        %3360 = vrot.lane.b32.xlu0 %v3195, 127
        %v3361 = vpop.permute.xlu0 %3360
        %3362 = vrot.lane.b32.xlu0 %v3200, 127
        %v3363 = vpop.permute.xlu0 %3362
        %3364 = vrot.lane.b32.xlu0 %v3205, 127
        %v3365 = vpop.permute.xlu0 %3364
        %v3366 = vsel %vm817, %v3351, %v3359
        %v3367 = vsel %vm817, %v3353, %v3361
        %v3368 = vsel %vm817, %v3355, %v3363
        %v3369 = vsel %vm817, %v3357, %v3365
        %v3370 = vsel %vm817, %v3343, %v3351
        %v3371 = vsel %vm817, %v3345, %v3353
        %v3372 = vsel %vm817, %v3347, %v3355
        %v3373 = vsel %vm817, %v3349, %v3357
        %v3374 = vsel %vm817, %v3335, %v3343
        %v3375 = vsel %vm817, %v3337, %v3345
        %v3376 = vsel %vm817, %v3339, %v3347
        %v3377 = vsel %vm817, %v3341, %v3349
        %v3378 = vsel %vm817, %v3327, %v3335
        %v3379 = vsel %vm817, %v3329, %v3337
        %v3380 = vsel %vm817, %v3331, %v3339
        %v3381 = vsel %vm817, %v3333, %v3341
        %v3382 = vsel %vm817, %v3359, %v3327
        %v3383 = vsel %vm817, %v3361, %v3329
        %v3384 = vsel %vm817, %v3363, %v3331
        %v3385 = vsel %vm817, %v3365, %v3333
        %v3386 = vsel %vm843, %v3378, 0.0
        %v3387 = vsel %vm844, %v3374, 0.0
        %v3388 = vsel %vm845, %v3370, 0.0
        %v3389 = vsel %vm846, %v3366, 0.0
        %v3390 = vsel %vm847, %v3382, 0.0
        %v3391 = vsel %vm843, %v3379, 0.0
        %v3392 = vsel %vm844, %v3375, 0.0
        %v3393 = vsel %vm845, %v3371, 0.0
        %v3394 = vsel %vm846, %v3367, 0.0
        %v3395 = vsel %vm847, %v3383, 0.0
        %v3396 = vsel %vm843, %v3380, 0.0
        %v3397 = vsel %vm844, %v3376, 0.0
        %v3398 = vsel %vm845, %v3372, 0.0
        %v3399 = vsel %vm846, %v3368, 0.0
        %v3400 = vsel %vm847, %v3384, 0.0
        %v3401 = vsel %vm843, %v3381, 0.0
        %v3402 = vsel %vm844, %v3377, 0.0
        %v3403 = vsel %vm845, %v3373, 0.0
        %v3404 = vsel %vm846, %v3369, 0.0
        %v3405 = vsel %vm847, %v3385, 0.0
        %v3406 = vpack.c.bf16 %v3391, %v3386
        %v3407 = vpack.c.bf16 %v3392, %v3387
        %v3408 = vpack.c.bf16 %v3393, %v3388
        %v3409 = vpack.c.bf16 %v3394, %v3389
        %v3410 = vpack.c.bf16 %v3395, %v3390
        %v3411 = vpack.c.bf16 %v3401, %v3396
        %v3412 = vpack.c.bf16 %v3402, %v3397
        %v3413 = vpack.c.bf16 %v3403, %v3398
        %v3414 = vpack.c.bf16 %v3404, %v3399
        %v3415 = vpack.c.bf16 %v3405, %v3400
        %3416 = vst [vmem:[#allocation2 + $0xa0] sm:$0xff] %v3406
        %3417 = vst [vmem:[#allocation2 + $0xa8] sm:$0xff] %v3407
        %3418 = vst [vmem:[#allocation2 + $0xb0] sm:$0xff] %v3408
        %3419 = vst [vmem:[#allocation2 + $0xb8] sm:$0xff] %v3409
        %3420 = vst [vmem:[#allocation2 + $0xc0] sm:$0xff] %v3410
        %3421 = vst [vmem:[#allocation2 + $0xc8] sm:$0xff] %v3411
        %3422 = vst [vmem:[#allocation2 + $0xd0] sm:$0xff] %v3412
        %3423 = vst [vmem:[#allocation2 + $0xd8] sm:$0xff] %v3413
        %3424 = vst [vmem:[#allocation2 + $0xe0] sm:$0xff] %v3414
        %3425 = vst [vmem:[#allocation2 + $0xe8] sm:$0xff] %v3415
        %s3426 = scalar_lea.vmem [#allocation3], 80
        %v3427 = vld [vmem:[%s3426] sm:$0xf]
        %v3428 = vld [vmem:[%s3426 + $0x4] sm:$0xf]
        %v3429 = vld [vmem:[%s3426 + $0x8] sm:$0xf]
        %v3430 = vld [vmem:[%s3426 + $0xc] sm:$0xf]
        %v3431 = vld [vmem:[#allocation2] sm:$0xff]
        %v3432 = vld [vmem:[#allocation2 + $0x8] sm:$0xff]
        %v3433 = vld [vmem:[#allocation2 + $0x10] sm:$0xff]
        %v3434 = vld [vmem:[#allocation2 + $0x18] sm:$0xff]
        %v3435 = vld [vmem:[#allocation2 + $0x20] sm:$0xff]
        %v3436 = vld [vmem:[#allocation2 + $0x28] sm:$0xff]
        %v3437 = vld [vmem:[#allocation2 + $0x30] sm:$0xff]
        %v3438 = vld [vmem:[#allocation2 + $0x38] sm:$0xff]
        %v3439 = vld [vmem:[#allocation2 + $0x40] sm:$0xff]
        %v3440 = vld [vmem:[#allocation2 + $0x48] sm:$0xff]
        %v3441 = vld [vmem:[#allocation2 + $0x50] sm:$0xff]
        %v3442 = vld [vmem:[#allocation2 + $0x58] sm:$0xff]
        %v3443 = vld [vmem:[#allocation2 + $0x60] sm:$0xff]
        %v3444 = vld [vmem:[#allocation2 + $0x68] sm:$0xff]
        %v3445 = vld [vmem:[#allocation2 + $0x70] sm:$0xff]
        %v3446 = vld [vmem:[#allocation2 + $0x78] sm:$0xff]
        %v3447 = vld [vmem:[#allocation2 + $0x80] sm:$0xff]
        %v3448 = vld [vmem:[#allocation2 + $0x88] sm:$0xff]
        %v3449 = vld [vmem:[#allocation2 + $0x90] sm:$0xff]
        %v3450 = vld [vmem:[#allocation2 + $0x98] sm:$0xff]
        %v3451 = vld [vmem:[#allocation2 + $0xa0] sm:$0xff]
        %v3452 = vld [vmem:[#allocation2 + $0xa8] sm:$0xff]
        %v3453 = vld [vmem:[#allocation2 + $0xb0] sm:$0xff]
        %v3454 = vld [vmem:[#allocation2 + $0xb8] sm:$0xff]
        %v3455 = vld [vmem:[#allocation2 + $0xc0] sm:$0xff]
        %v3456 = vld [vmem:[#allocation2 + $0xc8] sm:$0xff]
        %v3457 = vld [vmem:[#allocation2 + $0xd0] sm:$0xff]
        %v3458 = vld [vmem:[#allocation2 + $0xd8] sm:$0xff]
        %v3459 = vld [vmem:[#allocation2 + $0xe0] sm:$0xff]
        %v3460 = vld [vmem:[#allocation2 + $0xe8] sm:$0xff]
        %s3461 = scalar_lea.vmem %s1, 160
        %v3462 = vld [vmem:[%s3461] sm:$0xff]
        %v3463 = vld [vmem:[%s3461 + $0x8] sm:$0xff]
        %v3464 = vld [vmem:[%s3461 + $0x10] sm:$0xff]
        %v3465 = vld [vmem:[%s3461 + $0x18] sm:$0xff]
        %3467 = vset.pattern.permute.xlu0 0
        %3468 = vperm.xlu0 %3467, %v3462
        %v3469 = vpop.permute.xlu0 %3468
        %3472 = vset.pattern.permute.xlu0 0
        %3473 = vperm.xlu0 %3472, %v3463
        %v3474 = vpop.permute.xlu0 %3473
        %3477 = vset.pattern.permute.xlu0 0
        %3478 = vperm.xlu0 %3477, %v3464
        %v3479 = vpop.permute.xlu0 %3478
        %3482 = vset.pattern.permute.xlu0 0
        %3483 = vperm.xlu0 %3482, %v3465
        %v3484 = vpop.permute.xlu0 %3483
        %v3490 = vunpack.c.l.b16 %v3427
        %v3491 = vunpack.c.l.b16 %v3428
        %v3492 = vunpack.c.l.b16 %v3429
        %v3493 = vunpack.c.l.b16 %v3430
        %v3494 = vpack.c.b16 %v3491, %v3490
        %v3495 = vpack.c.b16 %v3493, %v3492
        %v3497 = vsel %vm956, %v3494, 0
        %v3500 = vsel %vm956, %v3495, 0
        %3502 = vmatprep.subr.bf16.mxu0 %v3432
        %3503 = vmatpush1.bf16.msra.mxu0 %v3431
        %3504 = vmatprep.subr.bf16.mxu0 %v3437
        %3505 = vmatpush1.bf16.msra.mxu0 %v3436
        %3506 = vmatprep.subr.bf16.mxu0 %v3442
        %3507 = vmatpush1.bf16.msra.mxu0 %v3441
        %3508 = vmatprep.subr.bf16.mxu0 %v3447
        %3509 = vmatpush1.bf16.msra.mxu0 %v3446
        %3510 = vmatprep.subr.bf16.mxu0 %v3452
        %3511 = vmatpush1.bf16.msra.mxu0 %v3451
        %3512 = vmatprep.subr.bf16.mxu0 %v3457
        %3513 = vmatpush1.bf16.msra.mxu0 %v3456
        %3514 = vmatprep.subr.bf16.mxu0 0
        %3515 = vmatpush1.bf16.msra.mxu0 0
        %3516 = vmatprep.subr.bf16.mxu0 0
        %3517 = vmatpush1.bf16.msra.mxu0 0
        %3518 = vmatprep.subr.bf16.mxu0 0
        %3519 = vmatpush1.bf16.msra.mxu0 0
        %3520 = vmatprep.subr.bf16.mxu0 0
        %3521 = vmatpush1.bf16.msra.mxu0 0
        %3522 = vmatprep.subr.bf16.mxu0 0
        %3523 = vmatpush1.bf16.msra.mxu0 0
        %3524 = vmatprep.subr.bf16.mxu0 0
        %3525 = vmatpush1.bf16.msra.mxu0 0
        %3526 = vmatprep.subr.bf16.mxu0 0
        %3527 = vmatpush1.bf16.msra.mxu0 0
        %3528 = vmatprep.subr.bf16.mxu0 0
        %3529 = vmatpush1.bf16.msra.mxu0 0
        %3530 = vmatprep.subr.bf16.mxu0 0
        %3531 = vmatpush1.bf16.msra.mxu0 0
        %3532 = vmatprep.subr.bf16.mxu0 0
        %3533 = vmatpush1.bf16.msra.mxu0 0
        %3534 = vmatprep.mubr.bf16.mxu0 0
        %3535 = vmatmul.mubr.bf16.gmra.mrb[0].mxu0 %v3497
        %v3536 = vpop.f32.mrb[0].mxu0
        %v3537 = vadd.f32 %v3469, %v3536
        %v3538 = vpop.f32.mrb[0].mxu0
        %v3539 = vadd.f32 %v3469, %v3538
        %v3540 = vpop.f32.mrb[0].mxu0
        %v3541 = vadd.f32 %v3474, %v3540
        %v3542 = vpop.f32.mrb[0].mxu0
        %v3543 = vadd.f32 %v3474, %v3542
        %3544 = vmatprep.mubr.bf16.mxu0 0
        %3545 = vmatmul.mubr.bf16.gmra.mrb[0].mxu0 %v3500
        %v3546 = vpop.f32.mrb[0].mxu0
        %v3547 = vadd.f32 %v3479, %v3546
        %v3548 = vpop.f32.mrb[0].mxu0
        %v3549 = vadd.f32 %v3479, %v3548
        %v3550 = vpop.f32.mrb[0].mxu0
        %v3551 = vadd.f32 %v3484, %v3550
        %v3552 = vpop.f32.mrb[0].mxu0
        %v3553 = vadd.f32 %v3484, %v3552
        %3554 = vdwg.mxu0
        %3555 = vmatprep.subr.bf16.mxu0 %v3434
        %3556 = vmatpush1.bf16.msra.mxu0 %v3433
        %3557 = vmatprep.subr.bf16.mxu0 %v3439
        %3558 = vmatpush1.bf16.msra.mxu0 %v3438
        %3559 = vmatprep.subr.bf16.mxu0 %v3444
        %3560 = vmatpush1.bf16.msra.mxu0 %v3443
        %3561 = vmatprep.subr.bf16.mxu0 %v3449
        %3562 = vmatpush1.bf16.msra.mxu0 %v3448
        %3563 = vmatprep.subr.bf16.mxu0 %v3454
        %3564 = vmatpush1.bf16.msra.mxu0 %v3453
        %3565 = vmatprep.subr.bf16.mxu0 %v3459
        %3566 = vmatpush1.bf16.msra.mxu0 %v3458
        %3567 = vmatprep.subr.bf16.mxu0 0
        %3568 = vmatpush1.bf16.msra.mxu0 0
        %3569 = vmatprep.subr.bf16.mxu0 0
        %3570 = vmatpush1.bf16.msra.mxu0 0
        %3571 = vmatprep.subr.bf16.mxu0 0
        %3572 = vmatpush1.bf16.msra.mxu0 0
        %3573 = vmatprep.subr.bf16.mxu0 0
        %3574 = vmatpush1.bf16.msra.mxu0 0
        %3575 = vmatprep.subr.bf16.mxu0 0
        %3576 = vmatpush1.bf16.msra.mxu0 0
        %3577 = vmatprep.subr.bf16.mxu0 0
        %3578 = vmatpush1.bf16.msra.mxu0 0
        %3579 = vmatprep.subr.bf16.mxu0 0
        %3580 = vmatpush1.bf16.msra.mxu0 0
        %3581 = vmatprep.subr.bf16.mxu0 0
        %3582 = vmatpush1.bf16.msra.mxu0 0
        %3583 = vmatprep.subr.bf16.mxu0 0
        %3584 = vmatpush1.bf16.msra.mxu0 0
        %3585 = vmatprep.subr.bf16.mxu0 0
        %3586 = vmatpush1.bf16.msra.mxu0 0
        %3587 = vmatprep.mubr.bf16.mxu0 0
        %3588 = vmatmul.mubr.bf16.gmra.mrb[0].mxu0 %v3497
        %v3589 = vpop.f32.mrb[0].mxu0
        %v3590 = vadd.f32 %v3469, %v3589
        %v3591 = vpop.f32.mrb[0].mxu0
        %v3592 = vadd.f32 %v3469, %v3591
        %v3593 = vpop.f32.mrb[0].mxu0
        %v3594 = vadd.f32 %v3474, %v3593
        %v3595 = vpop.f32.mrb[0].mxu0
        %v3596 = vadd.f32 %v3474, %v3595
        %3597 = vmatprep.mubr.bf16.mxu0 0
        %3598 = vmatmul.mubr.bf16.gmra.mrb[0].mxu0 %v3500
        %v3599 = vpop.f32.mrb[0].mxu0
        %v3600 = vadd.f32 %v3479, %v3599
        %v3601 = vpop.f32.mrb[0].mxu0
        %v3602 = vadd.f32 %v3479, %v3601
        %v3603 = vpop.f32.mrb[0].mxu0
        %v3604 = vadd.f32 %v3484, %v3603
        %v3605 = vpop.f32.mrb[0].mxu0
        %v3606 = vadd.f32 %v3484, %v3605
        %3607 = vdwg.mxu0
        %3608 = vmatprep.subr.bf16.mxu0 0
        %3609 = vmatpush1.bf16.msra.mxu0 %v3435
        %3610 = vmatprep.subr.bf16.mxu0 0
        %3611 = vmatpush1.bf16.msra.mxu0 %v3440
        %3612 = vmatprep.subr.bf16.mxu0 0
        %3613 = vmatpush1.bf16.msra.mxu0 %v3445
        %3614 = vmatprep.subr.bf16.mxu0 0
        %3615 = vmatpush1.bf16.msra.mxu0 %v3450
        %3616 = vmatprep.subr.bf16.mxu0 0
        %3617 = vmatpush1.bf16.msra.mxu0 %v3455
        %3618 = vmatprep.subr.bf16.mxu0 0
        %3619 = vmatpush1.bf16.msra.mxu0 %v3460
        %3620 = vmatprep.subr.bf16.mxu0 0
        %3621 = vmatpush1.bf16.msra.mxu0 0
        %3622 = vmatprep.subr.bf16.mxu0 0
        %3623 = vmatpush1.bf16.msra.mxu0 0
        %3624 = vmatprep.subr.bf16.mxu0 0
        %3625 = vmatpush1.bf16.msra.mxu0 0
        %3626 = vmatprep.subr.bf16.mxu0 0
        %3627 = vmatpush1.bf16.msra.mxu0 0
        %3628 = vmatprep.subr.bf16.mxu0 0
        %3629 = vmatpush1.bf16.msra.mxu0 0
        %3630 = vmatprep.subr.bf16.mxu0 0
        %3631 = vmatpush1.bf16.msra.mxu0 0
        %3632 = vmatprep.subr.bf16.mxu0 0
        %3633 = vmatpush1.bf16.msra.mxu0 0
        %3634 = vmatprep.subr.bf16.mxu0 0
        %3635 = vmatpush1.bf16.msra.mxu0 0
        %3636 = vmatprep.subr.bf16.mxu0 0
        %3637 = vmatpush1.bf16.msra.mxu0 0
        %3638 = vmatprep.subr.bf16.mxu0 0
        %3639 = vmatpush1.bf16.msra.mxu0 0
        %3640 = vmatprep.mubr.bf16.mxu0 0
        %3641 = vmatmul.mubr.bf16.gmra.mrb[0].mxu0 %v3497
        %v3642 = vpop.f32.mrb[0].mxu0
        %v3643 = vadd.f32 %v3469, %v3642
        %v3644 = vpop.f32.mrb[0].mxu0
        %v3645 = vpop.f32.mrb[0].mxu0
        %v3646 = vadd.f32 %v3474, %v3645
        %v3647 = vpop.f32.mrb[0].mxu0
        %3648 = vmatprep.mubr.bf16.mxu0 0
        %3649 = vmatmul.mubr.bf16.gmra.mrb[0].mxu0 %v3500
        %v3650 = vpop.f32.mrb[0].mxu0
        %v3651 = vadd.f32 %v3479, %v3650
        %v3652 = vpop.f32.mrb[0].mxu0
        %v3653 = vpop.f32.mrb[0].mxu0
        %v3654 = vadd.f32 %v3484, %v3653
        %v3655 = vpop.f32.mrb[0].mxu0
        %3656 = vdwg.mxu0
        %v3657 = vadd.f32 %v2633, %v3537
        %v3658 = vadd.f32 %v2634, %v3539
        %v3659 = vadd.f32 %v2635, %v3590
        %v3660 = vadd.f32 %v2636, %v3592
        %v3661 = vadd.f32 %v2637, %v3643
        %v3662 = vadd.f32 %v2638, %v3541
        %v3663 = vadd.f32 %v2639, %v3543
        %v3664 = vadd.f32 %v2640, %v3594
        %v3665 = vadd.f32 %v2641, %v3596
        %v3666 = vadd.f32 %v2642, %v3646
        %v3667 = vadd.f32 %v2643, %v3547
        %v3668 = vadd.f32 %v2644, %v3549
        %v3669 = vadd.f32 %v2645, %v3600
        %v3670 = vadd.f32 %v2646, %v3602
        %v3671 = vadd.f32 %v2647, %v3651
        %v3672 = vadd.f32 %v2648, %v3551
        %v3673 = vadd.f32 %v2649, %v3553
        %v3674 = vadd.f32 %v2650, %v3604
        %v3675 = vadd.f32 %v2651, %v3606
        %v3676 = vadd.f32 %v2652, %v3654
        %v3677 = vmul.f32 %v3657, 0.01
        %v3678 = vmul.f32 %v3658, 0.01
        %v3679 = vmul.f32 %v3659, 0.01
        %v3680 = vmul.f32 %v3660, 0.01
        %v3681 = vmul.f32 %v3661, 0.01
        %v3682 = vmul.f32 %v3662, 0.01
        %v3683 = vmul.f32 %v3663, 0.01
        %v3684 = vmul.f32 %v3664, 0.01
        %v3685 = vmul.f32 %v3665, 0.01
        %v3686 = vmul.f32 %v3666, 0.01
        %v3687 = vmul.f32 %v3667, 0.01
        %v3688 = vmul.f32 %v3668, 0.01
        %v3689 = vmul.f32 %v3669, 0.01
        %v3690 = vmul.f32 %v3670, 0.01
        %v3691 = vmul.f32 %v3671, 0.01
        %v3692 = vmul.f32 %v3672, 0.01
        %v3693 = vmul.f32 %v3673, 0.01
        %v3694 = vmul.f32 %v3674, 0.01
        %v3695 = vmul.f32 %v3675, 0.01
        %v3696 = vmul.f32 %v3676, 0.01
        %v3697 = vmax.f32 %v3657, %v3677
        %v3698 = vmax.f32 %v3658, %v3678
        %v3699 = vmax.f32 %v3659, %v3679
        %v3700 = vmax.f32 %v3660, %v3680
        %v3701 = vmax.f32 %v3661, %v3681
        %v3702 = vmax.f32 %v3662, %v3682
        %v3703 = vmax.f32 %v3663, %v3683
        %v3704 = vmax.f32 %v3664, %v3684
        %v3705 = vmax.f32 %v3665, %v3685
        %v3706 = vmax.f32 %v3666, %v3686
        %v3707 = vmax.f32 %v3667, %v3687
        %v3708 = vmax.f32 %v3668, %v3688
        %v3709 = vmax.f32 %v3669, %v3689
        %v3710 = vmax.f32 %v3670, %v3690
        %v3711 = vmax.f32 %v3671, %v3691
        %v3712 = vmax.f32 %v3672, %v3692
        %v3713 = vmax.f32 %v3673, %v3693
        %v3714 = vmax.f32 %v3674, %v3694
        %v3715 = vmax.f32 %v3675, %v3695
        %v3716 = vmax.f32 %v3676, %v3696
        %3717 = vrot.lane.b32.xlu0 %v3697, 27
        %v3718 = vpop.permute.xlu0 %3717
        %3719 = vrot.lane.b32.xlu0 %v3702, 27
        %v3720 = vpop.permute.xlu0 %3719
        %3721 = vrot.lane.b32.xlu0 %v3707, 27
        %v3722 = vpop.permute.xlu0 %3721
        %3723 = vrot.lane.b32.xlu0 %v3712, 27
        %v3724 = vpop.permute.xlu0 %3723
        %3725 = vrot.lane.b32.xlu0 %v3698, 27
        %v3726 = vpop.permute.xlu0 %3725
        %3727 = vrot.lane.b32.xlu0 %v3703, 27
        %v3728 = vpop.permute.xlu0 %3727
        %3729 = vrot.lane.b32.xlu0 %v3708, 27
        %v3730 = vpop.permute.xlu0 %3729
        %3731 = vrot.lane.b32.xlu0 %v3713, 27
        %v3732 = vpop.permute.xlu0 %3731
        %3733 = vrot.lane.b32.xlu0 %v3699, 27
        %v3734 = vpop.permute.xlu0 %3733
        %3735 = vrot.lane.b32.xlu0 %v3704, 27
        %v3736 = vpop.permute.xlu0 %3735
        %3737 = vrot.lane.b32.xlu0 %v3709, 27
        %v3738 = vpop.permute.xlu0 %3737
        %3739 = vrot.lane.b32.xlu0 %v3714, 27
        %v3740 = vpop.permute.xlu0 %3739
        %3741 = vrot.lane.b32.xlu0 %v3700, 27
        %v3742 = vpop.permute.xlu0 %3741
        %3743 = vrot.lane.b32.xlu0 %v3705, 27
        %v3744 = vpop.permute.xlu0 %3743
        %3745 = vrot.lane.b32.xlu0 %v3710, 27
        %v3746 = vpop.permute.xlu0 %3745
        %3747 = vrot.lane.b32.xlu0 %v3715, 27
        %v3748 = vpop.permute.xlu0 %3747
        %3749 = vrot.lane.b32.xlu0 %v3701, 27
        %v3750 = vpop.permute.xlu0 %3749
        %3751 = vrot.lane.b32.xlu0 %v3706, 27
        %v3752 = vpop.permute.xlu0 %3751
        %3753 = vrot.lane.b32.xlu0 %v3711, 27
        %v3754 = vpop.permute.xlu0 %3753
        %3755 = vrot.lane.b32.xlu0 %v3716, 27
        %v3756 = vpop.permute.xlu0 %3755
        %vm3757 = vcmp.lt.s32.totalorder %v443, 27
        %v3758 = vsel %vm3757, %v3742, %v3750
        %v3759 = vsel %vm3757, %v3744, %v3752
        %v3760 = vsel %vm3757, %v3746, %v3754
        %v3761 = vsel %vm3757, %v3748, %v3756
        %v3762 = vsel %vm3757, %v3734, %v3742
        %v3763 = vsel %vm3757, %v3736, %v3744
        %v3764 = vsel %vm3757, %v3738, %v3746
        %v3765 = vsel %vm3757, %v3740, %v3748
        %v3766 = vsel %vm3757, %v3726, %v3734
        %v3767 = vsel %vm3757, %v3728, %v3736
        %v3768 = vsel %vm3757, %v3730, %v3738
        %v3769 = vsel %vm3757, %v3732, %v3740
        %v3770 = vsel %vm3757, %v3718, %v3726
        %v3771 = vsel %vm3757, %v3720, %v3728
        %v3772 = vsel %vm3757, %v3722, %v3730
        %v3773 = vsel %vm3757, %v3724, %v3732
        %v3774 = vsel %vm3757, %v3750, %v3718
        %v3775 = vsel %vm3757, %v3752, %v3720
        %v3776 = vsel %vm3757, %v3754, %v3722
        %v3777 = vsel %vm3757, %v3756, %v3724
        %v3778 = vsel %vm601, 1, 0
        %v3779 = vsel %vm602, 1, 0
        %v3780 = vsel %vm603, 1, 0
        %v3781 = vsel %vm604, 1, 0
        %v3782 = vsel %vm605, 1, 0
        %vm3783 = vcmp.eq.s32.totalorder %v3778, 1
        %vm3784 = vcmp.eq.s32.totalorder %v3779, 1
        %vm3785 = vcmp.eq.s32.totalorder %v3780, 1
        %vm3786 = vcmp.eq.s32.totalorder %v3781, 1
        %vm3787 = vcmp.eq.s32.totalorder %v3782, 1
        %v3788 = vsel %vm3783, %v3774, 0.0
        %v3789 = vsel %vm3784, %v3770, 0.0
        %v3790 = vsel %vm3785, %v3766, 0.0
        %v3791 = vsel %vm3786, %v3762, 0.0
        %v3792 = vsel %vm3787, %v3758, 0.0
        %v3793 = vsel %vm3783, %v3775, 0.0
        %v3794 = vsel %vm3784, %v3771, 0.0
        %v3795 = vsel %vm3785, %v3767, 0.0
        %v3796 = vsel %vm3786, %v3763, 0.0
        %v3797 = vsel %vm3787, %v3759, 0.0
        %v3798 = vsel %vm3783, %v3776, 0.0
        %v3799 = vsel %vm3784, %v3772, 0.0
        %v3800 = vsel %vm3785, %v3768, 0.0
        %v3801 = vsel %vm3786, %v3764, 0.0
        %v3802 = vsel %vm3787, %v3760, 0.0
        %v3803 = vsel %vm3783, %v3777, 0.0
        %v3804 = vsel %vm3784, %v3773, 0.0
        %v3805 = vsel %vm3785, %v3769, 0.0
        %v3806 = vsel %vm3786, %v3765, 0.0
        %v3807 = vsel %vm3787, %v3761, 0.0
        %v3808 = vpack.c.bf16 %v3793, %v3788
        %v3809 = vpack.c.bf16 %v3794, %v3789
        %v3810 = vpack.c.bf16 %v3795, %v3790
        %v3811 = vpack.c.bf16 %v3796, %v3791
        %v3812 = vpack.c.bf16 %v3797, %v3792
        %v3813 = vpack.c.bf16 %v3803, %v3798
        %v3814 = vpack.c.bf16 %v3804, %v3799
        %v3815 = vpack.c.bf16 %v3805, %v3800
        %v3816 = vpack.c.bf16 %v3806, %v3801
        %v3817 = vpack.c.bf16 %v3807, %v3802
        %3818 = vst [vmem:[#allocation2] sm:$0xff] %v3808
        %3819 = vst [vmem:[#allocation2 + $0x8] sm:$0xff] %v3809
        %3820 = vst [vmem:[#allocation2 + $0x10] sm:$0xff] %v3810
        %3821 = vst [vmem:[#allocation2 + $0x18] sm:$0xff] %v3811
        %3822 = vst [vmem:[#allocation2 + $0x20] sm:$0xff] %v3812
        %3823 = vst [vmem:[#allocation2 + $0x28] sm:$0xff] %v3813
        %3824 = vst [vmem:[#allocation2 + $0x30] sm:$0xff] %v3814
        %3825 = vst [vmem:[#allocation2 + $0x38] sm:$0xff] %v3815
        %3826 = vst [vmem:[#allocation2 + $0x40] sm:$0xff] %v3816
        %3827 = vst [vmem:[#allocation2 + $0x48] sm:$0xff] %v3817
        %v3828 = vpack.c.bf16 %v3702, %v3697
        %v3829 = vpack.c.bf16 %v3703, %v3698
        %v3830 = vpack.c.bf16 %v3704, %v3699
        %v3831 = vpack.c.bf16 %v3705, %v3700
        %v3832 = vpack.c.bf16 %v3706, %v3701
        %v3833 = vpack.c.bf16 %v3712, %v3707
        %v3834 = vpack.c.bf16 %v3713, %v3708
        %v3835 = vpack.c.bf16 %v3714, %v3709
        %v3836 = vpack.c.bf16 %v3715, %v3710
        %v3837 = vpack.c.bf16 %v3716, %v3711
        %3838 = vst [vmem:[#allocation2 + $0x50] sm:$0xff] %v3828
        %3839 = vst [vmem:[#allocation2 + $0x58] sm:$0xff] %v3829
        %3840 = vst [vmem:[#allocation2 + $0x60] sm:$0xff] %v3830
        %3841 = vst [vmem:[#allocation2 + $0x68] sm:$0xff] %v3831
        %3842 = vst [vmem:[#allocation2 + $0x70] sm:$0xff] %v3832
        %3843 = vst [vmem:[#allocation2 + $0x78] sm:$0xff] %v3833
        %3844 = vst [vmem:[#allocation2 + $0x80] sm:$0xff] %v3834
        %3845 = vst [vmem:[#allocation2 + $0x88] sm:$0xff] %v3835
        %3846 = vst [vmem:[#allocation2 + $0x90] sm:$0xff] %v3836
        %3847 = vst [vmem:[#allocation2 + $0x98] sm:$0xff] %v3837
        %3848 = vrot.lane.b32.xlu0 %v3697, 101
        %v3849 = vpop.permute.xlu0 %3848
        %3850 = vrot.lane.b32.xlu0 %v3702, 101
        %v3851 = vpop.permute.xlu0 %3850
        %3852 = vrot.lane.b32.xlu0 %v3707, 101
        %v3853 = vpop.permute.xlu0 %3852
        %3854 = vrot.lane.b32.xlu0 %v3712, 101
        %v3855 = vpop.permute.xlu0 %3854
        %3856 = vrot.lane.b32.xlu0 %v3698, 101
        %v3857 = vpop.permute.xlu0 %3856
        %3858 = vrot.lane.b32.xlu0 %v3703, 101
        %v3859 = vpop.permute.xlu0 %3858
        %3860 = vrot.lane.b32.xlu0 %v3708, 101
        %v3861 = vpop.permute.xlu0 %3860
        %3862 = vrot.lane.b32.xlu0 %v3713, 101
        %v3863 = vpop.permute.xlu0 %3862
        %3864 = vrot.lane.b32.xlu0 %v3699, 101
        %v3865 = vpop.permute.xlu0 %3864
        %3866 = vrot.lane.b32.xlu0 %v3704, 101
        %v3867 = vpop.permute.xlu0 %3866
        %3868 = vrot.lane.b32.xlu0 %v3709, 101
        %v3869 = vpop.permute.xlu0 %3868
        %3870 = vrot.lane.b32.xlu0 %v3714, 101
        %v3871 = vpop.permute.xlu0 %3870
        %3872 = vrot.lane.b32.xlu0 %v3700, 101
        %v3873 = vpop.permute.xlu0 %3872
        %3874 = vrot.lane.b32.xlu0 %v3705, 101
        %v3875 = vpop.permute.xlu0 %3874
        %3876 = vrot.lane.b32.xlu0 %v3710, 101
        %v3877 = vpop.permute.xlu0 %3876
        %3878 = vrot.lane.b32.xlu0 %v3715, 101
        %v3879 = vpop.permute.xlu0 %3878
        %3880 = vrot.lane.b32.xlu0 %v3701, 101
        %v3881 = vpop.permute.xlu0 %3880
        %3882 = vrot.lane.b32.xlu0 %v3706, 101
        %v3883 = vpop.permute.xlu0 %3882
        %3884 = vrot.lane.b32.xlu0 %v3711, 101
        %v3885 = vpop.permute.xlu0 %3884
        %3886 = vrot.lane.b32.xlu0 %v3716, 101
        %v3887 = vpop.permute.xlu0 %3886
        %vm3888 = vcmp.lt.s32.totalorder %v443, 101
        %v3889 = vsel %vm3888, %v3873, %v3881
        %v3890 = vsel %vm3888, %v3875, %v3883
        %v3891 = vsel %vm3888, %v3877, %v3885
        %v3892 = vsel %vm3888, %v3879, %v3887
        %v3893 = vsel %vm3888, %v3865, %v3873
        %v3894 = vsel %vm3888, %v3867, %v3875
        %v3895 = vsel %vm3888, %v3869, %v3877
        %v3896 = vsel %vm3888, %v3871, %v3879
        %v3897 = vsel %vm3888, %v3857, %v3865
        %v3898 = vsel %vm3888, %v3859, %v3867
        %v3899 = vsel %vm3888, %v3861, %v3869
        %v3900 = vsel %vm3888, %v3863, %v3871
        %v3901 = vsel %vm3888, %v3849, %v3857
        %v3902 = vsel %vm3888, %v3851, %v3859
        %v3903 = vsel %vm3888, %v3853, %v3861
        %v3904 = vsel %vm3888, %v3855, %v3863
        %v3905 = vsel %vm3888, %v3881, %v3849
        %v3906 = vsel %vm3888, %v3883, %v3851
        %v3907 = vsel %vm3888, %v3885, %v3853
        %v3908 = vsel %vm3888, %v3887, %v3855
        %v3909 = vsel %vm582, 1, 0
        %v3910 = vsel %vm583, 1, 0
        %v3911 = vsel %vm584, 1, 0
        %v3912 = vsel %vm585, 1, 0
        %v3913 = vsel %vm586, 1, 0
        %vm3914 = vcmp.eq.s32.totalorder %v3909, 1
        %vm3915 = vcmp.eq.s32.totalorder %v3910, 1
        %vm3916 = vcmp.eq.s32.totalorder %v3911, 1
        %vm3917 = vcmp.eq.s32.totalorder %v3912, 1
        %vm3918 = vcmp.eq.s32.totalorder %v3913, 1
        %v3919 = vsel %vm3914, %v3901, 0.0
        %v3920 = vsel %vm3915, %v3897, 0.0
        %v3921 = vsel %vm3916, %v3893, 0.0
        %v3922 = vsel %vm3917, %v3889, 0.0
        %v3923 = vsel %vm3918, %v3905, 0.0
        %v3924 = vsel %vm3914, %v3902, 0.0
        %v3925 = vsel %vm3915, %v3898, 0.0
        %v3926 = vsel %vm3916, %v3894, 0.0
        %v3927 = vsel %vm3917, %v3890, 0.0
        %v3928 = vsel %vm3918, %v3906, 0.0
        %v3929 = vsel %vm3914, %v3903, 0.0
        %v3930 = vsel %vm3915, %v3899, 0.0
        %v3931 = vsel %vm3916, %v3895, 0.0
        %v3932 = vsel %vm3917, %v3891, 0.0
        %v3933 = vsel %vm3918, %v3907, 0.0
        %v3934 = vsel %vm3914, %v3904, 0.0
        %v3935 = vsel %vm3915, %v3900, 0.0
        %v3936 = vsel %vm3916, %v3896, 0.0
        %v3937 = vsel %vm3917, %v3892, 0.0
        %v3938 = vsel %vm3918, %v3908, 0.0
        %v3939 = vpack.c.bf16 %v3924, %v3919
        %v3940 = vpack.c.bf16 %v3925, %v3920
        %v3941 = vpack.c.bf16 %v3926, %v3921
        %v3942 = vpack.c.bf16 %v3927, %v3922
        %v3943 = vpack.c.bf16 %v3928, %v3923
        %v3944 = vpack.c.bf16 %v3934, %v3929
        %v3945 = vpack.c.bf16 %v3935, %v3930
        %v3946 = vpack.c.bf16 %v3936, %v3931
        %v3947 = vpack.c.bf16 %v3937, %v3932
        %v3948 = vpack.c.bf16 %v3938, %v3933
        %3949 = vst [vmem:[#allocation2 + $0xa0] sm:$0xff] %v3939
        %3950 = vst [vmem:[#allocation2 + $0xa8] sm:$0xff] %v3940
        %3951 = vst [vmem:[#allocation2 + $0xb0] sm:$0xff] %v3941
        %3952 = vst [vmem:[#allocation2 + $0xb8] sm:$0xff] %v3942
        %3953 = vst [vmem:[#allocation2 + $0xc0] sm:$0xff] %v3943
        %3954 = vst [vmem:[#allocation2 + $0xc8] sm:$0xff] %v3944
        %3955 = vst [vmem:[#allocation2 + $0xd0] sm:$0xff] %v3945
        %3956 = vst [vmem:[#allocation2 + $0xd8] sm:$0xff] %v3946
        %3957 = vst [vmem:[#allocation2 + $0xe0] sm:$0xff] %v3947
        %3958 = vst [vmem:[#allocation2 + $0xe8] sm:$0xff] %v3948
        %s3959 = scalar_lea.vmem [#allocation3], 96
        %v3960 = vld [vmem:[%s3959] sm:$0xf]
        %v3961 = vld [vmem:[%s3959 + $0x4] sm:$0xf]
        %v3962 = vld [vmem:[%s3959 + $0x8] sm:$0xf]
        %v3963 = vld [vmem:[%s3959 + $0xc] sm:$0xf]
        %v3964 = vld [vmem:[#allocation2] sm:$0xff]
        %v3965 = vld [vmem:[#allocation2 + $0x8] sm:$0xff]
        %v3966 = vld [vmem:[#allocation2 + $0x10] sm:$0xff]
        %v3967 = vld [vmem:[#allocation2 + $0x18] sm:$0xff]
        %v3968 = vld [vmem:[#allocation2 + $0x20] sm:$0xff]
        %v3969 = vld [vmem:[#allocation2 + $0x28] sm:$0xff]
        %v3970 = vld [vmem:[#allocation2 + $0x30] sm:$0xff]
        %v3971 = vld [vmem:[#allocation2 + $0x38] sm:$0xff]
        %v3972 = vld [vmem:[#allocation2 + $0x40] sm:$0xff]
        %v3973 = vld [vmem:[#allocation2 + $0x48] sm:$0xff]
        %v3974 = vld [vmem:[#allocation2 + $0x50] sm:$0xff]
        %v3975 = vld [vmem:[#allocation2 + $0x58] sm:$0xff]
        %v3976 = vld [vmem:[#allocation2 + $0x60] sm:$0xff]
        %v3977 = vld [vmem:[#allocation2 + $0x68] sm:$0xff]
        %v3978 = vld [vmem:[#allocation2 + $0x70] sm:$0xff]
        %v3979 = vld [vmem:[#allocation2 + $0x78] sm:$0xff]
        %v3980 = vld [vmem:[#allocation2 + $0x80] sm:$0xff]
        %v3981 = vld [vmem:[#allocation2 + $0x88] sm:$0xff]
        %v3982 = vld [vmem:[#allocation2 + $0x90] sm:$0xff]
        %v3983 = vld [vmem:[#allocation2 + $0x98] sm:$0xff]
        %v3984 = vld [vmem:[#allocation2 + $0xa0] sm:$0xff]
        %v3985 = vld [vmem:[#allocation2 + $0xa8] sm:$0xff]
        %v3986 = vld [vmem:[#allocation2 + $0xb0] sm:$0xff]
        %v3987 = vld [vmem:[#allocation2 + $0xb8] sm:$0xff]
        %v3988 = vld [vmem:[#allocation2 + $0xc0] sm:$0xff]
        %v3989 = vld [vmem:[#allocation2 + $0xc8] sm:$0xff]
        %v3990 = vld [vmem:[#allocation2 + $0xd0] sm:$0xff]
        %v3991 = vld [vmem:[#allocation2 + $0xd8] sm:$0xff]
        %v3992 = vld [vmem:[#allocation2 + $0xe0] sm:$0xff]
        %v3993 = vld [vmem:[#allocation2 + $0xe8] sm:$0xff]
        %s3994 = scalar_lea.vmem %s1, 192
        %v3995 = vld [vmem:[%s3994] sm:$0xff]
        %v3996 = vld [vmem:[%s3994 + $0x8] sm:$0xff]
        %v3997 = vld [vmem:[%s3994 + $0x10] sm:$0xff]
        %v3998 = vld [vmem:[%s3994 + $0x18] sm:$0xff]
        %4000 = vset.pattern.permute.xlu0 0
        %4001 = vperm.xlu0 %4000, %v3995
        %v4002 = vpop.permute.xlu0 %4001
        %4005 = vset.pattern.permute.xlu0 0
        %4006 = vperm.xlu0 %4005, %v3996
        %v4007 = vpop.permute.xlu0 %4006
        %4010 = vset.pattern.permute.xlu0 0
        %4011 = vperm.xlu0 %4010, %v3997
        %v4012 = vpop.permute.xlu0 %4011
        %4015 = vset.pattern.permute.xlu0 0
        %4016 = vperm.xlu0 %4015, %v3998
        %v4017 = vpop.permute.xlu0 %4016
        %v4023 = vunpack.c.l.b16 %v3960
        %v4024 = vunpack.c.l.b16 %v3961
        %v4025 = vunpack.c.l.b16 %v3962
        %v4026 = vunpack.c.l.b16 %v3963
        %v4027 = vpack.c.b16 %v4024, %v4023
        %v4028 = vpack.c.b16 %v4026, %v4025
        %v4030 = vsel %vm956, %v4027, 0
        %v4033 = vsel %vm956, %v4028, 0
        %4035 = vmatprep.subr.bf16.mxu0 %v3965
        %4036 = vmatpush1.bf16.msra.mxu0 %v3964
        %4037 = vmatprep.subr.bf16.mxu0 %v3970
        %4038 = vmatpush1.bf16.msra.mxu0 %v3969
        %4039 = vmatprep.subr.bf16.mxu0 %v3975
        %4040 = vmatpush1.bf16.msra.mxu0 %v3974
        %4041 = vmatprep.subr.bf16.mxu0 %v3980
        %4042 = vmatpush1.bf16.msra.mxu0 %v3979
        %4043 = vmatprep.subr.bf16.mxu0 %v3985
        %4044 = vmatpush1.bf16.msra.mxu0 %v3984
        %4045 = vmatprep.subr.bf16.mxu0 %v3990
        %4046 = vmatpush1.bf16.msra.mxu0 %v3989
        %4047 = vmatprep.subr.bf16.mxu0 0
        %4048 = vmatpush1.bf16.msra.mxu0 0
        %4049 = vmatprep.subr.bf16.mxu0 0
        %4050 = vmatpush1.bf16.msra.mxu0 0
        %4051 = vmatprep.subr.bf16.mxu0 0
        %4052 = vmatpush1.bf16.msra.mxu0 0
        %4053 = vmatprep.subr.bf16.mxu0 0
        %4054 = vmatpush1.bf16.msra.mxu0 0
        %4055 = vmatprep.subr.bf16.mxu0 0
        %4056 = vmatpush1.bf16.msra.mxu0 0
        %4057 = vmatprep.subr.bf16.mxu0 0
        %4058 = vmatpush1.bf16.msra.mxu0 0
        %4059 = vmatprep.subr.bf16.mxu0 0
        %4060 = vmatpush1.bf16.msra.mxu0 0
        %4061 = vmatprep.subr.bf16.mxu0 0
        %4062 = vmatpush1.bf16.msra.mxu0 0
        %4063 = vmatprep.subr.bf16.mxu0 0
        %4064 = vmatpush1.bf16.msra.mxu0 0
        %4065 = vmatprep.subr.bf16.mxu0 0
        %4066 = vmatpush1.bf16.msra.mxu0 0
        %4067 = vmatprep.mubr.bf16.mxu0 0
        %4068 = vmatmul.mubr.bf16.gmra.mrb[0].mxu0 %v4030
        %v4069 = vpop.f32.mrb[0].mxu0
        %v4070 = vadd.f32 %v4002, %v4069
        %v4071 = vpop.f32.mrb[0].mxu0
        %v4072 = vadd.f32 %v4002, %v4071
        %v4073 = vpop.f32.mrb[0].mxu0
        %v4074 = vadd.f32 %v4007, %v4073
        %v4075 = vpop.f32.mrb[0].mxu0
        %v4076 = vadd.f32 %v4007, %v4075
        %4077 = vmatprep.mubr.bf16.mxu0 0
        %4078 = vmatmul.mubr.bf16.gmra.mrb[0].mxu0 %v4033
        %v4079 = vpop.f32.mrb[0].mxu0
        %v4080 = vadd.f32 %v4012, %v4079
        %v4081 = vpop.f32.mrb[0].mxu0
        %v4082 = vadd.f32 %v4012, %v4081
        %v4083 = vpop.f32.mrb[0].mxu0
        %v4084 = vadd.f32 %v4017, %v4083
        %v4085 = vpop.f32.mrb[0].mxu0
        %v4086 = vadd.f32 %v4017, %v4085
        %4087 = vdwg.mxu0
        %4088 = vmatprep.subr.bf16.mxu0 %v3967
        %4089 = vmatpush1.bf16.msra.mxu0 %v3966
        %4090 = vmatprep.subr.bf16.mxu0 %v3972
        %4091 = vmatpush1.bf16.msra.mxu0 %v3971
        %4092 = vmatprep.subr.bf16.mxu0 %v3977
        %4093 = vmatpush1.bf16.msra.mxu0 %v3976
        %4094 = vmatprep.subr.bf16.mxu0 %v3982
        %4095 = vmatpush1.bf16.msra.mxu0 %v3981
        %4096 = vmatprep.subr.bf16.mxu0 %v3987
        %4097 = vmatpush1.bf16.msra.mxu0 %v3986
        %4098 = vmatprep.subr.bf16.mxu0 %v3992
        %4099 = vmatpush1.bf16.msra.mxu0 %v3991
        %4100 = vmatprep.subr.bf16.mxu0 0
        %4101 = vmatpush1.bf16.msra.mxu0 0
        %4102 = vmatprep.subr.bf16.mxu0 0
        %4103 = vmatpush1.bf16.msra.mxu0 0
        %4104 = vmatprep.subr.bf16.mxu0 0
        %4105 = vmatpush1.bf16.msra.mxu0 0
        %4106 = vmatprep.subr.bf16.mxu0 0
        %4107 = vmatpush1.bf16.msra.mxu0 0
        %4108 = vmatprep.subr.bf16.mxu0 0
        %4109 = vmatpush1.bf16.msra.mxu0 0
        %4110 = vmatprep.subr.bf16.mxu0 0
        %4111 = vmatpush1.bf16.msra.mxu0 0
        %4112 = vmatprep.subr.bf16.mxu0 0
        %4113 = vmatpush1.bf16.msra.mxu0 0
        %4114 = vmatprep.subr.bf16.mxu0 0
        %4115 = vmatpush1.bf16.msra.mxu0 0
        %4116 = vmatprep.subr.bf16.mxu0 0
        %4117 = vmatpush1.bf16.msra.mxu0 0
        %4118 = vmatprep.subr.bf16.mxu0 0
        %4119 = vmatpush1.bf16.msra.mxu0 0
        %4120 = vmatprep.mubr.bf16.mxu0 0
        %4121 = vmatmul.mubr.bf16.gmra.mrb[0].mxu0 %v4030
        %v4122 = vpop.f32.mrb[0].mxu0
        %v4123 = vadd.f32 %v4002, %v4122
        %v4124 = vpop.f32.mrb[0].mxu0
        %v4125 = vadd.f32 %v4002, %v4124
        %v4126 = vpop.f32.mrb[0].mxu0
        %v4127 = vadd.f32 %v4007, %v4126
        %v4128 = vpop.f32.mrb[0].mxu0
        %v4129 = vadd.f32 %v4007, %v4128
        %4130 = vmatprep.mubr.bf16.mxu0 0
        %4131 = vmatmul.mubr.bf16.gmra.mrb[0].mxu0 %v4033
        %v4132 = vpop.f32.mrb[0].mxu0
        %v4133 = vadd.f32 %v4012, %v4132
        %v4134 = vpop.f32.mrb[0].mxu0
        %v4135 = vadd.f32 %v4012, %v4134
        %v4136 = vpop.f32.mrb[0].mxu0
        %v4137 = vadd.f32 %v4017, %v4136
        %v4138 = vpop.f32.mrb[0].mxu0
        %v4139 = vadd.f32 %v4017, %v4138
        %4140 = vdwg.mxu0
        %4141 = vmatprep.subr.bf16.mxu0 0
        %4142 = vmatpush1.bf16.msra.mxu0 %v3968
        %4143 = vmatprep.subr.bf16.mxu0 0
        %4144 = vmatpush1.bf16.msra.mxu0 %v3973
        %4145 = vmatprep.subr.bf16.mxu0 0
        %4146 = vmatpush1.bf16.msra.mxu0 %v3978
        %4147 = vmatprep.subr.bf16.mxu0 0
        %4148 = vmatpush1.bf16.msra.mxu0 %v3983
        %4149 = vmatprep.subr.bf16.mxu0 0
        %4150 = vmatpush1.bf16.msra.mxu0 %v3988
        %4151 = vmatprep.subr.bf16.mxu0 0
        %4152 = vmatpush1.bf16.msra.mxu0 %v3993
        %4153 = vmatprep.subr.bf16.mxu0 0
        %4154 = vmatpush1.bf16.msra.mxu0 0
        %4155 = vmatprep.subr.bf16.mxu0 0
        %4156 = vmatpush1.bf16.msra.mxu0 0
        %4157 = vmatprep.subr.bf16.mxu0 0
        %4158 = vmatpush1.bf16.msra.mxu0 0
        %4159 = vmatprep.subr.bf16.mxu0 0
        %4160 = vmatpush1.bf16.msra.mxu0 0
        %4161 = vmatprep.subr.bf16.mxu0 0
        %4162 = vmatpush1.bf16.msra.mxu0 0
        %4163 = vmatprep.subr.bf16.mxu0 0
        %4164 = vmatpush1.bf16.msra.mxu0 0
        %4165 = vmatprep.subr.bf16.mxu0 0
        %4166 = vmatpush1.bf16.msra.mxu0 0
        %4167 = vmatprep.subr.bf16.mxu0 0
        %4168 = vmatpush1.bf16.msra.mxu0 0
        %4169 = vmatprep.subr.bf16.mxu0 0
        %4170 = vmatpush1.bf16.msra.mxu0 0
        %4171 = vmatprep.subr.bf16.mxu0 0
        %4172 = vmatpush1.bf16.msra.mxu0 0
        %4173 = vmatprep.mubr.bf16.mxu0 0
        %4174 = vmatmul.mubr.bf16.gmra.mrb[0].mxu0 %v4030
        %v4175 = vpop.f32.mrb[0].mxu0
        %v4176 = vadd.f32 %v4002, %v4175
        %v4177 = vpop.f32.mrb[0].mxu0
        %v4178 = vpop.f32.mrb[0].mxu0
        %v4179 = vadd.f32 %v4007, %v4178
        %v4180 = vpop.f32.mrb[0].mxu0
        %4181 = vmatprep.mubr.bf16.mxu0 0
        %4182 = vmatmul.mubr.bf16.gmra.mrb[0].mxu0 %v4033
        %v4183 = vpop.f32.mrb[0].mxu0
        %v4184 = vadd.f32 %v4012, %v4183
        %v4185 = vpop.f32.mrb[0].mxu0
        %v4186 = vpop.f32.mrb[0].mxu0
        %v4187 = vadd.f32 %v4017, %v4186
        %v4188 = vpop.f32.mrb[0].mxu0
        %4189 = vdwg.mxu0
        %v4190 = vmul.f32 %v4070, 0.01
        %v4191 = vmul.f32 %v4072, 0.01
        %v4192 = vmul.f32 %v4123, 0.01
        %v4193 = vmul.f32 %v4125, 0.01
        %v4194 = vmul.f32 %v4176, 0.01
        %v4195 = vmul.f32 %v4074, 0.01
        %v4196 = vmul.f32 %v4076, 0.01
        %v4197 = vmul.f32 %v4127, 0.01
        %v4198 = vmul.f32 %v4129, 0.01
        %v4199 = vmul.f32 %v4179, 0.01
        %v4200 = vmul.f32 %v4080, 0.01
        %v4201 = vmul.f32 %v4082, 0.01
        %v4202 = vmul.f32 %v4133, 0.01
        %v4203 = vmul.f32 %v4135, 0.01
        %v4204 = vmul.f32 %v4184, 0.01
        %v4205 = vmul.f32 %v4084, 0.01
        %v4206 = vmul.f32 %v4086, 0.01
        %v4207 = vmul.f32 %v4137, 0.01
        %v4208 = vmul.f32 %v4139, 0.01
        %v4209 = vmul.f32 %v4187, 0.01
        %v4210 = vmax.f32 %v4070, %v4190
        %v4211 = vmax.f32 %v4072, %v4191
        %v4212 = vmax.f32 %v4123, %v4192
        %v4213 = vmax.f32 %v4125, %v4193
        %v4214 = vmax.f32 %v4176, %v4194
        %v4215 = vmax.f32 %v4074, %v4195
        %v4216 = vmax.f32 %v4076, %v4196
        %v4217 = vmax.f32 %v4127, %v4197
        %v4218 = vmax.f32 %v4129, %v4198
        %v4219 = vmax.f32 %v4179, %v4199
        %v4220 = vmax.f32 %v4080, %v4200
        %v4221 = vmax.f32 %v4082, %v4201
        %v4222 = vmax.f32 %v4133, %v4202
        %v4223 = vmax.f32 %v4135, %v4203
        %v4224 = vmax.f32 %v4184, %v4204
        %v4225 = vmax.f32 %v4084, %v4205
        %v4226 = vmax.f32 %v4086, %v4206
        %v4227 = vmax.f32 %v4137, %v4207
        %v4228 = vmax.f32 %v4139, %v4208
        %v4229 = vmax.f32 %v4187, %v4209
        %4230 = vrot.lane.b32.xlu0 %v4210, 1
        %v4231 = vpop.permute.xlu0 %4230
        %4232 = vrot.lane.b32.xlu0 %v4215, 1
        %v4233 = vpop.permute.xlu0 %4232
        %4234 = vrot.lane.b32.xlu0 %v4220, 1
        %v4235 = vpop.permute.xlu0 %4234
        %4236 = vrot.lane.b32.xlu0 %v4225, 1
        %v4237 = vpop.permute.xlu0 %4236
        %4238 = vrot.lane.b32.xlu0 %v4211, 1
        %v4239 = vpop.permute.xlu0 %4238
        %4240 = vrot.lane.b32.xlu0 %v4216, 1
        %v4241 = vpop.permute.xlu0 %4240
        %4242 = vrot.lane.b32.xlu0 %v4221, 1
        %v4243 = vpop.permute.xlu0 %4242
        %4244 = vrot.lane.b32.xlu0 %v4226, 1
        %v4245 = vpop.permute.xlu0 %4244
        %4246 = vrot.lane.b32.xlu0 %v4212, 1
        %v4247 = vpop.permute.xlu0 %4246
        %4248 = vrot.lane.b32.xlu0 %v4217, 1
        %v4249 = vpop.permute.xlu0 %4248
        %4250 = vrot.lane.b32.xlu0 %v4222, 1
        %v4251 = vpop.permute.xlu0 %4250
        %4252 = vrot.lane.b32.xlu0 %v4227, 1
        %v4253 = vpop.permute.xlu0 %4252
        %4254 = vrot.lane.b32.xlu0 %v4213, 1
        %v4255 = vpop.permute.xlu0 %4254
        %4256 = vrot.lane.b32.xlu0 %v4218, 1
        %v4257 = vpop.permute.xlu0 %4256
        %4258 = vrot.lane.b32.xlu0 %v4223, 1
        %v4259 = vpop.permute.xlu0 %4258
        %4260 = vrot.lane.b32.xlu0 %v4228, 1
        %v4261 = vpop.permute.xlu0 %4260
        %4262 = vrot.lane.b32.xlu0 %v4214, 1
        %v4263 = vpop.permute.xlu0 %4262
        %4264 = vrot.lane.b32.xlu0 %v4219, 1
        %v4265 = vpop.permute.xlu0 %4264
        %4266 = vrot.lane.b32.xlu0 %v4224, 1
        %v4267 = vpop.permute.xlu0 %4266
        %4268 = vrot.lane.b32.xlu0 %v4229, 1
        %v4269 = vpop.permute.xlu0 %4268
        %v4270 = vsel %vm686, %v4255, %v4263
        %v4271 = vsel %vm686, %v4257, %v4265
        %v4272 = vsel %vm686, %v4259, %v4267
        %v4273 = vsel %vm686, %v4261, %v4269
        %v4274 = vsel %vm686, %v4247, %v4255
        %v4275 = vsel %vm686, %v4249, %v4257
        %v4276 = vsel %vm686, %v4251, %v4259
        %v4277 = vsel %vm686, %v4253, %v4261
        %v4278 = vsel %vm686, %v4239, %v4247
        %v4279 = vsel %vm686, %v4241, %v4249
        %v4280 = vsel %vm686, %v4243, %v4251
        %v4281 = vsel %vm686, %v4245, %v4253
        %v4282 = vsel %vm686, %v4231, %v4239
        %v4283 = vsel %vm686, %v4233, %v4241
        %v4284 = vsel %vm686, %v4235, %v4243
        %v4285 = vsel %vm686, %v4237, %v4245
        %v4286 = vsel %vm686, %v4263, %v4231
        %v4287 = vsel %vm686, %v4265, %v4233
        %v4288 = vsel %vm686, %v4267, %v4235
        %v4289 = vsel %vm686, %v4269, %v4237
        %v4290 = vsel %vm712, %v4286, 0.0
        %v4291 = vsel %vm713, %v4282, 0.0
        %v4292 = vsel %vm714, %v4278, 0.0
        %v4293 = vsel %vm715, %v4274, 0.0
        %v4294 = vsel %vm716, %v4270, 0.0
        %v4295 = vsel %vm712, %v4287, 0.0
        %v4296 = vsel %vm713, %v4283, 0.0
        %v4297 = vsel %vm714, %v4279, 0.0
        %v4298 = vsel %vm715, %v4275, 0.0
        %v4299 = vsel %vm716, %v4271, 0.0
        %v4300 = vsel %vm712, %v4288, 0.0
        %v4301 = vsel %vm713, %v4284, 0.0
        %v4302 = vsel %vm714, %v4280, 0.0
        %v4303 = vsel %vm715, %v4276, 0.0
        %v4304 = vsel %vm716, %v4272, 0.0
        %v4305 = vsel %vm712, %v4289, 0.0
        %v4306 = vsel %vm713, %v4285, 0.0
        %v4307 = vsel %vm714, %v4281, 0.0
        %v4308 = vsel %vm715, %v4277, 0.0
        %v4309 = vsel %vm716, %v4273, 0.0
        %v4310 = vpack.c.bf16 %v4295, %v4290
        %v4311 = vpack.c.bf16 %v4296, %v4291
        %v4312 = vpack.c.bf16 %v4297, %v4292
        %v4313 = vpack.c.bf16 %v4298, %v4293
        %v4314 = vpack.c.bf16 %v4299, %v4294
        %v4315 = vpack.c.bf16 %v4305, %v4300
        %v4316 = vpack.c.bf16 %v4306, %v4301
        %v4317 = vpack.c.bf16 %v4307, %v4302
        %v4318 = vpack.c.bf16 %v4308, %v4303
        %v4319 = vpack.c.bf16 %v4309, %v4304
        %4320 = vst [vmem:[#allocation2] sm:$0xff] %v4310
        %4321 = vst [vmem:[#allocation2 + $0x8] sm:$0xff] %v4311
        %4322 = vst [vmem:[#allocation2 + $0x10] sm:$0xff] %v4312
        %4323 = vst [vmem:[#allocation2 + $0x18] sm:$0xff] %v4313
        %4324 = vst [vmem:[#allocation2 + $0x20] sm:$0xff] %v4314
        %4325 = vst [vmem:[#allocation2 + $0x28] sm:$0xff] %v4315
        %4326 = vst [vmem:[#allocation2 + $0x30] sm:$0xff] %v4316
        %4327 = vst [vmem:[#allocation2 + $0x38] sm:$0xff] %v4317
        %4328 = vst [vmem:[#allocation2 + $0x40] sm:$0xff] %v4318
        %4329 = vst [vmem:[#allocation2 + $0x48] sm:$0xff] %v4319
        %v4330 = vpack.c.bf16 %v4215, %v4210
        %v4331 = vpack.c.bf16 %v4216, %v4211
        %v4332 = vpack.c.bf16 %v4217, %v4212
        %v4333 = vpack.c.bf16 %v4218, %v4213
        %v4334 = vpack.c.bf16 %v4219, %v4214
        %v4335 = vpack.c.bf16 %v4225, %v4220
        %v4336 = vpack.c.bf16 %v4226, %v4221
        %v4337 = vpack.c.bf16 %v4227, %v4222
        %v4338 = vpack.c.bf16 %v4228, %v4223
        %v4339 = vpack.c.bf16 %v4229, %v4224
        %4340 = vst [vmem:[#allocation2 + $0x50] sm:$0xff] %v4330
        %4341 = vst [vmem:[#allocation2 + $0x58] sm:$0xff] %v4331
        %4342 = vst [vmem:[#allocation2 + $0x60] sm:$0xff] %v4332
        %4343 = vst [vmem:[#allocation2 + $0x68] sm:$0xff] %v4333
        %4344 = vst [vmem:[#allocation2 + $0x70] sm:$0xff] %v4334
        %4345 = vst [vmem:[#allocation2 + $0x78] sm:$0xff] %v4335
        %4346 = vst [vmem:[#allocation2 + $0x80] sm:$0xff] %v4336
        %4347 = vst [vmem:[#allocation2 + $0x88] sm:$0xff] %v4337
        %4348 = vst [vmem:[#allocation2 + $0x90] sm:$0xff] %v4338
        %4349 = vst [vmem:[#allocation2 + $0x98] sm:$0xff] %v4339
        %4350 = vrot.lane.b32.xlu0 %v4210, 127
        %v4351 = vpop.permute.xlu0 %4350
        %4352 = vrot.lane.b32.xlu0 %v4215, 127
        %v4353 = vpop.permute.xlu0 %4352
        %4354 = vrot.lane.b32.xlu0 %v4220, 127
        %v4355 = vpop.permute.xlu0 %4354
        %4356 = vrot.lane.b32.xlu0 %v4225, 127
        %v4357 = vpop.permute.xlu0 %4356
        %4358 = vrot.lane.b32.xlu0 %v4211, 127
        %v4359 = vpop.permute.xlu0 %4358
        %4360 = vrot.lane.b32.xlu0 %v4216, 127
        %v4361 = vpop.permute.xlu0 %4360
        %4362 = vrot.lane.b32.xlu0 %v4221, 127
        %v4363 = vpop.permute.xlu0 %4362
        %4364 = vrot.lane.b32.xlu0 %v4226, 127
        %v4365 = vpop.permute.xlu0 %4364
        %4366 = vrot.lane.b32.xlu0 %v4212, 127
        %v4367 = vpop.permute.xlu0 %4366
        %4368 = vrot.lane.b32.xlu0 %v4217, 127
        %v4369 = vpop.permute.xlu0 %4368
        %4370 = vrot.lane.b32.xlu0 %v4222, 127
        %v4371 = vpop.permute.xlu0 %4370
        %4372 = vrot.lane.b32.xlu0 %v4227, 127
        %v4373 = vpop.permute.xlu0 %4372
        %4374 = vrot.lane.b32.xlu0 %v4213, 127
        %v4375 = vpop.permute.xlu0 %4374
        %4376 = vrot.lane.b32.xlu0 %v4218, 127
        %v4377 = vpop.permute.xlu0 %4376
        %4378 = vrot.lane.b32.xlu0 %v4223, 127
        %v4379 = vpop.permute.xlu0 %4378
        %4380 = vrot.lane.b32.xlu0 %v4228, 127
        %v4381 = vpop.permute.xlu0 %4380
        %4382 = vrot.lane.b32.xlu0 %v4214, 127
        %v4383 = vpop.permute.xlu0 %4382
        %4384 = vrot.lane.b32.xlu0 %v4219, 127
        %v4385 = vpop.permute.xlu0 %4384
        %4386 = vrot.lane.b32.xlu0 %v4224, 127
        %v4387 = vpop.permute.xlu0 %4386
        %4388 = vrot.lane.b32.xlu0 %v4229, 127
        %v4389 = vpop.permute.xlu0 %4388
        %v4390 = vsel %vm817, %v4375, %v4383
        %v4391 = vsel %vm817, %v4377, %v4385
        %v4392 = vsel %vm817, %v4379, %v4387
        %v4393 = vsel %vm817, %v4381, %v4389
        %v4394 = vsel %vm817, %v4367, %v4375
        %v4395 = vsel %vm817, %v4369, %v4377
        %v4396 = vsel %vm817, %v4371, %v4379
        %v4397 = vsel %vm817, %v4373, %v4381
        %v4398 = vsel %vm817, %v4359, %v4367
        %v4399 = vsel %vm817, %v4361, %v4369
        %v4400 = vsel %vm817, %v4363, %v4371
        %v4401 = vsel %vm817, %v4365, %v4373
        %v4402 = vsel %vm817, %v4351, %v4359
        %v4403 = vsel %vm817, %v4353, %v4361
        %v4404 = vsel %vm817, %v4355, %v4363
        %v4405 = vsel %vm817, %v4357, %v4365
        %v4406 = vsel %vm817, %v4383, %v4351
        %v4407 = vsel %vm817, %v4385, %v4353
        %v4408 = vsel %vm817, %v4387, %v4355
        %v4409 = vsel %vm817, %v4389, %v4357
        %v4410 = vsel %vm843, %v4402, 0.0
        %v4411 = vsel %vm844, %v4398, 0.0
        %v4412 = vsel %vm845, %v4394, 0.0
        %v4413 = vsel %vm846, %v4390, 0.0
        %v4414 = vsel %vm847, %v4406, 0.0
        %v4415 = vsel %vm843, %v4403, 0.0
        %v4416 = vsel %vm844, %v4399, 0.0
        %v4417 = vsel %vm845, %v4395, 0.0
        %v4418 = vsel %vm846, %v4391, 0.0
        %v4419 = vsel %vm847, %v4407, 0.0
        %v4420 = vsel %vm843, %v4404, 0.0
        %v4421 = vsel %vm844, %v4400, 0.0
        %v4422 = vsel %vm845, %v4396, 0.0
        %v4423 = vsel %vm846, %v4392, 0.0
        %v4424 = vsel %vm847, %v4408, 0.0
        %v4425 = vsel %vm843, %v4405, 0.0
        %v4426 = vsel %vm844, %v4401, 0.0
        %v4427 = vsel %vm845, %v4397, 0.0
        %v4428 = vsel %vm846, %v4393, 0.0
        %v4429 = vsel %vm847, %v4409, 0.0
        %v4430 = vpack.c.bf16 %v4415, %v4410
        %v4431 = vpack.c.bf16 %v4416, %v4411
        %v4432 = vpack.c.bf16 %v4417, %v4412
        %v4433 = vpack.c.bf16 %v4418, %v4413
        %v4434 = vpack.c.bf16 %v4419, %v4414
        %v4435 = vpack.c.bf16 %v4425, %v4420
        %v4436 = vpack.c.bf16 %v4426, %v4421
        %v4437 = vpack.c.bf16 %v4427, %v4422
        %v4438 = vpack.c.bf16 %v4428, %v4423
        %v4439 = vpack.c.bf16 %v4429, %v4424
        %4440 = vst [vmem:[#allocation2 + $0xa0] sm:$0xff] %v4430
        %4441 = vst [vmem:[#allocation2 + $0xa8] sm:$0xff] %v4431
        %4442 = vst [vmem:[#allocation2 + $0xb0] sm:$0xff] %v4432
        %4443 = vst [vmem:[#allocation2 + $0xb8] sm:$0xff] %v4433
        %4444 = vst [vmem:[#allocation2 + $0xc0] sm:$0xff] %v4434
        %4445 = vst [vmem:[#allocation2 + $0xc8] sm:$0xff] %v4435
        %4446 = vst [vmem:[#allocation2 + $0xd0] sm:$0xff] %v4436
        %4447 = vst [vmem:[#allocation2 + $0xd8] sm:$0xff] %v4437
        %4448 = vst [vmem:[#allocation2 + $0xe0] sm:$0xff] %v4438
        %4449 = vst [vmem:[#allocation2 + $0xe8] sm:$0xff] %v4439
        %s4450 = scalar_lea.vmem [#allocation3], 112
        %v4451 = vld [vmem:[%s4450] sm:$0xf]
        %v4452 = vld [vmem:[%s4450 + $0x4] sm:$0xf]
        %v4453 = vld [vmem:[%s4450 + $0x8] sm:$0xf]
        %v4454 = vld [vmem:[%s4450 + $0xc] sm:$0xf]
        %v4455 = vld [vmem:[#allocation2] sm:$0xff]
        %v4456 = vld [vmem:[#allocation2 + $0x8] sm:$0xff]
        %v4457 = vld [vmem:[#allocation2 + $0x10] sm:$0xff]
        %v4458 = vld [vmem:[#allocation2 + $0x18] sm:$0xff]
        %v4459 = vld [vmem:[#allocation2 + $0x28] sm:$0xff]
        %v4460 = vld [vmem:[#allocation2 + $0x30] sm:$0xff]
        %v4461 = vld [vmem:[#allocation2 + $0x38] sm:$0xff]
        %v4462 = vld [vmem:[#allocation2 + $0x40] sm:$0xff]
        %v4463 = vld [vmem:[#allocation2 + $0x50] sm:$0xff]
        %v4464 = vld [vmem:[#allocation2 + $0x58] sm:$0xff]
        %v4465 = vld [vmem:[#allocation2 + $0x60] sm:$0xff]
        %v4466 = vld [vmem:[#allocation2 + $0x68] sm:$0xff]
        %v4467 = vld [vmem:[#allocation2 + $0x78] sm:$0xff]
        %v4468 = vld [vmem:[#allocation2 + $0x80] sm:$0xff]
        %v4469 = vld [vmem:[#allocation2 + $0x88] sm:$0xff]
        %v4470 = vld [vmem:[#allocation2 + $0x90] sm:$0xff]
        %v4471 = vld [vmem:[#allocation2 + $0xa0] sm:$0xff]
        %v4472 = vld [vmem:[#allocation2 + $0xa8] sm:$0xff]
        %v4473 = vld [vmem:[#allocation2 + $0xb0] sm:$0xff]
        %v4474 = vld [vmem:[#allocation2 + $0xb8] sm:$0xff]
        %v4475 = vld [vmem:[#allocation2 + $0xc8] sm:$0xff]
        %v4476 = vld [vmem:[#allocation2 + $0xd0] sm:$0xff]
        %v4477 = vld [vmem:[#allocation2 + $0xd8] sm:$0xff]
        %v4478 = vld [vmem:[#allocation2 + $0xe0] sm:$0xff]
        %s4479 = scalar_lea.vmem %s1, 224
        %v4480 = vld [vmem:[%s4479] sm:$0xff]
        %v4481 = vld [vmem:[%s4479 + $0x8] sm:$0xff]
        %v4482 = vld [vmem:[%s4479 + $0x10] sm:$0xff]
        %v4483 = vld [vmem:[%s4479 + $0x18] sm:$0xff]
        %4485 = vset.pattern.permute.xlu0 0
        %4486 = vperm.xlu0 %4485, %v4480
        %v4487 = vpop.permute.xlu0 %4486
        %4490 = vset.pattern.permute.xlu0 0
        %4491 = vperm.xlu0 %4490, %v4481
        %v4492 = vpop.permute.xlu0 %4491
        %4495 = vset.pattern.permute.xlu0 0
        %4496 = vperm.xlu0 %4495, %v4482
        %v4497 = vpop.permute.xlu0 %4496
        %4500 = vset.pattern.permute.xlu0 0
        %4501 = vperm.xlu0 %4500, %v4483
        %v4502 = vpop.permute.xlu0 %4501
        %v4508 = vunpack.c.l.b16 %v4451
        %v4509 = vunpack.c.l.b16 %v4452
        %v4510 = vunpack.c.l.b16 %v4453
        %v4511 = vunpack.c.l.b16 %v4454
        %v4512 = vpack.c.b16 %v4509, %v4508
        %v4513 = vpack.c.b16 %v4511, %v4510
        %v4515 = vsel %vm956, %v4512, 0
        %v4518 = vsel %vm956, %v4513, 0
        %4520 = vmatprep.subr.bf16.mxu0 %v4456
        %4521 = vmatpush1.bf16.msra.mxu0 %v4455
        %4522 = vmatprep.subr.bf16.mxu0 %v4460
        %4523 = vmatpush1.bf16.msra.mxu0 %v4459
        %4524 = vmatprep.subr.bf16.mxu0 %v4464
        %4525 = vmatpush1.bf16.msra.mxu0 %v4463
        %4526 = vmatprep.subr.bf16.mxu0 %v4468
        %4527 = vmatpush1.bf16.msra.mxu0 %v4467
        %4528 = vmatprep.subr.bf16.mxu0 %v4472
        %4529 = vmatpush1.bf16.msra.mxu0 %v4471
        %4530 = vmatprep.subr.bf16.mxu0 %v4476
        %4531 = vmatpush1.bf16.msra.mxu0 %v4475
        %4532 = vmatprep.subr.bf16.mxu0 0
        %4533 = vmatpush1.bf16.msra.mxu0 0
        %4534 = vmatprep.subr.bf16.mxu0 0
        %4535 = vmatpush1.bf16.msra.mxu0 0
        %4536 = vmatprep.subr.bf16.mxu0 0
        %4537 = vmatpush1.bf16.msra.mxu0 0
        %4538 = vmatprep.subr.bf16.mxu0 0
        %4539 = vmatpush1.bf16.msra.mxu0 0
        %4540 = vmatprep.subr.bf16.mxu0 0
        %4541 = vmatpush1.bf16.msra.mxu0 0
        %4542 = vmatprep.subr.bf16.mxu0 0
        %4543 = vmatpush1.bf16.msra.mxu0 0
        %4544 = vmatprep.subr.bf16.mxu0 0
        %4545 = vmatpush1.bf16.msra.mxu0 0
        %4546 = vmatprep.subr.bf16.mxu0 0
        %4547 = vmatpush1.bf16.msra.mxu0 0
        %4548 = vmatprep.subr.bf16.mxu0 0
        %4549 = vmatpush1.bf16.msra.mxu0 0
        %4550 = vmatprep.subr.bf16.mxu0 0
        %4551 = vmatpush1.bf16.msra.mxu0 0
        %4552 = vmatprep.mubr.bf16.mxu0 0
        %4553 = vmatmul.mubr.bf16.gmra.mrb[0].mxu0 %v4515
        %v4554 = vpop.f32.mrb[0].mxu0
        %v4555 = vpop.f32.mrb[0].mxu0
        %v4556 = vadd.f32 %v4487, %v4555
        %v4557 = vpop.f32.mrb[0].mxu0
        %v4558 = vpop.f32.mrb[0].mxu0
        %v4559 = vadd.f32 %v4492, %v4558
        %4560 = vmatprep.mubr.bf16.mxu0 0
        %4561 = vmatmul.mubr.bf16.gmra.mrb[0].mxu0 %v4518
        %v4562 = vpop.f32.mrb[0].mxu0
        %v4563 = vpop.f32.mrb[0].mxu0
        %v4564 = vadd.f32 %v4497, %v4563
        %v4565 = vpop.f32.mrb[0].mxu0
        %v4566 = vpop.f32.mrb[0].mxu0
        %v4567 = vadd.f32 %v4502, %v4566
        %4568 = vdwg.mxu0
        %4569 = vmatprep.subr.bf16.mxu0 %v4458
        %4570 = vmatpush1.bf16.msra.mxu0 %v4457
        %4571 = vmatprep.subr.bf16.mxu0 %v4462
        %4572 = vmatpush1.bf16.msra.mxu0 %v4461
        %4573 = vmatprep.subr.bf16.mxu0 %v4466
        %4574 = vmatpush1.bf16.msra.mxu0 %v4465
        %4575 = vmatprep.subr.bf16.mxu0 %v4470
        %4576 = vmatpush1.bf16.msra.mxu0 %v4469
        %4577 = vmatprep.subr.bf16.mxu0 %v4474
        %4578 = vmatpush1.bf16.msra.mxu0 %v4473
        %4579 = vmatprep.subr.bf16.mxu0 %v4478
        %4580 = vmatpush1.bf16.msra.mxu0 %v4477
        %4581 = vmatprep.subr.bf16.mxu0 0
        %4582 = vmatpush1.bf16.msra.mxu0 0
        %4583 = vmatprep.subr.bf16.mxu0 0
        %4584 = vmatpush1.bf16.msra.mxu0 0
        %4585 = vmatprep.subr.bf16.mxu0 0
        %4586 = vmatpush1.bf16.msra.mxu0 0
        %4587 = vmatprep.subr.bf16.mxu0 0
        %4588 = vmatpush1.bf16.msra.mxu0 0
        %4589 = vmatprep.subr.bf16.mxu0 0
        %4590 = vmatpush1.bf16.msra.mxu0 0
        %4591 = vmatprep.subr.bf16.mxu0 0
        %4592 = vmatpush1.bf16.msra.mxu0 0
        %4593 = vmatprep.subr.bf16.mxu0 0
        %4594 = vmatpush1.bf16.msra.mxu0 0
        %4595 = vmatprep.subr.bf16.mxu0 0
        %4596 = vmatpush1.bf16.msra.mxu0 0
        %4597 = vmatprep.subr.bf16.mxu0 0
        %4598 = vmatpush1.bf16.msra.mxu0 0
        %4599 = vmatprep.subr.bf16.mxu0 0
        %4600 = vmatpush1.bf16.msra.mxu0 0
        %4601 = vmatprep.mubr.bf16.mxu0 0
        %4602 = vmatmul.mubr.bf16.gmra.mrb[0].mxu0 %v4515
        %v4603 = vpop.f32.mrb[0].mxu0
        %v4604 = vadd.f32 %v4487, %v4603
        %v4605 = vpop.f32.mrb[0].mxu0
        %v4606 = vadd.f32 %v4487, %v4605
        %v4607 = vpop.f32.mrb[0].mxu0
        %v4608 = vadd.f32 %v4492, %v4607
        %v4609 = vpop.f32.mrb[0].mxu0
        %v4610 = vadd.f32 %v4492, %v4609
        %4611 = vmatprep.mubr.bf16.mxu0 0
        %4612 = vmatmul.mubr.bf16.gmra.mrb[0].mxu0 %v4518
        %v4613 = vpop.f32.mrb[0].mxu0
        %v4614 = vadd.f32 %v4497, %v4613
        %v4615 = vpop.f32.mrb[0].mxu0
        %v4616 = vadd.f32 %v4497, %v4615
        %v4617 = vpop.f32.mrb[0].mxu0
        %v4618 = vadd.f32 %v4502, %v4617
        %v4619 = vpop.f32.mrb[0].mxu0
        %v4620 = vadd.f32 %v4502, %v4619
        %4621 = vdwg.mxu0
        %v4622 = vadd.f32 %v3658, %v4556
        %v4623 = vadd.f32 %v3659, %v4604
        %v4624 = vadd.f32 %v3660, %v4606
        %v4625 = vadd.f32 %v3663, %v4559
        %v4626 = vadd.f32 %v3664, %v4608
        %v4627 = vadd.f32 %v3665, %v4610
        %v4628 = vadd.f32 %v3668, %v4564
        %v4629 = vadd.f32 %v3669, %v4614
        %v4630 = vadd.f32 %v3670, %v4616
        %v4631 = vadd.f32 %v3673, %v4567
        %v4632 = vadd.f32 %v3674, %v4618
        %v4633 = vadd.f32 %v3675, %v4620
        %4634 = vst [vmem:[%s409] sm:$0xff] %v4622
        %4635 = vst [vmem:[%s409 + $0x8] sm:$0xff] %v4623
        %4636 = vst [vmem:[%s409 + $0x10] sm:$0xff] %v4624
        %4637 = vst [vmem:[%s409 + $0x18] sm:$0xff] %v4625
        %4638 = vst [vmem:[%s409 + $0x20] sm:$0xff] %v4626
        %4639 = vst [vmem:[%s409 + $0x28] sm:$0xff] %v4627
        %4640 = vst [vmem:[%s409 + $0x30] sm:$0xff] %v4628
        %4641 = vst [vmem:[%s409 + $0x38] sm:$0xff] %v4629
        %4642 = vst [vmem:[%s409 + $0x40] sm:$0xff] %v4630
        %4643 = vst [vmem:[%s409 + $0x48] sm:$0xff] %v4631
        %4644 = vst [vmem:[%s409 + $0x50] sm:$0xff] %v4632
        %4645 = vst [vmem:[%s409 + $0x58] sm:$0xff] %v4633
        %s4646 = sand.u32 %s187, 1
        %s4647 = scalar_lea.sflag [#allocation5], %s4646
        %s4648 = sand.u32 %s187, 1
        %s4649 = smul.addr %s4648, 96
        %s4650 = scalar_lea.vmem [#allocation10], %s4649
        // Predicated region
        $region91: #{tpu_custom_call.1} parent=73 // pred_check
          %p4651 = pneg %p197
        $region92: #{tpu_custom_call.1} parent=73 // pred_check_branch
          %4653 = sbr.rel (%p4651) target = $region94
        $region93: #{tpu_custom_call.1} parent=73 // pred_region
          %s4654 = smul.u32 3, %s28
          %s4656 = ssub.s32 1536, 1536
          %4657 = vsyncadd %s4647, %s4656
          %s4658 = smul.addr %s27, 12
          %s4659 = sadd.s32 %s4654, %s4658
          %s4660 = smul.addr %s4659, 128
          %s4661 = scalar_lea.hbm %s5, %s4660
          %s4662 = sshll.u32 %s4650, 4
          %s4663 = int_to_ptr.vmem [resolvable:$true] %s4662
          %4668 = dma.vmem_to_hbm [thread:$0]  %s4663, 1536, %s4661, %s4647, 384, 384, 24
        $region94: #{tpu_custom_call.1} parent=73 // pred_fallthru
          _
      $region74: #{tpu_custom_call.1} parent=5 // pred_fallthru
        _
      %p4669 = scmp.le.s32.totalorder 2, %s18
      // Predicated region
      $region95: #{tpu_custom_call.1} parent=5 // pred_check
        %p4670 = pneg %p4669
      $region96: #{tpu_custom_call.1} parent=5 // pred_check_branch
        %4672 = sbr.rel (%p4670) target = $region98
      $region97: #{tpu_custom_call.1} parent=5 // pred_region
        %s4673 = ssub.s32 %s18, 2
        // Predicated region
        $region99: #{tpu_custom_call.1} parent=97 // pred_check
          %p4674 = pneg %p203
        $region100: #{tpu_custom_call.1} parent=97 // pred_check_branch
          %4676 = sbr.rel (%p4674) target = $region102
        $region101: #{tpu_custom_call.1} parent=97 // pred_region
          %s4677 = sand.u32 %s188, 1
          %s4678 = scalar_lea.sflag [#allocation5], %s4677
          %s4679 = sand.u32 %s188, 1
          %s4680 = smul.addr %s4679, 96
          %s4681 = scalar_lea.vmem [#allocation10], %s4680
          %4682 = dma.done %s4678, 1536
        $region102: #{tpu_custom_call.1} parent=97 // pred_fallthru
          _
      $region98: #{tpu_custom_call.1} parent=5 // pred_fallthru
        _
    $region6: #{tpu_custom_call.1} parent=1 // loop_footer
      %s22 = sadd.s32 1, %s18
    $region7: #{tpu_custom_call.1} parent=1 // loop_footer_branch
      %17 = sbr.rel target = $region3
    $region8: #{tpu_custom_call.1} parent=1 // loop_exit
      _
    %4683 = vsyncpa [#allocation4], 1
    %s4684 = scalar_lea.sflag [#allocation4], 1
    %4685 = vsyncpa %s4684, 1
    %4686 = vsyncpa [#allocation8], 1
    %s4687 = scalar_lea.sflag [#allocation8], 1
    %4688 = vsyncpa %s4687, 1
    %4689 = vsyncpa [#allocation5], 1
    %s4690 = scalar_lea.sflag [#allocation5], 1
    %4691 = vsyncpa %s4690, 1

</llo_original>
